<compile_context>
chip_gen: v7x
topology: tpu7x:2x2x1
jax: 0.10.0
libtpu: 0.0.40
codegen_flags: <defaults>
</compile_context>

<pallas_src>
import functools

import jax
import jax.numpy as jnp
from jax.experimental import pallas as pl
from jax.experimental.pallas import tpu as pltpu


def _resblock_kernel(*refs, stride, has_proj, tile_h, h_out):
    """One grid step = one (batch element, output-row tile).

    inputs : space-to-depth x (1, s*s, Hs, Ws, Cin) bf16,
             w1 (3,3,Cin,Cout) bf16 (BN1 scale folded), b1 (1,Cout) f32,
             w2 (3,3,Cout,Cout) bf16 (BN2 scale folded), b2 (1,Cout) f32,
             [ws (Cin,Cout) bf16, bs (1,Cout) f32]  (projection shortcut only)
    output : (1, TH, Wo, Cout) f32
    scratch: (TH+2, Wo+2, Cout) bf16 -- conv2's zero-padded intermediate.
    """
    if has_proj:
        (x_ref, w1_ref, b1_ref, w2_ref, b2_ref, ws_ref, bs_ref,
         o_ref, hpad_ref) = refs
    else:
        (x_ref, w1_ref, b1_ref, w2_ref, b2_ref, o_ref, hpad_ref) = refs
        ws_ref = bs_ref = None

    s = stride
    TH = tile_h
    Wo, Cout = o_ref.shape[2], o_ref.shape[3]
    Cin = x_ref.shape[-1]

    r = pl.program_id(1)
    row0 = pl.multiple_of(r * TH, TH)          # first output row of this tile

    # ---- conv1: 3x3, stride s, pad 1, computed on a TH+2 row window -------
    # Space-to-depth makes every tap a contiguous slice: tap (ky,kx) lives in
    # phase (ky%s, kx%s) at block offset (ky//s, kx//s).
    P1 = (TH + 2) * Wo
    acc1 = jnp.zeros((P1, Cout), jnp.float32)
    for ky in range(3):
        qy, ry = divmod(ky, s)
        for kx in range(3):
            qx, rx = divmod(kx, s)
            phase = ry * s + rx
            patch = x_ref[0, phase, pl.ds(row0 + qy, TH + 2), qx:qx + Wo, :]
            acc1 = acc1 + jnp.dot(patch.reshape(P1, Cin), w1_ref[ky, kx],
                                  preferred_element_type=jnp.float32)
    # BN1 (scale already folded into w1) + ReLU, in f32.
    h1 = jnp.maximum(acc1 + b1_ref[...], 0.0).reshape(TH + 2, Wo, Cout)

    # ---- stage h1 into the bf16 scratch with a 1-element zero halo --------
    # Only the halo is zeroed; the interior is fully overwritten every step.
    hpad_ref[:, 0:1, :] = jnp.zeros((TH + 2, 1, Cout), hpad_ref.dtype)
    hpad_ref[:, Wo + 1:Wo + 2, :] = jnp.zeros((TH + 2, 1, Cout), hpad_ref.dtype)
    hpad_ref[:, 1:Wo + 1, :] = h1.astype(hpad_ref.dtype)

    # Rows of the extended window falling outside [0, Ho) are conv2 padding.
    @pl.when(r == 0)
    def _():
        hpad_ref[0:1, :, :] = jnp.zeros((1, Wo + 2, Cout), hpad_ref.dtype)

    @pl.when(r == pl.num_programs(1) - 1)
    def _():
        hpad_ref[TH + 1:TH + 2, :, :] = jnp.zeros((1, Wo + 2, Cout),
                                                  hpad_ref.dtype)

    # ---- conv2: 3x3, stride 1, pad 1 + BN2 (scale folded) ------------------
    P2 = TH * Wo
    acc2 = jnp.zeros((P2, Cout), jnp.float32)
    for ky in range(3):
        for kx in range(3):
            patch = hpad_ref[ky:ky + TH, kx:kx + Wo, :]
            acc2 = acc2 + jnp.dot(patch.reshape(P2, Cout), w2_ref[ky, kx],
                                  preferred_element_type=jnp.float32)
    left = acc2 + b2_ref[...]

    # ---- shortcut: identity, or 1x1 conv (stride s) + BN -------------------
    qs, rs = divmod(1, s)
    x_in = x_ref[0, rs * s + rs, pl.ds(row0 + 1 + qs, TH), qs:qs + Wo, :]
    x_in = x_in.reshape(P2, Cin)
    if has_proj:
        short = jnp.dot(x_in, ws_ref[...], preferred_element_type=jnp.float32)
        short = short + bs_ref[...]
    else:
        short = x_in.astype(jnp.float32)

    # ---- residual add + final ReLU -----------------------------------------
    out = jnp.maximum(left + short, 0.0)
    o_ref[...] = out.reshape(1, TH, Wo, Cout).astype(o_ref.dtype)


def _fold_bn_into_weight(w_oihw, gamma, beta, mean, var, eps):
    """Return (HWIO weight with BN scale folded, bf16) and (bias, f32 (1,Cout))."""
    scale = gamma / jnp.sqrt(var + eps)                       # (Cout,)
    w_hwio = jnp.transpose(w_oihw, (2, 3, 1, 0)).astype(jnp.float32) * scale
    bias = (beta - mean * scale).astype(jnp.float32).reshape(1, -1)
    return w_hwio.astype(jnp.bfloat16), bias


def residual_block_pallas(x_nchw, params, stride=1, eps=1e-5, max_tile_rows=32):
    """Wrapper: NCHW in/out, matching the PyTorch module's interface."""
    N, Cin, H, W = x_nchw.shape
    Cout = params['w1'].shape[0]
    s = int(stride)
    has_proj = (s != 1) or (Cin != Cout)
    Ho = (H + 2 - 3) // s + 1
    Wo = (W + 2 - 3) // s + 1

    # Output-row tile: largest divisor of Ho not exceeding max_tile_rows.
    TH = 1
    for cand in range(min(Ho, max_tile_rows), 0, -1):
        if Ho % cand == 0:
            TH = cand
            break
    R = Ho // TH

    # ---- glue: NHWC, conv padding + s-row halo shift, s x s space-to-depth --
    q = 2 // s                              # max tap block offset (2 for s=1, 1 for s=2)
    Hs, Ws = Ho + 2 + q, Wo + q             # space-to-depth spatial dims
    He, We = Hs * s, Ws * s
    pad_top, pad_left = s + 1, 1
    x = jnp.transpose(x_nchw, (0, 2, 3, 1)).astype(jnp.float32)      # NHWC
    xe = jnp.pad(x, ((0, 0), (pad_top, He - H - pad_top),
                     (pad_left, We - W - pad_left), (0, 0)))
    # xsd[n, ry*s+rx, i, j, c] == xe[n, i*s+ry, j*s+rx, c]
    xsd = xe.reshape(N, Hs, s, Ws, s, Cin).transpose(0, 2, 4, 1, 3, 5)
    xsd = xsd.reshape(N, s * s, Hs, Ws, Cin).astype(jnp.bfloat16)

    w1, b1 = _fold_bn_into_weight(params['w1'], params['g1'], params['b1'],
                                  params['m1'], params['v1'], eps)
    w2, b2 = _fold_bn_into_weight(params['w2'], params['g2'], params['b2'],
                                  params['m2'], params['v2'], eps)

    inputs = [xsd, w1, b1, w2, b2]
    in_specs = [
        pl.BlockSpec((1, s * s, Hs, Ws, Cin), lambda n, r: (n, 0, 0, 0, 0)),
        pl.BlockSpec(w1.shape, lambda n, r: (0, 0, 0, 0)),
        pl.BlockSpec(b1.shape, lambda n, r: (0, 0)),
        pl.BlockSpec(w2.shape, lambda n, r: (0, 0, 0, 0)),
        pl.BlockSpec(b2.shape, lambda n, r: (0, 0)),
    ]
    if has_proj:
        ws, bs = _fold_bn_into_weight(params['ws'], params['gs'], params['bs'],
                                      params['ms'], params['vs'], eps)
        ws = ws.reshape(Cin, Cout)          # (1,1,Cin,Cout) -> (Cin,Cout)
        inputs += [ws, bs]
        in_specs += [
            pl.BlockSpec(ws.shape, lambda n, r: (0, 0)),
            pl.BlockSpec(bs.shape, lambda n, r: (0, 0)),
        ]

    kernel = functools.partial(_resblock_kernel, stride=s, has_proj=has_proj,
                               tile_h=TH, h_out=Ho)
    out_nhwc = pl.pallas_call(
        kernel,
        out_shape=jax.ShapeDtypeStruct((N, Ho, Wo, Cout), jnp.float32),
        grid=(N, R),
        in_specs=in_specs,
        out_specs=pl.BlockSpec((1, TH, Wo, Cout), lambda n, r: (n, r, 0, 0)),
        scratch_shapes=[pltpu.VMEM((TH + 2, Wo + 2, Cout), jnp.bfloat16)],
        compiler_params=pltpu.CompilerParams(
            dimension_semantics=("parallel", "parallel")),
    )(*inputs)

    return jnp.transpose(out_nhwc, (0, 3, 1, 2))   # back to NCHW


def reference_residual_block(x, p, stride=1, eps=1e-5):
    """Pure-JAX (lax.conv) reference with eval-mode BatchNorm, NCHW, f32."""
    def conv(x, w, s, pad):
        return jax.lax.conv_general_dilated(
            x, w, window_strides=(s, s), padding=[(pad, pad), (pad, pad)],
            dimension_numbers=('NCHW', 'OIHW', 'NCHW'))

    def bn(x, g, b, m, v):
        g, b, m, v = (t[None, :, None, None] for t in (g, b, m, v))
        return (x - m) / jnp.sqrt(v + eps) * g + b

    out = conv(x, p['w1'], stride, 1)
    out = jax.nn.relu(bn(out, p['g1'], p['b1'], p['m1'], p['v1']))
    out = conv(out, p['w2'], 1, 1)
    out = bn(out, p['g2'], p['b2'], p['m2'], p['v2'])
    Cin, Cout = x.shape[1], p['w1'].shape[0]
    if stride != 1 or Cin != Cout:
        sc = conv(x, p['ws'], stride, 0)
        sc = bn(sc, p['gs'], p['bs'], p['ms'], p['vs'])
    else:
        sc = x
    return jax.nn.relu(out + sc)


if __name__ == "__main__":
    key = jax.random.PRNGKey(0)

    def rnorm(k, shape, scale=0.1):
        return scale * jax.random.normal(k, shape, jnp.float32)

    def runif(k, shape):
        return jax.random.uniform(k, shape, jnp.float32, 0.5, 1.5)

    def make_params(k, cin, cout, has_proj):
        ks = jax.random.split(k, 16)
        p = {
            'w1': rnorm(ks[0], (cout, cin, 3, 3), 0.2),
            'g1': runif(ks[1], (cout,)), 'b1': rnorm(ks[2], (cout,)),
            'm1': rnorm(ks[3], (cout,)), 'v1': runif(ks[4], (cout,)),
            'w2': rnorm(ks[5], (cout, cout, 3, 3), 0.2),
            'g2': runif(ks[6], (cout,)), 'b2': rnorm(ks[7], (cout,)),
            'm2': rnorm(ks[8], (cout,)), 'v2': runif(ks[9], (cout,)),
        }
        if has_proj:
            p.update({
                'ws': rnorm(ks[10], (cout, cin, 1, 1), 0.2),
                'gs': runif(ks[11], (cout,)), 'bs': rnorm(ks[12], (cout,)),
                'ms': rnorm(ks[13], (cout,)), 'vs': runif(ks[14], (cout,)),
            })
        return p

    #        N  Cin Cout  H   W  stride
    cases = [(2,  4,   8, 16, 16, 1),    # projection shortcut (channel change), 2 row tiles
             (2,  4,   8, 16, 16, 2),    # strided projection shortcut
             (2,  8,   8, 16, 16, 1),    # identity shortcut
             (2,  4,   8, 32, 32, 2)]    # strided, multi row-tile
    for i, (N, Cin, Cout, H, W, stride) in enumerate(cases):
        kp, kx, key = jax.random.split(key, 3)
        has_proj = (stride != 1) or (Cin != Cout)
        params = make_params(kp, Cin, Cout, has_proj)
        x = jax.random.normal(kx, (N, Cin, H, W), jnp.float32)

        out = jax.block_until_ready(
            residual_block_pallas(x, params, stride=stride, max_tile_rows=8))
        ref = reference_residual_block(x, params, stride=stride)

        assert out.shape == ref.shape, (i, out.shape, ref.shape)
        err = float(jnp.max(jnp.abs(out - ref)))
        # bf16 MXU operands vs f32 reference -> scale-aware tolerance.
        tol = 3e-2 * (float(jnp.max(jnp.abs(ref))) + 1.0)
        assert err <= tol, f"case {i}: max abs error {err} > tol {tol}"

    print("KERNEL_OK")
</pallas_src>

<mosaic_0001>
module attributes {stable_mosaic.version = 11 : i64} {
  func.func @_resblock_kernel(%arg0: i32, %arg1: i32, %arg2: memref<1x1x20x18x4xbf16, #tpu.memory_space<vmem>>, %arg3: memref<3x3x4x8xbf16, #tpu.memory_space<vmem>>, %arg4: memref<1x8xf32, #tpu.memory_space<vmem>>, %arg5: memref<3x3x8x8xbf16, #tpu.memory_space<vmem>>, %arg6: memref<1x8xf32, #tpu.memory_space<vmem>>, %arg7: memref<4x8xbf16, #tpu.memory_space<vmem>>, %arg8: memref<1x8xf32, #tpu.memory_space<vmem>>, %arg9: memref<1x8x16x8xf32, #tpu.memory_space<vmem>>, %arg10: memref<10x18x8xbf16, #tpu.memory_space<vmem>>) attributes {dimension_semantics = [#tpu.dimension_semantics<parallel>, #tpu.dimension_semantics<parallel>], iteration_bounds = array<i64: 2, 2>, scalar_prefetch = 0 : i64, scratch_operands = 1 : i64, tpu.core_type = #tpu.core_type<tc>, window_params = [{transform_indices = @transform_0, window_bounds = array<i64: 1, 1, 20, 18, 4>}, {pipeline_mode = #tpu.pipeline_mode<synchronous>, transform_indices = @transform_1, window_bounds = array<i64: 3, 3, 4, 8>}, {pipeline_mode = #tpu.pipeline_mode<synchronous>, transform_indices = @transform_2, window_bounds = array<i64: 1, 8>}, {pipeline_mode = #tpu.pipeline_mode<synchronous>, transform_indices = @transform_3, window_bounds = array<i64: 3, 3, 8, 8>}, {pipeline_mode = #tpu.pipeline_mode<synchronous>, transform_indices = @transform_4, window_bounds = array<i64: 1, 8>}, {pipeline_mode = #tpu.pipeline_mode<synchronous>, transform_indices = @transform_5, window_bounds = array<i64: 4, 8>}, {pipeline_mode = #tpu.pipeline_mode<synchronous>, transform_indices = @transform_6, window_bounds = array<i64: 1, 8>}, {transform_indices = @transform_7, window_bounds = array<i64: 1, 8, 16, 8>}]} {
    %c8_i32 = arith.constant 8 : i32
    %0 = arith.muli %arg1, %c8_i32 : i32
    %1 = tpu.assume_multiple %0, 8 : i32
    %cst = arith.constant 0.000000e+00 : f32
    %2 = vector.broadcast %cst : f32 to vector<160x8xf32>
    %c0_i32 = arith.constant 0 : i32
    %3 = arith.addi %1, %c0_i32 : i32
    %c0 = arith.constant 0 : index
    %c0_0 = arith.constant 0 : index
    %4 = arith.index_cast %3 : i32 to index
    %c0_1 = arith.constant 0 : index
    %c0_2 = arith.constant 0 : index
    %5 = vector.load %arg2[%c0, %c0_0, %4, %c0_1, %c0_2] : memref<1x1x20x18x4xbf16, #tpu.memory_space<vmem>>, vector<1x1x10x16x4xbf16>
    %6 = vector.shape_cast %5 : vector<1x1x10x16x4xbf16> to vector<10x16x4xbf16>
    %7 = vector.shape_cast %6 : vector<10x16x4xbf16> to vector<160x4xbf16>
    %c0_3 = arith.constant 0 : index
    %c0_4 = arith.constant 0 : index
    %c0_5 = arith.constant 0 : index
    %c0_6 = arith.constant 0 : index
    %8 = vector.load %arg3[%c0_3, %c0_4, %c0_5, %c0_6] : memref<3x3x4x8xbf16, #tpu.memory_space<vmem>>, vector<1x1x4x8xbf16>
    %9 = vector.shape_cast %8 : vector<1x1x4x8xbf16> to vector<4x8xbf16>
    %cst_7 = arith.constant dense<0.000000e+00> : vector<160x8xf32>
    %10 = tpu.matmul %7, %9, %cst_7 {dimension_numbers = #tpu.dot_dimension_numbers<[1], [0], [0], [1], [0, 0, 1, 1], [], []>} : vector<160x4xbf16>, vector<4x8xbf16>, vector<160x8xf32> -> vector<160x8xf32>
    %11 = arith.addf %2, %10 : vector<160x8xf32>
    %c0_i32_8 = arith.constant 0 : i32
    %12 = arith.addi %1, %c0_i32_8 : i32
    %c0_9 = arith.constant 0 : index
    %c0_10 = arith.constant 0 : index
    %13 = arith.index_cast %12 : i32 to index
    %c1 = arith.constant 1 : index
    %c0_11 = arith.constant 0 : index
    %14 = vector.load %arg2[%c0_9, %c0_10, %13, %c1, %c0_11] : memref<1x1x20x18x4xbf16, #tpu.memory_space<vmem>>, vector<1x1x10x16x4xbf16>
    %15 = vector.shape_cast %14 : vector<1x1x10x16x4xbf16> to vector<10x16x4xbf16>
    %16 = vector.shape_cast %15 : vector<10x16x4xbf16> to vector<160x4xbf16>
    %c0_12 = arith.constant 0 : index
    %c1_13 = arith.constant 1 : index
    %c0_14 = arith.constant 0 : index
    %c0_15 = arith.constant 0 : index
    %17 = vector.load %arg3[%c0_12, %c1_13, %c0_14, %c0_15] : memref<3x3x4x8xbf16, #tpu.memory_space<vmem>>, vector<1x1x4x8xbf16>
    %18 = vector.shape_cast %17 : vector<1x1x4x8xbf16> to vector<4x8xbf16>
    %cst_16 = arith.constant dense<0.000000e+00> : vector<160x8xf32>
    %19 = tpu.matmul %16, %18, %cst_16 {dimension_numbers = #tpu.dot_dimension_numbers<[1], [0], [0], [1], [0, 0, 1, 1], [], []>} : vector<160x4xbf16>, vector<4x8xbf16>, vector<160x8xf32> -> vector<160x8xf32>
    %20 = arith.addf %11, %19 : vector<160x8xf32>
    %c0_i32_17 = arith.constant 0 : i32
    %21 = arith.addi %1, %c0_i32_17 : i32
    %c0_18 = arith.constant 0 : index
    %c0_19 = arith.constant 0 : index
    %22 = arith.index_cast %21 : i32 to index
    %c2 = arith.constant 2 : index
    %c0_20 = arith.constant 0 : index
    %23 = vector.load %arg2[%c0_18, %c0_19, %22, %c2, %c0_20] : memref<1x1x20x18x4xbf16, #tpu.memory_space<vmem>>, vector<1x1x10x16x4xbf16>
    %24 = vector.shape_cast %23 : vector<1x1x10x16x4xbf16> to vector<10x16x4xbf16>
    %25 = vector.shape_cast %24 : vector<10x16x4xbf16> to vector<160x4xbf16>
    %c0_21 = arith.constant 0 : index
    %c2_22 = arith.constant 2 : index
    %c0_23 = arith.constant 0 : index
    %c0_24 = arith.constant 0 : index
    %26 = vector.load %arg3[%c0_21, %c2_22, %c0_23, %c0_24] : memref<3x3x4x8xbf16, #tpu.memory_space<vmem>>, vector<1x1x4x8xbf16>
    %27 = vector.shape_cast %26 : vector<1x1x4x8xbf16> to vector<4x8xbf16>
    %cst_25 = arith.constant dense<0.000000e+00> : vector<160x8xf32>
    %28 = tpu.matmul %25, %27, %cst_25 {dimension_numbers = #tpu.dot_dimension_numbers<[1], [0], [0], [1], [0, 0, 1, 1], [], []>} : vector<160x4xbf16>, vector<4x8xbf16>, vector<160x8xf32> -> vector<160x8xf32>
    %29 = arith.addf %20, %28 : vector<160x8xf32>
    %c1_i32 = arith.constant 1 : i32
    %30 = arith.addi %1, %c1_i32 : i32
    %c0_26 = arith.constant 0 : index
    %c0_27 = arith.constant 0 : index
    %31 = arith.index_cast %30 : i32 to index
    %c0_28 = arith.constant 0 : index
    %c0_29 = arith.constant 0 : index
    %32 = vector.load %arg2[%c0_26, %c0_27, %31, %c0_28, %c0_29] : memref<1x1x20x18x4xbf16, #tpu.memory_space<vmem>>, vector<1x1x10x16x4xbf16>
    %33 = vector.shape_cast %32 : vector<1x1x10x16x4xbf16> to vector<10x16x4xbf16>
    %34 = vector.shape_cast %33 : vector<10x16x4xbf16> to vector<160x4xbf16>
    %c1_30 = arith.constant 1 : index
    %c0_31 = arith.constant 0 : index
    %c0_32 = arith.constant 0 : index
    %c0_33 = arith.constant 0 : index
    %35 = vector.load %arg3[%c1_30, %c0_31, %c0_32, %c0_33] : memref<3x3x4x8xbf16, #tpu.memory_space<vmem>>, vector<1x1x4x8xbf16>
    %36 = vector.shape_cast %35 : vector<1x1x4x8xbf16> to vector<4x8xbf16>
    %cst_34 = arith.constant dense<0.000000e+00> : vector<160x8xf32>
    %37 = tpu.matmul %34, %36, %cst_34 {dimension_numbers = #tpu.dot_dimension_numbers<[1], [0], [0], [1], [0, 0, 1, 1], [], []>} : vector<160x4xbf16>, vector<4x8xbf16>, vector<160x8xf32> -> vector<160x8xf32>
    %38 = arith.addf %29, %37 : vector<160x8xf32>
    %c1_i32_35 = arith.constant 1 : i32
    %39 = arith.addi %1, %c1_i32_35 : i32
    %c0_36 = arith.constant 0 : index
    %c0_37 = arith.constant 0 : index
    %40 = arith.index_cast %39 : i32 to index
    %c1_38 = arith.constant 1 : index
    %c0_39 = arith.constant 0 : index
    %41 = vector.load %arg2[%c0_36, %c0_37, %40, %c1_38, %c0_39] : memref<1x1x20x18x4xbf16, #tpu.memory_space<vmem>>, vector<1x1x10x16x4xbf16>
    %42 = vector.shape_cast %41 : vector<1x1x10x16x4xbf16> to vector<10x16x4xbf16>
    %43 = vector.shape_cast %42 : vector<10x16x4xbf16> to vector<160x4xbf16>
    %c1_40 = arith.constant 1 : index
    %c1_41 = arith.constant 1 : index
    %c0_42 = arith.constant 0 : index
    %c0_43 = arith.constant 0 : index
    %44 = vector.load %arg3[%c1_40, %c1_41, %c0_42, %c0_43] : memref<3x3x4x8xbf16, #tpu.memory_space<vmem>>, vector<1x1x4x8xbf16>
    %45 = vector.shape_cast %44 : vector<1x1x4x8xbf16> to vector<4x8xbf16>
    %cst_44 = arith.constant dense<0.000000e+00> : vector<160x8xf32>
    %46 = tpu.matmul %43, %45, %cst_44 {dimension_numbers = #tpu.dot_dimension_numbers<[1], [0], [0], [1], [0, 0, 1, 1], [], []>} : vector<160x4xbf16>, vector<4x8xbf16>, vector<160x8xf32> -> vector<160x8xf32>
    %47 = arith.addf %38, %46 : vector<160x8xf32>
    %c1_i32_45 = arith.constant 1 : i32
    %48 = arith.addi %1, %c1_i32_45 : i32
    %c0_46 = arith.constant 0 : index
    %c0_47 = arith.constant 0 : index
    %49 = arith.index_cast %48 : i32 to index
    %c2_48 = arith.constant 2 : index
    %c0_49 = arith.constant 0 : index
    %50 = vector.load %arg2[%c0_46, %c0_47, %49, %c2_48, %c0_49] : memref<1x1x20x18x4xbf16, #tpu.memory_space<vmem>>, vector<1x1x10x16x4xbf16>
    %51 = vector.shape_cast %50 : vector<1x1x10x16x4xbf16> to vector<10x16x4xbf16>
    %52 = vector.shape_cast %51 : vector<10x16x4xbf16> to vector<160x4xbf16>
    %c1_50 = arith.constant 1 : index
    %c2_51 = arith.constant 2 : index
    %c0_52 = arith.constant 0 : index
    %c0_53 = arith.constant 0 : index
    %53 = vector.load %arg3[%c1_50, %c2_51, %c0_52, %c0_53] : memref<3x3x4x8xbf16, #tpu.memory_space<vmem>>, vector<1x1x4x8xbf16>
    %54 = vector.shape_cast %53 : vector<1x1x4x8xbf16> to vector<4x8xbf16>
    %cst_54 = arith.constant dense<0.000000e+00> : vector<160x8xf32>
    %55 = tpu.matmul %52, %54, %cst_54 {dimension_numbers = #tpu.dot_dimension_numbers<[1], [0], [0], [1], [0, 0, 1, 1], [], []>} : vector<160x4xbf16>, vector<4x8xbf16>, vector<160x8xf32> -> vector<160x8xf32>
    %56 = arith.addf %47, %55 : vector<160x8xf32>
    %c2_i32 = arith.constant 2 : i32
    %57 = arith.addi %1, %c2_i32 : i32
    %c0_55 = arith.constant 0 : index
    %c0_56 = arith.constant 0 : index
    %58 = arith.index_cast %57 : i32 to index
    %c0_57 = arith.constant 0 : index
    %c0_58 = arith.constant 0 : index
    %59 = vector.load %arg2[%c0_55, %c0_56, %58, %c0_57, %c0_58] : memref<1x1x20x18x4xbf16, #tpu.memory_space<vmem>>, vector<1x1x10x16x4xbf16>
    %60 = vector.shape_cast %59 : vector<1x1x10x16x4xbf16> to vector<10x16x4xbf16>
    %61 = vector.shape_cast %60 : vector<10x16x4xbf16> to vector<160x4xbf16>
    %c2_59 = arith.constant 2 : index
    %c0_60 = arith.constant 0 : index
    %c0_61 = arith.constant 0 : index
    %c0_62 = arith.constant 0 : index
    %62 = vector.load %arg3[%c2_59, %c0_60, %c0_61, %c0_62] : memref<3x3x4x8xbf16, #tpu.memory_space<vmem>>, vector<1x1x4x8xbf16>
    %63 = vector.shape_cast %62 : vector<1x1x4x8xbf16> to vector<4x8xbf16>
    %cst_63 = arith.constant dense<0.000000e+00> : vector<160x8xf32>
    %64 = tpu.matmul %61, %63, %cst_63 {dimension_numbers = #tpu.dot_dimension_numbers<[1], [0], [0], [1], [0, 0, 1, 1], [], []>} : vector<160x4xbf16>, vector<4x8xbf16>, vector<160x8xf32> -> vector<160x8xf32>
    %65 = arith.addf %56, %64 : vector<160x8xf32>
    %c2_i32_64 = arith.constant 2 : i32
    %66 = arith.addi %1, %c2_i32_64 : i32
    %c0_65 = arith.constant 0 : index
    %c0_66 = arith.constant 0 : index
    %67 = arith.index_cast %66 : i32 to index
    %c1_67 = arith.constant 1 : index
    %c0_68 = arith.constant 0 : index
    %68 = vector.load %arg2[%c0_65, %c0_66, %67, %c1_67, %c0_68] : memref<1x1x20x18x4xbf16, #tpu.memory_space<vmem>>, vector<1x1x10x16x4xbf16>
    %69 = vector.shape_cast %68 : vector<1x1x10x16x4xbf16> to vector<10x16x4xbf16>
    %70 = vector.shape_cast %69 : vector<10x16x4xbf16> to vector<160x4xbf16>
    %c2_69 = arith.constant 2 : index
    %c1_70 = arith.constant 1 : index
    %c0_71 = arith.constant 0 : index
    %c0_72 = arith.constant 0 : index
    %71 = vector.load %arg3[%c2_69, %c1_70, %c0_71, %c0_72] : memref<3x3x4x8xbf16, #tpu.memory_space<vmem>>, vector<1x1x4x8xbf16>
    %72 = vector.shape_cast %71 : vector<1x1x4x8xbf16> to vector<4x8xbf16>
    %cst_73 = arith.constant dense<0.000000e+00> : vector<160x8xf32>
    %73 = tpu.matmul %70, %72, %cst_73 {dimension_numbers = #tpu.dot_dimension_numbers<[1], [0], [0], [1], [0, 0, 1, 1], [], []>} : vector<160x4xbf16>, vector<4x8xbf16>, vector<160x8xf32> -> vector<160x8xf32>
    %74 = arith.addf %65, %73 : vector<160x8xf32>
    %c2_i32_74 = arith.constant 2 : i32
    %75 = arith.addi %1, %c2_i32_74 : i32
    %c0_75 = arith.constant 0 : index
    %c0_76 = arith.constant 0 : index
    %76 = arith.index_cast %75 : i32 to index
    %c2_77 = arith.constant 2 : index
    %c0_78 = arith.constant 0 : index
    %77 = vector.load %arg2[%c0_75, %c0_76, %76, %c2_77, %c0_78] : memref<1x1x20x18x4xbf16, #tpu.memory_space<vmem>>, vector<1x1x10x16x4xbf16>
    %78 = vector.shape_cast %77 : vector<1x1x10x16x4xbf16> to vector<10x16x4xbf16>
    %79 = vector.shape_cast %78 : vector<10x16x4xbf16> to vector<160x4xbf16>
    %c2_79 = arith.constant 2 : index
    %c2_80 = arith.constant 2 : index
    %c0_81 = arith.constant 0 : index
    %c0_82 = arith.constant 0 : index
    %80 = vector.load %arg3[%c2_79, %c2_80, %c0_81, %c0_82] : memref<3x3x4x8xbf16, #tpu.memory_space<vmem>>, vector<1x1x4x8xbf16>
    %81 = vector.shape_cast %80 : vector<1x1x4x8xbf16> to vector<4x8xbf16>
    %cst_83 = arith.constant dense<0.000000e+00> : vector<160x8xf32>
    %82 = tpu.matmul %79, %81, %cst_83 {dimension_numbers = #tpu.dot_dimension_numbers<[1], [0], [0], [1], [0, 0, 1, 1], [], []>} : vector<160x4xbf16>, vector<4x8xbf16>, vector<160x8xf32> -> vector<160x8xf32>
    %83 = arith.addf %74, %82 : vector<160x8xf32>
    %c0_84 = arith.constant 0 : index
    %c0_85 = arith.constant 0 : index
    %84 = vector.load %arg4[%c0_84, %c0_85] : memref<1x8xf32, #tpu.memory_space<vmem>>, vector<1x8xf32>
    %85 = vector.broadcast %84 : vector<1x8xf32> to vector<160x8xf32>
    %86 = arith.addf %83, %85 : vector<160x8xf32>
    %cst_86 = arith.constant 0.000000e+00 : f32
    %87 = vector.broadcast %cst_86 : f32 to vector<160x8xf32>
    %88 = arith.maximumf %86, %87 : vector<160x8xf32>
    %89 = vector.shape_cast %88 : vector<160x8xf32> to vector<10x16x8xf32>
    %cst_87 = arith.constant 0.000000e+00 : bf16
    %90 = vector.broadcast %cst_87 : bf16 to vector<10x1x8xbf16>
    %c0_88 = arith.constant 0 : index
    %c0_89 = arith.constant 0 : index
    %c0_90 = arith.constant 0 : index
    %91 = vector.load %arg10[%c0_88, %c0_89, %c0_90] : memref<10x18x8xbf16, #tpu.memory_space<vmem>>, vector<10x1x8xbf16>
    tpu.vector_store %arg10[%c0_88, %c0_89, %c0_90], %90 {strides = array<i32>} : memref<10x18x8xbf16, #tpu.memory_space<vmem>>, vector<10x1x8xbf16>,
    %cst_91 = arith.constant 0.000000e+00 : bf16
    %92 = vector.broadcast %cst_91 : bf16 to vector<10x1x8xbf16>
    %c0_92 = arith.constant 0 : index
    %c17 = arith.constant 17 : index
    %c0_93 = arith.constant 0 : index
    %93 = vector.load %arg10[%c0_92, %c17, %c0_93] : memref<10x18x8xbf16, #tpu.memory_space<vmem>>, vector<10x1x8xbf16>
    tpu.vector_store %arg10[%c0_92, %c17, %c0_93], %92 {strides = array<i32>} : memref<10x18x8xbf16, #tpu.memory_space<vmem>>, vector<10x1x8xbf16>,
    %94 = arith.truncf %89 : vector<10x16x8xf32> to vector<10x16x8xbf16>
    %c0_94 = arith.constant 0 : index
    %c1_95 = arith.constant 1 : index
    %c0_96 = arith.constant 0 : index
    %95 = vector.load %arg10[%c0_94, %c1_95, %c0_96] : memref<10x18x8xbf16, #tpu.memory_space<vmem>>, vector<10x16x8xbf16>
    tpu.vector_store %arg10[%c0_94, %c1_95, %c0_96], %94 {strides = array<i32>} : memref<10x18x8xbf16, #tpu.memory_space<vmem>>, vector<10x16x8xbf16>,
    %c0_i32_97 = arith.constant 0 : i32
    %96 = arith.cmpi eq, %arg1, %c0_i32_97 : i32
    %97 = arith.extui %96 : i1 to i32
    %c0_i32_98 = arith.constant 0 : i32
    %98 = arith.cmpi ne, %97, %c0_i32_98 : i32
    scf.if %98 {
      %cst_192 = arith.constant 0.000000e+00 : bf16
      %176 = vector.broadcast %cst_192 : bf16 to vector<1x18x8xbf16>
      %c0_193 = arith.constant 0 : index
      %c0_194 = arith.constant 0 : index
      %c0_195 = arith.constant 0 : index
      %177 = vector.load %arg10[%c0_193, %c0_194, %c0_195] : memref<10x18x8xbf16, #tpu.memory_space<vmem>>, vector<1x18x8xbf16>
      tpu.vector_store %arg10[%c0_193, %c0_194, %c0_195], %176 {strides = array<i32>} : memref<10x18x8xbf16, #tpu.memory_space<vmem>>, vector<1x18x8xbf16>,
    } else {
    }
    %c1_i32_99 = arith.constant 1 : i32
    %99 = arith.cmpi eq, %arg1, %c1_i32_99 : i32
    %100 = arith.extui %99 : i1 to i32
    %c0_i32_100 = arith.constant 0 : i32
    %101 = arith.cmpi ne, %100, %c0_i32_100 : i32
    scf.if %101 {
      %cst_192 = arith.constant 0.000000e+00 : bf16
      %176 = vector.broadcast %cst_192 : bf16 to vector<1x18x8xbf16>
      %c9 = arith.constant 9 : index
      %c0_193 = arith.constant 0 : index
      %c0_194 = arith.constant 0 : index
      %177 = vector.load %arg10[%c9, %c0_193, %c0_194] : memref<10x18x8xbf16, #tpu.memory_space<vmem>>, vector<1x18x8xbf16>
      tpu.vector_store %arg10[%c9, %c0_193, %c0_194], %176 {strides = array<i32>} : memref<10x18x8xbf16, #tpu.memory_space<vmem>>, vector<1x18x8xbf16>,
    } else {
    }
    %cst_101 = arith.constant 0.000000e+00 : f32
    %102 = vector.broadcast %cst_101 : f32 to vector<128x8xf32>
    %c0_102 = arith.constant 0 : index
    %c0_103 = arith.constant 0 : index
    %c0_104 = arith.constant 0 : index
    %103 = vector.load %arg10[%c0_102, %c0_103, %c0_104] : memref<10x18x8xbf16, #tpu.memory_space<vmem>>, vector<8x16x8xbf16>
    %104 = vector.shape_cast %103 : vector<8x16x8xbf16> to vector<128x8xbf16>
    %c0_105 = arith.constant 0 : index
    %c0_106 = arith.constant 0 : index
    %c0_107 = arith.constant 0 : index
    %c0_108 = arith.constant 0 : index
    %105 = vector.load %arg5[%c0_105, %c0_106, %c0_107, %c0_108] : memref<3x3x8x8xbf16, #tpu.memory_space<vmem>>, vector<1x1x8x8xbf16>
    %106 = vector.shape_cast %105 : vector<1x1x8x8xbf16> to vector<8x8xbf16>
    %cst_109 = arith.constant dense<0.000000e+00> : vector<128x8xf32>
    %107 = tpu.matmul %104, %106, %cst_109 {dimension_numbers = #tpu.dot_dimension_numbers<[1], [0], [0], [1], [0, 0, 1, 1], [], []>} : vector<128x8xbf16>, vector<8x8xbf16>, vector<128x8xf32> -> vector<128x8xf32>
    %108 = arith.addf %102, %107 : vector<128x8xf32>
    %c0_110 = arith.constant 0 : index
    %c1_111 = arith.constant 1 : index
    %c0_112 = arith.constant 0 : index
    %109 = vector.load %arg10[%c0_110, %c1_111, %c0_112] : memref<10x18x8xbf16, #tpu.memory_space<vmem>>, vector<8x16x8xbf16>
    %110 = vector.shape_cast %109 : vector<8x16x8xbf16> to vector<128x8xbf16>
    %c0_113 = arith.constant 0 : index
    %c1_114 = arith.constant 1 : index
    %c0_115 = arith.constant 0 : index
    %c0_116 = arith.constant 0 : index
    %111 = vector.load %arg5[%c0_113, %c1_114, %c0_115, %c0_116] : memref<3x3x8x8xbf16, #tpu.memory_space<vmem>>, vector<1x1x8x8xbf16>
    %112 = vector.shape_cast %111 : vector<1x1x8x8xbf16> to vector<8x8xbf16>
    %cst_117 = arith.constant dense<0.000000e+00> : vector<128x8xf32>
    %113 = tpu.matmul %110, %112, %cst_117 {dimension_numbers = #tpu.dot_dimension_numbers<[1], [0], [0], [1], [0, 0, 1, 1], [], []>} : vector<128x8xbf16>, vector<8x8xbf16>, vector<128x8xf32> -> vector<128x8xf32>
    %114 = arith.addf %108, %113 : vector<128x8xf32>
    %c0_118 = arith.constant 0 : index
    %c2_119 = arith.constant 2 : index
    %c0_120 = arith.constant 0 : index
    %115 = vector.load %arg10[%c0_118, %c2_119, %c0_120] : memref<10x18x8xbf16, #tpu.memory_space<vmem>>, vector<8x16x8xbf16>
    %116 = vector.shape_cast %115 : vector<8x16x8xbf16> to vector<128x8xbf16>
    %c0_121 = arith.constant 0 : index
    %c2_122 = arith.constant 2 : index
    %c0_123 = arith.constant 0 : index
    %c0_124 = arith.constant 0 : index
    %117 = vector.load %arg5[%c0_121, %c2_122, %c0_123, %c0_124] : memref<3x3x8x8xbf16, #tpu.memory_space<vmem>>, vector<1x1x8x8xbf16>
    %118 = vector.shape_cast %117 : vector<1x1x8x8xbf16> to vector<8x8xbf16>
    %cst_125 = arith.constant dense<0.000000e+00> : vector<128x8xf32>
    %119 = tpu.matmul %116, %118, %cst_125 {dimension_numbers = #tpu.dot_dimension_numbers<[1], [0], [0], [1], [0, 0, 1, 1], [], []>} : vector<128x8xbf16>, vector<8x8xbf16>, vector<128x8xf32> -> vector<128x8xf32>
    %120 = arith.addf %114, %119 : vector<128x8xf32>
    %c1_126 = arith.constant 1 : index
    %c0_127 = arith.constant 0 : index
    %c0_128 = arith.constant 0 : index
    %121 = vector.load %arg10[%c1_126, %c0_127, %c0_128] : memref<10x18x8xbf16, #tpu.memory_space<vmem>>, vector<8x16x8xbf16>
    %122 = vector.shape_cast %121 : vector<8x16x8xbf16> to vector<128x8xbf16>
    %c1_129 = arith.constant 1 : index
    %c0_130 = arith.constant 0 : index
    %c0_131 = arith.constant 0 : index
    %c0_132 = arith.constant 0 : index
    %123 = vector.load %arg5[%c1_129, %c0_130, %c0_131, %c0_132] : memref<3x3x8x8xbf16, #tpu.memory_space<vmem>>, vector<1x1x8x8xbf16>
    %124 = vector.shape_cast %123 : vector<1x1x8x8xbf16> to vector<8x8xbf16>
    %cst_133 = arith.constant dense<0.000000e+00> : vector<128x8xf32>
    %125 = tpu.matmul %122, %124, %cst_133 {dimension_numbers = #tpu.dot_dimension_numbers<[1], [0], [0], [1], [0, 0, 1, 1], [], []>} : vector<128x8xbf16>, vector<8x8xbf16>, vector<128x8xf32> -> vector<128x8xf32>
    %126 = arith.addf %120, %125 : vector<128x8xf32>
    %c1_134 = arith.constant 1 : index
    %c1_135 = arith.constant 1 : index
    %c0_136 = arith.constant 0 : index
    %127 = vector.load %arg10[%c1_134, %c1_135, %c0_136] : memref<10x18x8xbf16, #tpu.memory_space<vmem>>, vector<8x16x8xbf16>
    %128 = vector.shape_cast %127 : vector<8x16x8xbf16> to vector<128x8xbf16>
    %c1_137 = arith.constant 1 : index
    %c1_138 = arith.constant 1 : index
    %c0_139 = arith.constant 0 : index
    %c0_140 = arith.constant 0 : index
    %129 = vector.load %arg5[%c1_137, %c1_138, %c0_139, %c0_140] : memref<3x3x8x8xbf16, #tpu.memory_space<vmem>>, vector<1x1x8x8xbf16>
    %130 = vector.shape_cast %129 : vector<1x1x8x8xbf16> to vector<8x8xbf16>
    %cst_141 = arith.constant dense<0.000000e+00> : vector<128x8xf32>
    %131 = tpu.matmul %128, %130, %cst_141 {dimension_numbers = #tpu.dot_dimension_numbers<[1], [0], [0], [1], [0, 0, 1, 1], [], []>} : vector<128x8xbf16>, vector<8x8xbf16>, vector<128x8xf32> -> vector<128x8xf32>
    %132 = arith.addf %126, %131 : vector<128x8xf32>
    %c1_142 = arith.constant 1 : index
    %c2_143 = arith.constant 2 : index
    %c0_144 = arith.constant 0 : index
    %133 = vector.load %arg10[%c1_142, %c2_143, %c0_144] : memref<10x18x8xbf16, #tpu.memory_space<vmem>>, vector<8x16x8xbf16>
    %134 = vector.shape_cast %133 : vector<8x16x8xbf16> to vector<128x8xbf16>
    %c1_145 = arith.constant 1 : index
    %c2_146 = arith.constant 2 : index
    %c0_147 = arith.constant 0 : index
    %c0_148 = arith.constant 0 : index
    %135 = vector.load %arg5[%c1_145, %c2_146, %c0_147, %c0_148] : memref<3x3x8x8xbf16, #tpu.memory_space<vmem>>, vector<1x1x8x8xbf16>
    %136 = vector.shape_cast %135 : vector<1x1x8x8xbf16> to vector<8x8xbf16>
    %cst_149 = arith.constant dense<0.000000e+00> : vector<128x8xf32>
    %137 = tpu.matmul %134, %136, %cst_149 {dimension_numbers = #tpu.dot_dimension_numbers<[1], [0], [0], [1], [0, 0, 1, 1], [], []>} : vector<128x8xbf16>, vector<8x8xbf16>, vector<128x8xf32> -> vector<128x8xf32>
    %138 = arith.addf %132, %137 : vector<128x8xf32>
    %c2_150 = arith.constant 2 : index
    %c0_151 = arith.constant 0 : index
    %c0_152 = arith.constant 0 : index
    %139 = vector.load %arg10[%c2_150, %c0_151, %c0_152] : memref<10x18x8xbf16, #tpu.memory_space<vmem>>, vector<8x16x8xbf16>
    %140 = vector.shape_cast %139 : vector<8x16x8xbf16> to vector<128x8xbf16>
    %c2_153 = arith.constant 2 : index
    %c0_154 = arith.constant 0 : index
    %c0_155 = arith.constant 0 : index
    %c0_156 = arith.constant 0 : index
    %141 = vector.load %arg5[%c2_153, %c0_154, %c0_155, %c0_156] : memref<3x3x8x8xbf16, #tpu.memory_space<vmem>>, vector<1x1x8x8xbf16>
    %142 = vector.shape_cast %141 : vector<1x1x8x8xbf16> to vector<8x8xbf16>
    %cst_157 = arith.constant dense<0.000000e+00> : vector<128x8xf32>
    %143 = tpu.matmul %140, %142, %cst_157 {dimension_numbers = #tpu.dot_dimension_numbers<[1], [0], [0], [1], [0, 0, 1, 1], [], []>} : vector<128x8xbf16>, vector<8x8xbf16>, vector<128x8xf32> -> vector<128x8xf32>
    %144 = arith.addf %138, %143 : vector<128x8xf32>
    %c2_158 = arith.constant 2 : index
    %c1_159 = arith.constant 1 : index
    %c0_160 = arith.constant 0 : index
    %145 = vector.load %arg10[%c2_158, %c1_159, %c0_160] : memref<10x18x8xbf16, #tpu.memory_space<vmem>>, vector<8x16x8xbf16>
    %146 = vector.shape_cast %145 : vector<8x16x8xbf16> to vector<128x8xbf16>
    %c2_161 = arith.constant 2 : index
    %c1_162 = arith.constant 1 : index
    %c0_163 = arith.constant 0 : index
    %c0_164 = arith.constant 0 : index
    %147 = vector.load %arg5[%c2_161, %c1_162, %c0_163, %c0_164] : memref<3x3x8x8xbf16, #tpu.memory_space<vmem>>, vector<1x1x8x8xbf16>
    %148 = vector.shape_cast %147 : vector<1x1x8x8xbf16> to vector<8x8xbf16>
    %cst_165 = arith.constant dense<0.000000e+00> : vector<128x8xf32>
    %149 = tpu.matmul %146, %148, %cst_165 {dimension_numbers = #tpu.dot_dimension_numbers<[1], [0], [0], [1], [0, 0, 1, 1], [], []>} : vector<128x8xbf16>, vector<8x8xbf16>, vector<128x8xf32> -> vector<128x8xf32>
    %150 = arith.addf %144, %149 : vector<128x8xf32>
    %c2_166 = arith.constant 2 : index
    %c2_167 = arith.constant 2 : index
    %c0_168 = arith.constant 0 : index
    %151 = vector.load %arg10[%c2_166, %c2_167, %c0_168] : memref<10x18x8xbf16, #tpu.memory_space<vmem>>, vector<8x16x8xbf16>
    %152 = vector.shape_cast %151 : vector<8x16x8xbf16> to vector<128x8xbf16>
    %c2_169 = arith.constant 2 : index
    %c2_170 = arith.constant 2 : index
    %c0_171 = arith.constant 0 : index
    %c0_172 = arith.constant 0 : index
    %153 = vector.load %arg5[%c2_169, %c2_170, %c0_171, %c0_172] : memref<3x3x8x8xbf16, #tpu.memory_space<vmem>>, vector<1x1x8x8xbf16>
    %154 = vector.shape_cast %153 : vector<1x1x8x8xbf16> to vector<8x8xbf16>
    %cst_173 = arith.constant dense<0.000000e+00> : vector<128x8xf32>
    %155 = tpu.matmul %152, %154, %cst_173 {dimension_numbers = #tpu.dot_dimension_numbers<[1], [0], [0], [1], [0, 0, 1, 1], [], []>} : vector<128x8xbf16>, vector<8x8xbf16>, vector<128x8xf32> -> vector<128x8xf32>
    %156 = arith.addf %150, %155 : vector<128x8xf32>
    %c0_174 = arith.constant 0 : index
    %c0_175 = arith.constant 0 : index
    %157 = vector.load %arg6[%c0_174, %c0_175] : memref<1x8xf32, #tpu.memory_space<vmem>>, vector<1x8xf32>
    %158 = vector.broadcast %157 : vector<1x8xf32> to vector<128x8xf32>
    %159 = arith.addf %156, %158 : vector<128x8xf32>
    %c1_i32_176 = arith.constant 1 : i32
    %160 = arith.addi %1, %c1_i32_176 : i32
    %c1_i32_177 = arith.constant 1 : i32
    %161 = arith.addi %160, %c1_i32_177 : i32
    %c0_178 = arith.constant 0 : index
    %c0_179 = arith.constant 0 : index
    %162 = arith.index_cast %161 : i32 to index
    %c1_180 = arith.constant 1 : index
    %c0_181 = arith.constant 0 : index
    %163 = vector.load %arg2[%c0_178, %c0_179, %162, %c1_180, %c0_181] : memref<1x1x20x18x4xbf16, #tpu.memory_space<vmem>>, vector<1x1x8x16x4xbf16>
    %164 = vector.shape_cast %163 : vector<1x1x8x16x4xbf16> to vector<8x16x4xbf16>
    %165 = vector.shape_cast %164 : vector<8x16x4xbf16> to vector<128x4xbf16>
    %c0_182 = arith.constant 0 : index
    %c0_183 = arith.constant 0 : index
    %166 = vector.load %arg7[%c0_182, %c0_183] : memref<4x8xbf16, #tpu.memory_space<vmem>>, vector<4x8xbf16>
    %cst_184 = arith.constant dense<0.000000e+00> : vector<128x8xf32>
    %167 = tpu.matmul %165, %166, %cst_184 {dimension_numbers = #tpu.dot_dimension_numbers<[1], [0], [0], [1], [0, 0, 1, 1], [], []>} : vector<128x4xbf16>, vector<4x8xbf16>, vector<128x8xf32> -> vector<128x8xf32>
    %c0_185 = arith.constant 0 : index
    %c0_186 = arith.constant 0 : index
    %168 = vector.load %arg8[%c0_185, %c0_186] : memref<1x8xf32, #tpu.memory_space<vmem>>, vector<1x8xf32>
    %169 = vector.broadcast %168 : vector<1x8xf32> to vector<128x8xf32>
    %170 = arith.addf %167, %169 : vector<128x8xf32>
    %171 = arith.addf %159, %170 : vector<128x8xf32>
    %cst_187 = arith.constant 0.000000e+00 : f32
    %172 = vector.broadcast %cst_187 : f32 to vector<128x8xf32>
    %173 = arith.maximumf %171, %172 : vector<128x8xf32>
    %174 = vector.shape_cast %173 : vector<128x8xf32> to vector<1x8x16x8xf32>
    %c0_188 = arith.constant 0 : index
    %c0_189 = arith.constant 0 : index
    %c0_190 = arith.constant 0 : index
    %c0_191 = arith.constant 0 : index
    %175 = vector.load %arg9[%c0_188, %c0_189, %c0_190, %c0_191] : memref<1x8x16x8xf32, #tpu.memory_space<vmem>>, vector<1x8x16x8xf32>
    tpu.vector_store %arg9[%c0_188, %c0_189, %c0_190, %c0_191], %174 {strides = array<i32>} : memref<1x8x16x8xf32, #tpu.memory_space<vmem>>, vector<1x8x16x8xf32>,
    return
  }
  func.func @transform_0(%arg0: i32, %arg1: i32) -> (i32, i32, i32, i32, i32) {
    %c0_i32 = arith.constant 0 : i32
    %c0_i32_0 = arith.constant 0 : i32
    %c0_i32_1 = arith.constant 0 : i32
    %c0_i32_2 = arith.constant 0 : i32
    %c0_i32_3 = arith.constant 0 : i32
    return %arg0, %c0_i32, %c0_i32_0, %c0_i32_1, %c0_i32_2 : i32, i32, i32, i32, i32
  }
  func.func @transform_1(%arg0: i32, %arg1: i32) -> (i32, i32, i32, i32) {
    %c0_i32 = arith.constant 0 : i32
    %c0_i32_0 = arith.constant 0 : i32
    %c0_i32_1 = arith.constant 0 : i32
    %c0_i32_2 = arith.constant 0 : i32
    %c0_i32_3 = arith.constant 0 : i32
    return %c0_i32, %c0_i32_0, %c0_i32_1, %c0_i32_2 : i32, i32, i32, i32
  }
  func.func @transform_2(%arg0: i32, %arg1: i32) -> (i32, i32) {
    %c0_i32 = arith.constant 0 : i32
    %c0_i32_0 = arith.constant 0 : i32
    %c0_i32_1 = arith.constant 0 : i32
    return %c0_i32, %c0_i32_0 : i32, i32
  }
  func.func @transform_3(%arg0: i32, %arg1: i32) -> (i32, i32, i32, i32) {
    %c0_i32 = arith.constant 0 : i32
    %c0_i32_0 = arith.constant 0 : i32
    %c0_i32_1 = arith.constant 0 : i32
    %c0_i32_2 = arith.constant 0 : i32
    %c0_i32_3 = arith.constant 0 : i32
    return %c0_i32, %c0_i32_0, %c0_i32_1, %c0_i32_2 : i32, i32, i32, i32
  }
  func.func @transform_4(%arg0: i32, %arg1: i32) -> (i32, i32) {
    %c0_i32 = arith.constant 0 : i32
    %c0_i32_0 = arith.constant 0 : i32
    %c0_i32_1 = arith.constant 0 : i32
    return %c0_i32, %c0_i32_0 : i32, i32
  }
  func.func @transform_5(%arg0: i32, %arg1: i32) -> (i32, i32) {
    %c0_i32 = arith.constant 0 : i32
    %c0_i32_0 = arith.constant 0 : i32
    %c0_i32_1 = arith.constant 0 : i32
    return %c0_i32, %c0_i32_0 : i32, i32
  }
  func.func @transform_6(%arg0: i32, %arg1: i32) -> (i32, i32) {
    %c0_i32 = arith.constant 0 : i32
    %c0_i32_0 = arith.constant 0 : i32
    %c0_i32_1 = arith.constant 0 : i32
    return %c0_i32, %c0_i32_0 : i32, i32
  }
  func.func @transform_7(%arg0: i32, %arg1: i32) -> (i32, i32, i32, i32) {
    %c0_i32 = arith.constant 0 : i32
    %c0_i32_0 = arith.constant 0 : i32
    %c0_i32_1 = arith.constant 0 : i32
    return %arg0, %arg1, %c0_i32, %c0_i32_0 : i32, i32, i32, i32
  }
}

</mosaic_0001>

<llo_original>
// kernel: tpu_custom_call.1
$region0: #{tpu_custom_call.1}
  #allocation0 [shape = 'u32[]', space=smem, size = 0x4, offset = 0x4, fixed_abs, tag = 'smem constant byte address 0x4 - core index']
  #allocation1 [shape = 'u32[144,128]{1,0:T(1,128)}', space=vmem, size = 0x12000, scoped, tag = 'internal scratch']
  #allocation2 [shape = 'bf16[10,18,8]{2,1,0:T(8,128)(2,1)}', space=vmem, size = 0xf000, scoped, tag = 'scratch operand']
  %s0 = inlined_call_operand.vmem [shape: bf16[2,1,20,18,4], index: 0, kind: input, shape index: {}]
  %s1 = inlined_call_operand.vmem [shape: bf16[3,3,4,8], index: 1, kind: input, shape index: {}]
  %s2 = inlined_call_operand.vmem [shape: f32[1,8], index: 2, kind: input, shape index: {}]
  %s3 = inlined_call_operand.vmem [shape: bf16[3,3,8,8], index: 3, kind: input, shape index: {}]
  %s4 = inlined_call_operand.vmem [shape: f32[1,8], index: 4, kind: input, shape index: {}]
  %s5 = inlined_call_operand.vmem [shape: bf16[4,8], index: 5, kind: input, shape index: {}]
  %s6 = inlined_call_operand.vmem [shape: f32[1,8], index: 6, kind: input, shape index: {}]
  %s7 = inlined_call_operand.vmem [shape: f32[2,16,16,8], index: 7, kind: output, shape index: {}]
  %s8 = sld [smem:[#allocation0]]
  $region69: #{tpu_custom_call.1} parent=0
    _
  %s10 = ssub.s32 1, %s8
  %s11 = scalar_select 0, %s10, %s8
  loop: start=0, step=1, limit=6
  $region2: #{tpu_custom_call.1} parent=0 // loop_pre_header
    _
  $region3: #{tpu_custom_call.1} parent=0 // loop_header
    %s13 = sphi 0, %s17
    %p14 = scmp.ge.s32.totalorder %s13, 6
    %s20 = sphi 0, %s32
    %s21 = sphi 0, %s28
    %s22 = sphi 0, %s20
    %s23 = sphi 0, %s21
    %s24 = sphi 0, %s22
    %s25 = sphi 0, %s23
    %s35 = sphi 0, %s37
    %s38 = sphi 0, %s35
    %s39 = sphi 0, %s38
    %s55 = sphi 0, %s39
    %s59 = sphi 0, %s59
    %s61 = sphi 0, %s59
    %s62 = sphi 0, %s61
    %s76 = sphi 0, %s62
    %s80 = sphi 0, %s80
    %s82 = sphi 0, %s80
    %s83 = sphi 0, %s82
    %s97 = sphi 0, %s83
    %s101 = sphi 0, %s101
    %s103 = sphi 0, %s101
    %s104 = sphi 0, %s103
    %s118 = sphi 0, %s104
    %s122 = sphi 0, %s122
    %s124 = sphi 0, %s122
    %s125 = sphi 0, %s124
    %s139 = sphi 0, %s125
    %s143 = sphi 0, %s143
    %s145 = sphi 0, %s143
    %s146 = sphi 0, %s145
    %s160 = sphi 0, %s146
    %s164 = sphi 0, %s164
    %s166 = sphi 0, %s164
    %s167 = sphi 0, %s166
    %s181 = sphi 0, %s167
    %s189 = sphi 0, %s191
    %s192 = sphi 0, %s189
    %s193 = sphi 0, %s192
    %s209 = sphi 0, %s193
  $region4: #{tpu_custom_call.1} parent=0 // loop_header_branch
    %16 = sbr.rel (%p14) target = $region8
  $region5: #{tpu_custom_call.1} parent=0 // loop_body
    %s18 = ssub.s32 %s13, 1
    %s19 = ssub.s32 %s13, 2
    %s26 = sadd.s32 1, %s21
    %p27 = scmp.ge.s32.totalorder %s26, 2
    %s28 = scalar_select %p27, 0, %s26
    %s29 = sadd.s32 1, %s20
    %s30 = scalar_select %p27, %s29, %s20
    %p31 = scmp.ge.s32.totalorder %s30, 2
    %s32 = scalar_select %p31, 0, %s30
    %s33 = ssub.s32 %s20, %s32
    %p34 = scmp.eq.s32.totalorder %s33, 0
    %s36 = sadd.s32 %s35, 1
    %s37 = scalar_select %p34, %s35, %s36
    %p40 = pneg %p34
    %p41 = scmp.eq.s32.totalorder %s13, 3
    %p42 = por %p40, %p41
    %p43 = scmp.ne.s32.totalorder %s35, %s38
    %p44 = scmp.eq.s32.totalorder %s13, 0
    %p45 = por %p43, %p44
    %p46 = scmp.ne.s32.totalorder %s35, %s38
    %p47 = scmp.eq.s32.totalorder %s18, 3
    %p48 = por %p46, %p47
    %p49 = scmp.ne.s32.totalorder %s38, %s39
    %p50 = scmp.eq.s32.totalorder %s18, 0
    %p51 = por %p49, %p50
    %p52 = scmp.ne.s32.totalorder %s38, %s39
    %p53 = scmp.eq.s32.totalorder %s19, 3
    %p54 = por %p52, %p53
    %p56 = scmp.ne.s32.totalorder %s39, %s55
    %p57 = scmp.eq.s32.totalorder %s19, 0
    %p58 = por %p56, %p57
    %s60 = sadd.s32 %s59, 1
    %p63 = scmp.eq.s32.totalorder %s13, 3
    %p64 = scmp.ne.s32.totalorder %s59, %s61
    %p65 = scmp.eq.s32.totalorder %s13, 0
    %p66 = por %p64, %p65
    %p67 = scmp.ne.s32.totalorder %s59, %s61
    %p68 = scmp.eq.s32.totalorder %s18, 3
    %p69 = por %p67, %p68
    %p70 = scmp.ne.s32.totalorder %s61, %s62
    %p71 = scmp.eq.s32.totalorder %s18, 0
    %p72 = por %p70, %p71
    %p73 = scmp.ne.s32.totalorder %s61, %s62
    %p74 = scmp.eq.s32.totalorder %s19, 3
    %p75 = por %p73, %p74
    %p77 = scmp.ne.s32.totalorder %s62, %s76
    %p78 = scmp.eq.s32.totalorder %s19, 0
    %p79 = por %p77, %p78
    %s81 = sadd.s32 %s80, 1
    %p84 = scmp.eq.s32.totalorder %s13, 3
    %p85 = scmp.ne.s32.totalorder %s80, %s82
    %p86 = scmp.eq.s32.totalorder %s13, 0
    %p87 = por %p85, %p86
    %p88 = scmp.ne.s32.totalorder %s80, %s82
    %p89 = scmp.eq.s32.totalorder %s18, 3
    %p90 = por %p88, %p89
    %p91 = scmp.ne.s32.totalorder %s82, %s83
    %p92 = scmp.eq.s32.totalorder %s18, 0
    %p93 = por %p91, %p92
    %p94 = scmp.ne.s32.totalorder %s82, %s83
    %p95 = scmp.eq.s32.totalorder %s19, 3
    %p96 = por %p94, %p95
    %p98 = scmp.ne.s32.totalorder %s83, %s97
    %p99 = scmp.eq.s32.totalorder %s19, 0
    %p100 = por %p98, %p99
    %s102 = sadd.s32 %s101, 1
    %p105 = scmp.eq.s32.totalorder %s13, 3
    %p106 = scmp.ne.s32.totalorder %s101, %s103
    %p107 = scmp.eq.s32.totalorder %s13, 0
    %p108 = por %p106, %p107
    %p109 = scmp.ne.s32.totalorder %s101, %s103
    %p110 = scmp.eq.s32.totalorder %s18, 3
    %p111 = por %p109, %p110
    %p112 = scmp.ne.s32.totalorder %s103, %s104
    %p113 = scmp.eq.s32.totalorder %s18, 0
    %p114 = por %p112, %p113
    %p115 = scmp.ne.s32.totalorder %s103, %s104
    %p116 = scmp.eq.s32.totalorder %s19, 3
    %p117 = por %p115, %p116
    %p119 = scmp.ne.s32.totalorder %s104, %s118
    %p120 = scmp.eq.s32.totalorder %s19, 0
    %p121 = por %p119, %p120
    %s123 = sadd.s32 %s122, 1
    %p126 = scmp.eq.s32.totalorder %s13, 3
    %p127 = scmp.ne.s32.totalorder %s122, %s124
    %p128 = scmp.eq.s32.totalorder %s13, 0
    %p129 = por %p127, %p128
    %p130 = scmp.ne.s32.totalorder %s122, %s124
    %p131 = scmp.eq.s32.totalorder %s18, 3
    %p132 = por %p130, %p131
    %p133 = scmp.ne.s32.totalorder %s124, %s125
    %p134 = scmp.eq.s32.totalorder %s18, 0
    %p135 = por %p133, %p134
    %p136 = scmp.ne.s32.totalorder %s124, %s125
    %p137 = scmp.eq.s32.totalorder %s19, 3
    %p138 = por %p136, %p137
    %p140 = scmp.ne.s32.totalorder %s125, %s139
    %p141 = scmp.eq.s32.totalorder %s19, 0
    %p142 = por %p140, %p141
    %s144 = sadd.s32 %s143, 1
    %p147 = scmp.eq.s32.totalorder %s13, 3
    %p148 = scmp.ne.s32.totalorder %s143, %s145
    %p149 = scmp.eq.s32.totalorder %s13, 0
    %p150 = por %p148, %p149
    %p151 = scmp.ne.s32.totalorder %s143, %s145
    %p152 = scmp.eq.s32.totalorder %s18, 3
    %p153 = por %p151, %p152
    %p154 = scmp.ne.s32.totalorder %s145, %s146
    %p155 = scmp.eq.s32.totalorder %s18, 0
    %p156 = por %p154, %p155
    %p157 = scmp.ne.s32.totalorder %s145, %s146
    %p158 = scmp.eq.s32.totalorder %s19, 3
    %p159 = por %p157, %p158
    %p161 = scmp.ne.s32.totalorder %s146, %s160
    %p162 = scmp.eq.s32.totalorder %s19, 0
    %p163 = por %p161, %p162
    %s165 = sadd.s32 %s164, 1
    %p168 = scmp.eq.s32.totalorder %s13, 3
    %p169 = scmp.ne.s32.totalorder %s164, %s166
    %p170 = scmp.eq.s32.totalorder %s13, 0
    %p171 = por %p169, %p170
    %p172 = scmp.ne.s32.totalorder %s164, %s166
    %p173 = scmp.eq.s32.totalorder %s18, 3
    %p174 = por %p172, %p173
    %p175 = scmp.ne.s32.totalorder %s166, %s167
    %p176 = scmp.eq.s32.totalorder %s18, 0
    %p177 = por %p175, %p176
    %p178 = scmp.ne.s32.totalorder %s166, %s167
    %p179 = scmp.eq.s32.totalorder %s19, 3
    %p180 = por %p178, %p179
    %p182 = scmp.ne.s32.totalorder %s167, %s181
    %p183 = scmp.eq.s32.totalorder %s19, 0
    %p184 = por %p182, %p183
    %s185 = ssub.s32 %s20, %s32
    %s186 = ssub.s32 %s21, %s28
    %s187 = sor.u32 %s185, %s186
    %p188 = scmp.eq.s32.totalorder %s187, 0
    %s190 = sadd.s32 %s189, 1
    %s191 = scalar_select %p188, %s189, %s190
    %p194 = pneg %p188
    %p195 = scmp.eq.s32.totalorder %s13, 3
    %p196 = por %p194, %p195
    %p197 = scmp.ne.s32.totalorder %s189, %s192
    %p198 = scmp.eq.s32.totalorder %s13, 0
    %p199 = por %p197, %p198
    %p200 = scmp.ne.s32.totalorder %s189, %s192
    %p201 = scmp.eq.s32.totalorder %s18, 3
    %p202 = por %p200, %p201
    %p203 = scmp.ne.s32.totalorder %s192, %s193
    %p204 = scmp.eq.s32.totalorder %s18, 0
    %p205 = por %p203, %p204
    %p206 = scmp.ne.s32.totalorder %s192, %s193
    %p207 = scmp.eq.s32.totalorder %s19, 3
    %p208 = por %p206, %p207
    %p210 = scmp.ne.s32.totalorder %s193, %s209
    %p211 = scmp.eq.s32.totalorder %s19, 0
    %p212 = por %p210, %p211
    %p213 = scmp.le.s32.totalorder 1, %s13
    %p214 = scmp.lt.s32.totalorder %s13, 5
    %p215 = pnand %p213, %p214
    %p216 = pneg %p215
    // Predicated region
    $region9: #{tpu_custom_call.1} parent=5 // pred_check
      _
    $region10: #{tpu_custom_call.1} parent=5 // pred_check_branch
      %218 = sbr.rel (%p215) target = $region12
    $region11: #{tpu_custom_call.1} parent=5 // pred_region
      %s219 = ssub.s32 %s13, 1
      // Predicated region
      $region13: #{tpu_custom_call.1} parent=11 // pred_check
        %p220 = pneg %p72
      $region14: #{tpu_custom_call.1} parent=11 // pred_check_branch
        %222 = sbr.rel (%p220) target = $region16
      $region15: #{tpu_custom_call.1} parent=11 // pred_region
        _
      $region16: #{tpu_custom_call.1} parent=11 // pred_fallthru
        _
      // Predicated region
      $region17: #{tpu_custom_call.1} parent=11 // pred_check
        %p223 = pneg %p93
      $region18: #{tpu_custom_call.1} parent=11 // pred_check_branch
        %225 = sbr.rel (%p223) target = $region20
      $region19: #{tpu_custom_call.1} parent=11 // pred_region
        _
      $region20: #{tpu_custom_call.1} parent=11 // pred_fallthru
        _
      // Predicated region
      $region21: #{tpu_custom_call.1} parent=11 // pred_check
        %p226 = pneg %p114
      $region22: #{tpu_custom_call.1} parent=11 // pred_check_branch
        %228 = sbr.rel (%p226) target = $region24
      $region23: #{tpu_custom_call.1} parent=11 // pred_region
        _
      $region24: #{tpu_custom_call.1} parent=11 // pred_fallthru
        _
      // Predicated region
      $region25: #{tpu_custom_call.1} parent=11 // pred_check
        %p229 = pneg %p135
      $region26: #{tpu_custom_call.1} parent=11 // pred_check_branch
        %231 = sbr.rel (%p229) target = $region28
      $region27: #{tpu_custom_call.1} parent=11 // pred_region
        _
      $region28: #{tpu_custom_call.1} parent=11 // pred_fallthru
        _
      // Predicated region
      $region29: #{tpu_custom_call.1} parent=11 // pred_check
        %p232 = pneg %p156
      $region30: #{tpu_custom_call.1} parent=11 // pred_check_branch
        %234 = sbr.rel (%p232) target = $region32
      $region31: #{tpu_custom_call.1} parent=11 // pred_region
        _
      $region32: #{tpu_custom_call.1} parent=11 // pred_fallthru
        _
      // Predicated region
      $region33: #{tpu_custom_call.1} parent=11 // pred_check
        %p235 = pneg %p177
      $region34: #{tpu_custom_call.1} parent=11 // pred_check_branch
        %237 = sbr.rel (%p235) target = $region36
      $region35: #{tpu_custom_call.1} parent=11 // pred_region
        _
      $region36: #{tpu_custom_call.1} parent=11 // pred_fallthru
        _
    $region12: #{tpu_custom_call.1} parent=5 // pred_fallthru
      _
    %p238 = scmp.lt.s32.totalorder %s13, 4
    // Predicated region
    $region37: #{tpu_custom_call.1} parent=5 // pred_check
      %p239 = pneg %p238
    $region38: #{tpu_custom_call.1} parent=5 // pred_check_branch
      %241 = sbr.rel (%p239) target = $region40
    $region39: #{tpu_custom_call.1} parent=5 // pred_region
      // Predicated region
      $region41: #{tpu_custom_call.1} parent=39 // pred_check
        %p242 = pneg %p45
      $region42: #{tpu_custom_call.1} parent=39 // pred_check_branch
        %244 = sbr.rel (%p242) target = $region44
      $region43: #{tpu_custom_call.1} parent=39 // pred_region
        %p245 = scmp.lt.s32.totalorder %s20, 1
        %s246 = scalar_select %p245, %s20, 1
        %s247 = smul.addr %s246, 60
        %s248 = smul.addr %s247, 4
        %s249 = scalar_lea.vmem %s0, %s248
      $region44: #{tpu_custom_call.1} parent=39 // pred_fallthru
        _
    $region40: #{tpu_custom_call.1} parent=5 // pred_fallthru
      _
    %p250 = scmp.le.s32.totalorder 1, %s13
    %p251 = scmp.lt.s32.totalorder %s13, 5
    %p252 = pnand %p250, %p251
    %p253 = pneg %p252
    // Predicated region
    $region45: #{tpu_custom_call.1} parent=5 // pred_check
      _
    $region46: #{tpu_custom_call.1} parent=5 // pred_check_branch
      %255 = sbr.rel (%p252) target = $region48
    $region47: #{tpu_custom_call.1} parent=5 // pred_region
      %s256 = ssub.s32 %s13, 1
      %p257 = scmp.lt.s32.totalorder %s22, 1
      %s258 = scalar_select %p257, %s22, 1
      %s259 = smul.addr %s258, 60
      %s260 = smul.addr %s259, 4
      %s261 = scalar_lea.vmem %s0, %s260
      %p262 = pneg %p51
      %p263 = pneg %p48
      %p264 = pneg %p72
      %p265 = pneg %p69
      %p266 = pneg %p93
      %p267 = pneg %p90
      %p268 = pneg %p114
      %p269 = pneg %p111
      %p270 = pneg %p135
      %p271 = pneg %p132
      %p272 = pneg %p156
      %p273 = pneg %p153
      %p274 = pneg %p177
      %p275 = pneg %p174
      %p276 = pneg %p205
      %p277 = pneg %p202
      %s278 = smul.u32 8, %s23
      %p279 = scmp.lt.s32.totalorder %s22, 1
      %s280 = scalar_select %p279, %s22, 1
      %p281 = scmp.lt.s32.totalorder %s278, 15
      %s282 = scalar_select %p281, %s278, 15
      %s283 = smul.addr %s282, 2
      %s284 = smul.addr %s280, 32
      %s285 = sadd.s32 %s283, %s284
      %s286 = smul.addr %s285, 8
      %s287 = scalar_lea.vmem %s7, %s286
      %p288 = scmp.lt.s32.totalorder %s22, 1
      %s289 = scalar_select %p288, %s22, 1
      %s290 = smul.addr %s289, 60
      %s291 = smul.addr %s290, 4
      %s292 = scalar_lea.vmem %s0, %s291
      %s293 = smul.u32 8, %s23
      %p294 = scmp.lt.s32.totalorder %s22, 1
      %s295 = scalar_select %p294, %s22, 1
      %p296 = scmp.lt.s32.totalorder %s293, 15
      %s297 = scalar_select %p296, %s293, 15
      %s298 = smul.addr %s297, 2
      %s299 = smul.addr %s295, 32
      %s300 = sadd.s32 %s298, %s299
      %s301 = smul.addr %s300, 8
      %s302 = scalar_lea.vmem %s7, %s301
      %s303 = smul.u32 8, %s23
      %s305 = smul.u32 %s23, 8
      %s306 = smul.u32 %s305, 3
      %s307 = smul.addr %s306, 4
      %s308 = scalar_lea.vmem %s292, %s307
      %v309 = vld [vmem:[%s308] sm:$0xf]
      %v310 = vld [vmem:[%s308 + $0x4] sm:$0xf]
      %v311 = vld [vmem:[%s308 + $0xc] sm:$0xf]
      %v312 = vld [vmem:[%s308 + $0x10] sm:$0xf]
      %v313 = vld [vmem:[%s308 + $0x18] sm:$0xf]
      %v314 = vld [vmem:[%s308 + $0x1c] sm:$0xf]
      %v315 = vld [vmem:[%s308 + $0x24] sm:$0xf]
      %v316 = vld [vmem:[%s308 + $0x28] sm:$0xf]
      %v317 = vld [vmem:[%s308 + $0x30] sm:$0xf]
      %v318 = vld [vmem:[%s308 + $0x34] sm:$0xf]
      %v319 = vld [vmem:[%s308 + $0x3c] sm:$0xf]
      %v320 = vld [vmem:[%s308 + $0x40] sm:$0xf]
      %v321 = vld [vmem:[%s308 + $0x48] sm:$0xf]
      %v322 = vld [vmem:[%s308 + $0x4c] sm:$0xf]
      %v323 = vld [vmem:[%s308 + $0x54] sm:$0xf]
      %v324 = vld [vmem:[%s308 + $0x58] sm:$0xf]
      %v325 = vld [vmem:[%s308 + $0x60] sm:$0xf]
      %v326 = vld [vmem:[%s308 + $0x64] sm:$0xf]
      %v327 = vld [vmem:[%s308 + $0x6c] sm:$0xf]
      %v328 = vld [vmem:[%s308 + $0x70] sm:$0xf]
      %v329 = vld [vmem:[%s1] sm:$0x3]
      %v330 = vld [vmem:[%s308 + $0x8] sm:$0x1]
      %v331 = vld [vmem:[%s308 + $0x14] sm:$0x1]
      %v332 = vld [vmem:[%s308 + $0x20] sm:$0x1]
      %v333 = vld [vmem:[%s308 + $0x2c] sm:$0x1]
      %v334 = vld [vmem:[%s308 + $0x38] sm:$0x1]
      %v335 = vld [vmem:[%s308 + $0x44] sm:$0x1]
      %v336 = vld [vmem:[%s308 + $0x50] sm:$0x1]
      %v337 = vld [vmem:[%s308 + $0x5c] sm:$0x1]
      %v338 = vld [vmem:[%s308 + $0x68] sm:$0x1]
      %v339 = vld [vmem:[%s308 + $0x74] sm:$0x1]
      %vm340 = vsmask.f32 3328
      %vm341 = vsmask.f32 7440
      %vm342 = vmor %vm340, %vm341
      %v344 = vshrl.u32 %v309, 16
      %v346 = vrot.slane %v344, 4
      %v347 = vshll.u32 %v309, 16
      %v349 = vrot.slane %v347, 5
      %v350 = vor.u32 %v346, %v349
      %v351 = vrot.slane %v350, 4
      %v353 = vshll.u32 %v310, 16
      %v355 = vrot.slane %v353, 5
      %v356 = vsel %vm342, %v351, %v355
      %v357 = vshrl.u32 %v310, 16
      %v359 = vrot.slane %v357, 4
      %v360 = vor.u32 %v359, %v355
      %v361 = vrot.slane %v360, 4
      %v363 = vshll.u32 %v330, 16
      %v365 = vrot.slane %v363, 5
      %v366 = vsel %vm342, %v361, %v365
      %v368 = vshrl.u32 %v311, 16
      %v370 = vrot.slane %v368, 4
      %v371 = vshll.u32 %v311, 16
      %v373 = vrot.slane %v371, 5
      %v374 = vor.u32 %v370, %v373
      %v375 = vrot.slane %v374, 4
      %v377 = vshll.u32 %v312, 16
      %v379 = vrot.slane %v377, 5
      %v380 = vsel %vm342, %v375, %v379
      %v381 = vshrl.u32 %v312, 16
      %v383 = vrot.slane %v381, 4
      %v384 = vor.u32 %v383, %v379
      %v385 = vrot.slane %v384, 4
      %v387 = vshll.u32 %v331, 16
      %v389 = vrot.slane %v387, 5
      %v390 = vsel %vm342, %v385, %v389
      %v392 = vshrl.u32 %v313, 16
      %v394 = vrot.slane %v392, 4
      %v395 = vshll.u32 %v313, 16
      %v397 = vrot.slane %v395, 5
      %v398 = vor.u32 %v394, %v397
      %v399 = vrot.slane %v398, 4
      %v401 = vshll.u32 %v314, 16
      %v403 = vrot.slane %v401, 5
      %v404 = vsel %vm342, %v399, %v403
      %v405 = vshrl.u32 %v314, 16
      %v407 = vrot.slane %v405, 4
      %v408 = vor.u32 %v407, %v403
      %v409 = vrot.slane %v408, 4
      %v411 = vshll.u32 %v332, 16
      %v413 = vrot.slane %v411, 5
      %v414 = vsel %vm342, %v409, %v413
      %v416 = vshrl.u32 %v315, 16
      %v418 = vrot.slane %v416, 4
      %v419 = vshll.u32 %v315, 16
      %v421 = vrot.slane %v419, 5
      %v422 = vor.u32 %v418, %v421
      %v423 = vrot.slane %v422, 4
      %v425 = vshll.u32 %v316, 16
      %v427 = vrot.slane %v425, 5
      %v428 = vsel %vm342, %v423, %v427
      %v429 = vshrl.u32 %v316, 16
      %v431 = vrot.slane %v429, 4
      %v432 = vor.u32 %v431, %v427
      %v433 = vrot.slane %v432, 4
      %v435 = vshll.u32 %v333, 16
      %v437 = vrot.slane %v435, 5
      %v438 = vsel %vm342, %v433, %v437
      %v440 = vshrl.u32 %v317, 16
      %v442 = vrot.slane %v440, 4
      %v443 = vshll.u32 %v317, 16
      %v445 = vrot.slane %v443, 5
      %v446 = vor.u32 %v442, %v445
      %v447 = vrot.slane %v446, 4
      %v449 = vshll.u32 %v318, 16
      %v451 = vrot.slane %v449, 5
      %v452 = vsel %vm342, %v447, %v451
      %v453 = vshrl.u32 %v318, 16
      %v455 = vrot.slane %v453, 4
      %v456 = vor.u32 %v455, %v451
      %v457 = vrot.slane %v456, 4
      %v459 = vshll.u32 %v334, 16
      %v461 = vrot.slane %v459, 5
      %v462 = vsel %vm342, %v457, %v461
      %v464 = vshrl.u32 %v319, 16
      %v466 = vrot.slane %v464, 4
      %v467 = vshll.u32 %v319, 16
      %v469 = vrot.slane %v467, 5
      %v470 = vor.u32 %v466, %v469
      %v471 = vrot.slane %v470, 4
      %v473 = vshll.u32 %v320, 16
      %v475 = vrot.slane %v473, 5
      %v476 = vsel %vm342, %v471, %v475
      %v477 = vshrl.u32 %v320, 16
      %v479 = vrot.slane %v477, 4
      %v480 = vor.u32 %v479, %v475
      %v481 = vrot.slane %v480, 4
      %v483 = vshll.u32 %v335, 16
      %v485 = vrot.slane %v483, 5
      %v486 = vsel %vm342, %v481, %v485
      %v488 = vshrl.u32 %v321, 16
      %v490 = vrot.slane %v488, 4
      %v491 = vshll.u32 %v321, 16
      %v493 = vrot.slane %v491, 5
      %v494 = vor.u32 %v490, %v493
      %v495 = vrot.slane %v494, 4
      %v497 = vshll.u32 %v322, 16
      %v499 = vrot.slane %v497, 5
      %v500 = vsel %vm342, %v495, %v499
      %v501 = vshrl.u32 %v322, 16
      %v503 = vrot.slane %v501, 4
      %v504 = vor.u32 %v503, %v499
      %v505 = vrot.slane %v504, 4
      %v507 = vshll.u32 %v336, 16
      %v509 = vrot.slane %v507, 5
      %v510 = vsel %vm342, %v505, %v509
      %v512 = vshrl.u32 %v323, 16
      %v514 = vrot.slane %v512, 4
      %v515 = vshll.u32 %v323, 16
      %v517 = vrot.slane %v515, 5
      %v518 = vor.u32 %v514, %v517
      %v519 = vrot.slane %v518, 4
      %v521 = vshll.u32 %v324, 16
      %v523 = vrot.slane %v521, 5
      %v524 = vsel %vm342, %v519, %v523
      %v525 = vshrl.u32 %v324, 16
      %v527 = vrot.slane %v525, 4
      %v528 = vor.u32 %v527, %v523
      %v529 = vrot.slane %v528, 4
      %v531 = vshll.u32 %v337, 16
      %v533 = vrot.slane %v531, 5
      %v534 = vsel %vm342, %v529, %v533
      %v536 = vshrl.u32 %v325, 16
      %v538 = vrot.slane %v536, 4
      %v539 = vshll.u32 %v325, 16
      %v541 = vrot.slane %v539, 5
      %v542 = vor.u32 %v538, %v541
      %v543 = vrot.slane %v542, 4
      %v545 = vshll.u32 %v326, 16
      %v547 = vrot.slane %v545, 5
      %v548 = vsel %vm342, %v543, %v547
      %v549 = vshrl.u32 %v326, 16
      %v551 = vrot.slane %v549, 4
      %v552 = vor.u32 %v551, %v547
      %v553 = vrot.slane %v552, 4
      %v555 = vshll.u32 %v338, 16
      %v557 = vrot.slane %v555, 5
      %v558 = vsel %vm342, %v553, %v557
      %v560 = vshrl.u32 %v327, 16
      %v562 = vrot.slane %v560, 4
      %v563 = vshll.u32 %v327, 16
      %v565 = vrot.slane %v563, 5
      %v566 = vor.u32 %v562, %v565
      %v567 = vrot.slane %v566, 4
      %v569 = vshll.u32 %v328, 16
      %v571 = vrot.slane %v569, 5
      %v572 = vsel %vm342, %v567, %v571
      %v573 = vshrl.u32 %v328, 16
      %v575 = vrot.slane %v573, 4
      %v576 = vor.u32 %v575, %v571
      %v577 = vrot.slane %v576, 4
      %v579 = vshll.u32 %v339, 16
      %v581 = vrot.slane %v579, 5
      %v582 = vsel %vm342, %v577, %v581
      %s583 = scalar_lea.vmem %s1, 2
      %v584 = vld [vmem:[%s583] sm:$0x3]
      %v585 = vunpack.c.l.b16 %v356
      %v586 = vunpack.c.l.b16 %v366
      %v587 = vunpack.c.l.b16 %v380
      %v588 = vunpack.c.l.b16 %v390
      %v589 = vunpack.c.l.b16 %v404
      %v590 = vunpack.c.l.b16 %v414
      %v591 = vunpack.c.l.b16 %v428
      %v592 = vunpack.c.l.b16 %v438
      %v593 = vunpack.c.l.b16 %v452
      %v594 = vunpack.c.l.b16 %v462
      %v595 = vunpack.c.l.b16 %v476
      %v596 = vunpack.c.l.b16 %v486
      %v597 = vunpack.c.l.b16 %v500
      %v598 = vunpack.c.l.b16 %v510
      %v599 = vunpack.c.l.b16 %v524
      %v600 = vunpack.c.l.b16 %v534
      %v601 = vunpack.c.l.b16 %v548
      %v602 = vunpack.c.l.b16 %v558
      %v603 = vunpack.c.l.b16 %v572
      %v604 = vunpack.c.l.b16 %v582
      %v605 = vpack.c.b16 %v586, %v585
      %v606 = vpack.c.b16 %v588, %v587
      %v607 = vpack.c.b16 %v590, %v589
      %v608 = vpack.c.b16 %v592, %v591
      %v609 = vpack.c.b16 %v594, %v593
      %v610 = vpack.c.b16 %v596, %v595
      %v611 = vpack.c.b16 %v598, %v597
      %v612 = vpack.c.b16 %v600, %v599
      %v613 = vpack.c.b16 %v602, %v601
      %v614 = vpack.c.b16 %v604, %v603
      %vm615 = vcmask 31744
      %v617 = vsel %vm615, %v605, 0
      %v620 = vsel %vm615, %v606, 0
      %v623 = vsel %vm615, %v607, 0
      %v626 = vsel %vm615, %v608, 0
      %v629 = vsel %vm615, %v609, 0
      %v632 = vsel %vm615, %v610, 0
      %v635 = vsel %vm615, %v611, 0
      %v638 = vsel %vm615, %v612, 0
      %v641 = vsel %vm615, %v613, 0
      %v644 = vsel %vm615, %v614, 0
      %vm646 = vcmask 1041408
      %v648 = vsel %vm646, %v584, 0
      %650 = vmatprep.subr.bf16.mxu0 0
      %651 = vmatpush1.bf16.msra.mxu0 %v648
      %652 = vmatprep.subr.bf16.mxu0 0
      %653 = vmatpush1.bf16.msra.mxu0 0
      %654 = vmatprep.subr.bf16.mxu0 0
      %655 = vmatpush1.bf16.msra.mxu0 0
      %656 = vmatprep.subr.bf16.mxu0 0
      %657 = vmatpush1.bf16.msra.mxu0 0
      %658 = vmatprep.subr.bf16.mxu0 0
      %659 = vmatpush1.bf16.msra.mxu0 0
      %660 = vmatprep.subr.bf16.mxu0 0
      %661 = vmatpush1.bf16.msra.mxu0 0
      %662 = vmatprep.subr.bf16.mxu0 0
      %663 = vmatpush1.bf16.msra.mxu0 0
      %664 = vmatprep.subr.bf16.mxu0 0
      %665 = vmatpush1.bf16.msra.mxu0 0
      %666 = vmatprep.subr.bf16.mxu0 0
      %667 = vmatpush1.bf16.msra.mxu0 0
      %668 = vmatprep.subr.bf16.mxu0 0
      %669 = vmatpush1.bf16.msra.mxu0 0
      %670 = vmatprep.subr.bf16.mxu0 0
      %671 = vmatpush1.bf16.msra.mxu0 0
      %672 = vmatprep.subr.bf16.mxu0 0
      %673 = vmatpush1.bf16.msra.mxu0 0
      %674 = vmatprep.subr.bf16.mxu0 0
      %675 = vmatpush1.bf16.msra.mxu0 0
      %676 = vmatprep.subr.bf16.mxu0 0
      %677 = vmatpush1.bf16.msra.mxu0 0
      %678 = vmatprep.subr.bf16.mxu0 0
      %679 = vmatpush1.bf16.msra.mxu0 0
      %680 = vmatprep.subr.bf16.mxu0 0
      %681 = vmatpush1.bf16.msra.mxu0 0
      %682 = vmatprep.mubr.bf16.mxu0 0
      %683 = vmatmul.mubr.bf16.gmra.mrb[0].mxu0 %v617
      %v684 = vpop.f32.mrb[0].mxu0
      %v685 = vadd.f32 0.0, %v684
      %v686 = vpop.f32.mrb[0].mxu0
      %v687 = vpop.f32.mrb[0].mxu0
      %v688 = vadd.f32 0.0, %v687
      %v689 = vpop.f32.mrb[0].mxu0
      %690 = vmatprep.mubr.bf16.mxu0 0
      %691 = vmatmul.mubr.bf16.gmra.mrb[0].mxu0 %v620
      %v692 = vpop.f32.mrb[0].mxu0
      %v693 = vadd.f32 0.0, %v692
      %v694 = vpop.f32.mrb[0].mxu0
      %v695 = vpop.f32.mrb[0].mxu0
      %v696 = vadd.f32 0.0, %v695
      %v697 = vpop.f32.mrb[0].mxu0
      %698 = vmatprep.mubr.bf16.mxu0 0
      %699 = vmatmul.mubr.bf16.gmra.mrb[0].mxu0 %v623
      %v700 = vpop.f32.mrb[0].mxu0
      %v701 = vadd.f32 0.0, %v700
      %v702 = vpop.f32.mrb[0].mxu0
      %v703 = vpop.f32.mrb[0].mxu0
      %v704 = vadd.f32 0.0, %v703
      %v705 = vpop.f32.mrb[0].mxu0
      %706 = vmatprep.mubr.bf16.mxu0 0
      %707 = vmatmul.mubr.bf16.gmra.mrb[0].mxu0 %v626
      %v708 = vpop.f32.mrb[0].mxu0
      %v709 = vadd.f32 0.0, %v708
      %v710 = vpop.f32.mrb[0].mxu0
      %v711 = vpop.f32.mrb[0].mxu0
      %v712 = vadd.f32 0.0, %v711
      %v713 = vpop.f32.mrb[0].mxu0
      %714 = vmatprep.mubr.bf16.mxu0 0
      %715 = vmatmul.mubr.bf16.gmra.mrb[0].mxu0 %v629
      %v716 = vpop.f32.mrb[0].mxu0
      %v717 = vadd.f32 0.0, %v716
      %v718 = vpop.f32.mrb[0].mxu0
      %v719 = vpop.f32.mrb[0].mxu0
      %v720 = vadd.f32 0.0, %v719
      %v721 = vpop.f32.mrb[0].mxu0
      %722 = vmatprep.mubr.bf16.mxu0 0
      %723 = vmatmul.mubr.bf16.gmra.mrb[0].mxu0 %v632
      %v724 = vpop.f32.mrb[0].mxu0
      %v725 = vadd.f32 0.0, %v724
      %v726 = vpop.f32.mrb[0].mxu0
      %v727 = vpop.f32.mrb[0].mxu0
      %v728 = vadd.f32 0.0, %v727
      %v729 = vpop.f32.mrb[0].mxu0
      %730 = vmatprep.mubr.bf16.mxu0 0
      %731 = vmatmul.mubr.bf16.gmra.mrb[0].mxu0 %v635
      %v732 = vpop.f32.mrb[0].mxu0
      %v733 = vadd.f32 0.0, %v732
      %v734 = vpop.f32.mrb[0].mxu0
      %v735 = vpop.f32.mrb[0].mxu0
      %v736 = vadd.f32 0.0, %v735
      %v737 = vpop.f32.mrb[0].mxu0
      %738 = vmatprep.mubr.bf16.mxu0 0
      %739 = vmatmul.mubr.bf16.gmra.mrb[0].mxu0 %v638
      %v740 = vpop.f32.mrb[0].mxu0
      %v741 = vadd.f32 0.0, %v740
      %v742 = vpop.f32.mrb[0].mxu0
      %v743 = vpop.f32.mrb[0].mxu0
      %v744 = vadd.f32 0.0, %v743
      %v745 = vpop.f32.mrb[0].mxu0
      %746 = vmatprep.mubr.bf16.mxu0 0
      %747 = vmatmul.mubr.bf16.gmra.mrb[0].mxu0 %v641
      %v748 = vpop.f32.mrb[0].mxu0
      %v749 = vadd.f32 0.0, %v748
      %v750 = vpop.f32.mrb[0].mxu0
      %v751 = vpop.f32.mrb[0].mxu0
      %v752 = vadd.f32 0.0, %v751
      %v753 = vpop.f32.mrb[0].mxu0
      %754 = vmatprep.mubr.bf16.mxu0 0
      %755 = vmatmul.mubr.bf16.gmra.mrb[0].mxu0 %v644
      %v756 = vpop.f32.mrb[0].mxu0
      %v757 = vadd.f32 0.0, %v756
      %v758 = vpop.f32.mrb[0].mxu0
      %v759 = vpop.f32.mrb[0].mxu0
      %v760 = vadd.f32 0.0, %v759
      %v761 = vpop.f32.mrb[0].mxu0
      %762 = vdwg.mxu0
      %v783 = vunpack.c.l.b16 %v309
      %v784 = vunpack.c.l.b16 %v310
      %v785 = vunpack.c.l.b16 %v311
      %v786 = vunpack.c.l.b16 %v312
      %v787 = vunpack.c.l.b16 %v313
      %v788 = vunpack.c.l.b16 %v314
      %v789 = vunpack.c.l.b16 %v315
      %v790 = vunpack.c.l.b16 %v316
      %v791 = vunpack.c.l.b16 %v317
      %v792 = vunpack.c.l.b16 %v318
      %v793 = vunpack.c.l.b16 %v319
      %v794 = vunpack.c.l.b16 %v320
      %v795 = vunpack.c.l.b16 %v321
      %v796 = vunpack.c.l.b16 %v322
      %v797 = vunpack.c.l.b16 %v323
      %v798 = vunpack.c.l.b16 %v324
      %v799 = vunpack.c.l.b16 %v325
      %v800 = vunpack.c.l.b16 %v326
      %v801 = vunpack.c.l.b16 %v327
      %v802 = vunpack.c.l.b16 %v328
      %v803 = vpack.c.b16 %v784, %v783
      %v804 = vpack.c.b16 %v786, %v785
      %v805 = vpack.c.b16 %v788, %v787
      %v806 = vpack.c.b16 %v790, %v789
      %v807 = vpack.c.b16 %v792, %v791
      %v808 = vpack.c.b16 %v794, %v793
      %v809 = vpack.c.b16 %v796, %v795
      %v810 = vpack.c.b16 %v798, %v797
      %v811 = vpack.c.b16 %v800, %v799
      %v812 = vpack.c.b16 %v802, %v801
      %v814 = vsel %vm615, %v803, 0
      %v817 = vsel %vm615, %v804, 0
      %v820 = vsel %vm615, %v805, 0
      %v823 = vsel %vm615, %v806, 0
      %v826 = vsel %vm615, %v807, 0
      %v829 = vsel %vm615, %v808, 0
      %v832 = vsel %vm615, %v809, 0
      %v835 = vsel %vm615, %v810, 0
      %v838 = vsel %vm615, %v811, 0
      %v841 = vsel %vm615, %v812, 0
      %v844 = vsel %vm646, %v329, 0
      %846 = vmatprep.subr.bf16.mxu0 0
      %847 = vmatpush1.bf16.msra.mxu0 %v844
      %848 = vmatprep.subr.bf16.mxu0 0
      %849 = vmatpush1.bf16.msra.mxu0 0
      %850 = vmatprep.subr.bf16.mxu0 0
      %851 = vmatpush1.bf16.msra.mxu0 0
      %852 = vmatprep.subr.bf16.mxu0 0
      %853 = vmatpush1.bf16.msra.mxu0 0
      %854 = vmatprep.subr.bf16.mxu0 0
      %855 = vmatpush1.bf16.msra.mxu0 0
      %856 = vmatprep.subr.bf16.mxu0 0
      %857 = vmatpush1.bf16.msra.mxu0 0
      %858 = vmatprep.subr.bf16.mxu0 0
      %859 = vmatpush1.bf16.msra.mxu0 0
      %860 = vmatprep.subr.bf16.mxu0 0
      %861 = vmatpush1.bf16.msra.mxu0 0
      %862 = vmatprep.subr.bf16.mxu0 0
      %863 = vmatpush1.bf16.msra.mxu0 0
      %864 = vmatprep.subr.bf16.mxu0 0
      %865 = vmatpush1.bf16.msra.mxu0 0
      %866 = vmatprep.subr.bf16.mxu0 0
      %867 = vmatpush1.bf16.msra.mxu0 0
      %868 = vmatprep.subr.bf16.mxu0 0
      %869 = vmatpush1.bf16.msra.mxu0 0
      %870 = vmatprep.subr.bf16.mxu0 0
      %871 = vmatpush1.bf16.msra.mxu0 0
      %872 = vmatprep.subr.bf16.mxu0 0
      %873 = vmatpush1.bf16.msra.mxu0 0
      %874 = vmatprep.subr.bf16.mxu0 0
      %875 = vmatpush1.bf16.msra.mxu0 0
      %876 = vmatprep.subr.bf16.mxu0 0
      %877 = vmatpush1.bf16.msra.mxu0 0
      %878 = vmatprep.mubr.bf16.mxu0 0
      %879 = vmatmul.mubr.bf16.gmra.mrb[0].mxu0 %v814
      %v880 = vpop.f32.mrb[0].mxu0
      %v881 = vadd.f32 %v685, %v880
      %v882 = vpop.f32.mrb[0].mxu0
      %v883 = vpop.f32.mrb[0].mxu0
      %v884 = vadd.f32 %v688, %v883
      %v885 = vpop.f32.mrb[0].mxu0
      %886 = vmatprep.mubr.bf16.mxu0 0
      %887 = vmatmul.mubr.bf16.gmra.mrb[0].mxu0 %v817
      %v888 = vpop.f32.mrb[0].mxu0
      %v889 = vadd.f32 %v693, %v888
      %v890 = vpop.f32.mrb[0].mxu0
      %v891 = vpop.f32.mrb[0].mxu0
      %v892 = vadd.f32 %v696, %v891
      %v893 = vpop.f32.mrb[0].mxu0
      %894 = vmatprep.mubr.bf16.mxu0 0
      %895 = vmatmul.mubr.bf16.gmra.mrb[0].mxu0 %v820
      %v896 = vpop.f32.mrb[0].mxu0
      %v897 = vadd.f32 %v701, %v896
      %v898 = vpop.f32.mrb[0].mxu0
      %v899 = vpop.f32.mrb[0].mxu0
      %v900 = vadd.f32 %v704, %v899
      %v901 = vpop.f32.mrb[0].mxu0
      %902 = vmatprep.mubr.bf16.mxu0 0
      %903 = vmatmul.mubr.bf16.gmra.mrb[0].mxu0 %v823
      %v904 = vpop.f32.mrb[0].mxu0
      %v905 = vadd.f32 %v709, %v904
      %v906 = vpop.f32.mrb[0].mxu0
      %v907 = vpop.f32.mrb[0].mxu0
      %v908 = vadd.f32 %v712, %v907
      %v909 = vpop.f32.mrb[0].mxu0
      %910 = vmatprep.mubr.bf16.mxu0 0
      %911 = vmatmul.mubr.bf16.gmra.mrb[0].mxu0 %v826
      %v912 = vpop.f32.mrb[0].mxu0
      %v913 = vadd.f32 %v717, %v912
      %v914 = vpop.f32.mrb[0].mxu0
      %v915 = vpop.f32.mrb[0].mxu0
      %v916 = vadd.f32 %v720, %v915
      %v917 = vpop.f32.mrb[0].mxu0
      %918 = vmatprep.mubr.bf16.mxu0 0
      %919 = vmatmul.mubr.bf16.gmra.mrb[0].mxu0 %v829
      %v920 = vpop.f32.mrb[0].mxu0
      %v921 = vadd.f32 %v725, %v920
      %v922 = vpop.f32.mrb[0].mxu0
      %v923 = vpop.f32.mrb[0].mxu0
      %v924 = vadd.f32 %v728, %v923
      %v925 = vpop.f32.mrb[0].mxu0
      %926 = vmatprep.mubr.bf16.mxu0 0
      %927 = vmatmul.mubr.bf16.gmra.mrb[0].mxu0 %v832
      %v928 = vpop.f32.mrb[0].mxu0
      %v929 = vadd.f32 %v733, %v928
      %v930 = vpop.f32.mrb[0].mxu0
      %v931 = vpop.f32.mrb[0].mxu0
      %v932 = vadd.f32 %v736, %v931
      %v933 = vpop.f32.mrb[0].mxu0
      %934 = vmatprep.mubr.bf16.mxu0 0
      %935 = vmatmul.mubr.bf16.gmra.mrb[0].mxu0 %v835
      %v936 = vpop.f32.mrb[0].mxu0
      %v937 = vadd.f32 %v741, %v936
      %v938 = vpop.f32.mrb[0].mxu0
      %v939 = vpop.f32.mrb[0].mxu0
      %v940 = vadd.f32 %v744, %v939
      %v941 = vpop.f32.mrb[0].mxu0
      %942 = vmatprep.mubr.bf16.mxu0 0
      %943 = vmatmul.mubr.bf16.gmra.mrb[0].mxu0 %v838
      %v944 = vpop.f32.mrb[0].mxu0
      %v945 = vadd.f32 %v749, %v944
      %v946 = vpop.f32.mrb[0].mxu0
      %v947 = vpop.f32.mrb[0].mxu0
      %v948 = vadd.f32 %v752, %v947
      %v949 = vpop.f32.mrb[0].mxu0
      %950 = vmatprep.mubr.bf16.mxu0 0
      %951 = vmatmul.mubr.bf16.gmra.mrb[0].mxu0 %v841
      %v952 = vpop.f32.mrb[0].mxu0
      %v953 = vadd.f32 %v757, %v952
      %v954 = vpop.f32.mrb[0].mxu0
      %v955 = vpop.f32.mrb[0].mxu0
      %v956 = vadd.f32 %v760, %v955
      %v957 = vpop.f32.mrb[0].mxu0
      %958 = vdwg.mxu0
      %v959 = vld [vmem:[%s308] sm:$0xe]
      %v960 = vld [vmem:[%s308 + $0xc] sm:$0xe]
      %v961 = vld [vmem:[%s308 + $0x18] sm:$0xe]
      %v962 = vld [vmem:[%s308 + $0x24] sm:$0xe]
      %v963 = vld [vmem:[%s308 + $0x30] sm:$0xe]
      %v964 = vld [vmem:[%s308 + $0x3c] sm:$0xe]
      %v965 = vld [vmem:[%s308 + $0x48] sm:$0xe]
      %v966 = vld [vmem:[%s308 + $0x54] sm:$0xe]
      %v967 = vld [vmem:[%s308 + $0x60] sm:$0xe]
      %v968 = vld [vmem:[%s308 + $0x6c] sm:$0xe]
      %vm989 = vcmask 1042432
      %vm990 = vcmask 1046532
      %vm991 = vmor %vm989, %vm990
      %v992 = vrot.slane %v959, 5
      %v993 = vrot.slane %v992, 4
      %v994 = vrot.slane %v310, 5
      %v995 = vsel %vm991, %v993, %v994
      %v996 = vrot.slane %v994, 4
      %v997 = vrot.slane %v330, 5
      %v998 = vsel %vm991, %v996, %v997
      %v999 = vrot.slane %v960, 5
      %v1000 = vrot.slane %v999, 4
      %v1001 = vrot.slane %v312, 5
      %v1002 = vsel %vm991, %v1000, %v1001
      %v1003 = vrot.slane %v1001, 4
      %v1004 = vrot.slane %v331, 5
      %v1005 = vsel %vm991, %v1003, %v1004
      %v1006 = vrot.slane %v961, 5
      %v1007 = vrot.slane %v1006, 4
      %v1008 = vrot.slane %v314, 5
      %v1009 = vsel %vm991, %v1007, %v1008
      %v1010 = vrot.slane %v1008, 4
      %v1011 = vrot.slane %v332, 5
      %v1012 = vsel %vm991, %v1010, %v1011
      %v1013 = vrot.slane %v962, 5
      %v1014 = vrot.slane %v1013, 4
      %v1015 = vrot.slane %v316, 5
      %v1016 = vsel %vm991, %v1014, %v1015
      %v1017 = vrot.slane %v1015, 4
      %v1018 = vrot.slane %v333, 5
      %v1019 = vsel %vm991, %v1017, %v1018
      %v1020 = vrot.slane %v963, 5
      %v1021 = vrot.slane %v1020, 4
      %v1022 = vrot.slane %v318, 5
      %v1023 = vsel %vm991, %v1021, %v1022
      %v1024 = vrot.slane %v1022, 4
      %v1025 = vrot.slane %v334, 5
      %v1026 = vsel %vm991, %v1024, %v1025
      %v1027 = vrot.slane %v964, 5
      %v1028 = vrot.slane %v1027, 4
      %v1029 = vrot.slane %v320, 5
      %v1030 = vsel %vm991, %v1028, %v1029
      %v1031 = vrot.slane %v1029, 4
      %v1032 = vrot.slane %v335, 5
      %v1033 = vsel %vm991, %v1031, %v1032
      %v1034 = vrot.slane %v965, 5
      %v1035 = vrot.slane %v1034, 4
      %v1036 = vrot.slane %v322, 5
      %v1037 = vsel %vm991, %v1035, %v1036
      %v1038 = vrot.slane %v1036, 4
      %v1039 = vrot.slane %v336, 5
      %v1040 = vsel %vm991, %v1038, %v1039
      %v1041 = vrot.slane %v966, 5
      %v1042 = vrot.slane %v1041, 4
      %v1043 = vrot.slane %v324, 5
      %v1044 = vsel %vm991, %v1042, %v1043
      %v1045 = vrot.slane %v1043, 4
      %v1046 = vrot.slane %v337, 5
      %v1047 = vsel %vm991, %v1045, %v1046
      %v1048 = vrot.slane %v967, 5
      %v1049 = vrot.slane %v1048, 4
      %v1050 = vrot.slane %v326, 5
      %v1051 = vsel %vm991, %v1049, %v1050
      %v1052 = vrot.slane %v1050, 4
      %v1053 = vrot.slane %v338, 5
      %v1054 = vsel %vm991, %v1052, %v1053
      %v1055 = vrot.slane %v968, 5
      %v1056 = vrot.slane %v1055, 4
      %v1057 = vrot.slane %v328, 5
      %v1058 = vsel %vm991, %v1056, %v1057
      %v1059 = vrot.slane %v1057, 4
      %v1060 = vrot.slane %v339, 5
      %v1061 = vsel %vm991, %v1059, %v1060
      %s1062 = scalar_lea.vmem %s1, 4
      %v1063 = vld [vmem:[%s1062] sm:$0x3]
      %v1064 = vunpack.c.l.b16 %v995
      %v1065 = vunpack.c.l.b16 %v998
      %v1066 = vunpack.c.l.b16 %v1002
      %v1067 = vunpack.c.l.b16 %v1005
      %v1068 = vunpack.c.l.b16 %v1009
      %v1069 = vunpack.c.l.b16 %v1012
      %v1070 = vunpack.c.l.b16 %v1016
      %v1071 = vunpack.c.l.b16 %v1019
      %v1072 = vunpack.c.l.b16 %v1023
      %v1073 = vunpack.c.l.b16 %v1026
      %v1074 = vunpack.c.l.b16 %v1030
      %v1075 = vunpack.c.l.b16 %v1033
      %v1076 = vunpack.c.l.b16 %v1037
      %v1077 = vunpack.c.l.b16 %v1040
      %v1078 = vunpack.c.l.b16 %v1044
      %v1079 = vunpack.c.l.b16 %v1047
      %v1080 = vunpack.c.l.b16 %v1051
      %v1081 = vunpack.c.l.b16 %v1054
      %v1082 = vunpack.c.l.b16 %v1058
      %v1083 = vunpack.c.l.b16 %v1061
      %v1084 = vpack.c.b16 %v1065, %v1064
      %v1085 = vpack.c.b16 %v1067, %v1066
      %v1086 = vpack.c.b16 %v1069, %v1068
      %v1087 = vpack.c.b16 %v1071, %v1070
      %v1088 = vpack.c.b16 %v1073, %v1072
      %v1089 = vpack.c.b16 %v1075, %v1074
      %v1090 = vpack.c.b16 %v1077, %v1076
      %v1091 = vpack.c.b16 %v1079, %v1078
      %v1092 = vpack.c.b16 %v1081, %v1080
      %v1093 = vpack.c.b16 %v1083, %v1082
      %v1095 = vsel %vm615, %v1084, 0
      %v1098 = vsel %vm615, %v1085, 0
      %v1101 = vsel %vm615, %v1086, 0
      %v1104 = vsel %vm615, %v1087, 0
      %v1107 = vsel %vm615, %v1088, 0
      %v1110 = vsel %vm615, %v1089, 0
      %v1113 = vsel %vm615, %v1090, 0
      %v1116 = vsel %vm615, %v1091, 0
      %v1119 = vsel %vm615, %v1092, 0
      %v1122 = vsel %vm615, %v1093, 0
      %v1125 = vsel %vm646, %v1063, 0
      %1127 = vmatprep.subr.bf16.mxu0 0
      %1128 = vmatpush1.bf16.msra.mxu0 %v1125
      %1129 = vmatprep.subr.bf16.mxu0 0
      %1130 = vmatpush1.bf16.msra.mxu0 0
      %1131 = vmatprep.subr.bf16.mxu0 0
      %1132 = vmatpush1.bf16.msra.mxu0 0
      %1133 = vmatprep.subr.bf16.mxu0 0
      %1134 = vmatpush1.bf16.msra.mxu0 0
      %1135 = vmatprep.subr.bf16.mxu0 0
      %1136 = vmatpush1.bf16.msra.mxu0 0
      %1137 = vmatprep.subr.bf16.mxu0 0
      %1138 = vmatpush1.bf16.msra.mxu0 0
      %1139 = vmatprep.subr.bf16.mxu0 0
      %1140 = vmatpush1.bf16.msra.mxu0 0
      %1141 = vmatprep.subr.bf16.mxu0 0
      %1142 = vmatpush1.bf16.msra.mxu0 0
      %1143 = vmatprep.subr.bf16.mxu0 0
      %1144 = vmatpush1.bf16.msra.mxu0 0
      %1145 = vmatprep.subr.bf16.mxu0 0
      %1146 = vmatpush1.bf16.msra.mxu0 0
      %1147 = vmatprep.subr.bf16.mxu0 0
      %1148 = vmatpush1.bf16.msra.mxu0 0
      %1149 = vmatprep.subr.bf16.mxu0 0
      %1150 = vmatpush1.bf16.msra.mxu0 0
      %1151 = vmatprep.subr.bf16.mxu0 0
      %1152 = vmatpush1.bf16.msra.mxu0 0
      %1153 = vmatprep.subr.bf16.mxu0 0
      %1154 = vmatpush1.bf16.msra.mxu0 0
      %1155 = vmatprep.subr.bf16.mxu0 0
      %1156 = vmatpush1.bf16.msra.mxu0 0
      %1157 = vmatprep.subr.bf16.mxu0 0
      %1158 = vmatpush1.bf16.msra.mxu0 0
      %1159 = vmatprep.mubr.bf16.mxu0 0
      %1160 = vmatmul.mubr.bf16.gmra.mrb[0].mxu0 %v1095
      %v1161 = vpop.f32.mrb[0].mxu0
      %v1162 = vadd.f32 0.0, %v1161
      %v1163 = vpop.f32.mrb[0].mxu0
      %v1164 = vpop.f32.mrb[0].mxu0
      %v1165 = vadd.f32 0.0, %v1164
      %v1166 = vpop.f32.mrb[0].mxu0
      %1167 = vmatprep.mubr.bf16.mxu0 0
      %1168 = vmatmul.mubr.bf16.gmra.mrb[0].mxu0 %v1098
      %v1169 = vpop.f32.mrb[0].mxu0
      %v1170 = vadd.f32 0.0, %v1169
      %v1171 = vpop.f32.mrb[0].mxu0
      %v1172 = vpop.f32.mrb[0].mxu0
      %v1173 = vadd.f32 0.0, %v1172
      %v1174 = vpop.f32.mrb[0].mxu0
      %1175 = vmatprep.mubr.bf16.mxu0 0
      %1176 = vmatmul.mubr.bf16.gmra.mrb[0].mxu0 %v1101
      %v1177 = vpop.f32.mrb[0].mxu0
      %v1178 = vadd.f32 0.0, %v1177
      %v1179 = vpop.f32.mrb[0].mxu0
      %v1180 = vpop.f32.mrb[0].mxu0
      %v1181 = vadd.f32 0.0, %v1180
      %v1182 = vpop.f32.mrb[0].mxu0
      %1183 = vmatprep.mubr.bf16.mxu0 0
      %1184 = vmatmul.mubr.bf16.gmra.mrb[0].mxu0 %v1104
      %v1185 = vpop.f32.mrb[0].mxu0
      %v1186 = vadd.f32 0.0, %v1185
      %v1187 = vpop.f32.mrb[0].mxu0
      %v1188 = vpop.f32.mrb[0].mxu0
      %v1189 = vadd.f32 0.0, %v1188
      %v1190 = vpop.f32.mrb[0].mxu0
      %1191 = vmatprep.mubr.bf16.mxu0 0
      %1192 = vmatmul.mubr.bf16.gmra.mrb[0].mxu0 %v1107
      %v1193 = vpop.f32.mrb[0].mxu0
      %v1194 = vadd.f32 0.0, %v1193
      %v1195 = vpop.f32.mrb[0].mxu0
      %v1196 = vpop.f32.mrb[0].mxu0
      %v1197 = vadd.f32 0.0, %v1196
      %v1198 = vpop.f32.mrb[0].mxu0
      %1199 = vmatprep.mubr.bf16.mxu0 0
      %1200 = vmatmul.mubr.bf16.gmra.mrb[0].mxu0 %v1110
      %v1201 = vpop.f32.mrb[0].mxu0
      %v1202 = vadd.f32 0.0, %v1201
      %v1203 = vpop.f32.mrb[0].mxu0
      %v1204 = vpop.f32.mrb[0].mxu0
      %v1205 = vadd.f32 0.0, %v1204
      %v1206 = vpop.f32.mrb[0].mxu0
      %1207 = vmatprep.mubr.bf16.mxu0 0
      %1208 = vmatmul.mubr.bf16.gmra.mrb[0].mxu0 %v1113
      %v1209 = vpop.f32.mrb[0].mxu0
      %v1210 = vadd.f32 0.0, %v1209
      %v1211 = vpop.f32.mrb[0].mxu0
      %v1212 = vpop.f32.mrb[0].mxu0
      %v1213 = vadd.f32 0.0, %v1212
      %v1214 = vpop.f32.mrb[0].mxu0
      %1215 = vmatprep.mubr.bf16.mxu0 0
      %1216 = vmatmul.mubr.bf16.gmra.mrb[0].mxu0 %v1116
      %v1217 = vpop.f32.mrb[0].mxu0
      %v1218 = vadd.f32 0.0, %v1217
      %v1219 = vpop.f32.mrb[0].mxu0
      %v1220 = vpop.f32.mrb[0].mxu0
      %v1221 = vadd.f32 0.0, %v1220
      %v1222 = vpop.f32.mrb[0].mxu0
      %1223 = vmatprep.mubr.bf16.mxu0 0
      %1224 = vmatmul.mubr.bf16.gmra.mrb[0].mxu0 %v1119
      %v1225 = vpop.f32.mrb[0].mxu0
      %v1226 = vadd.f32 0.0, %v1225
      %v1227 = vpop.f32.mrb[0].mxu0
      %v1228 = vpop.f32.mrb[0].mxu0
      %v1229 = vadd.f32 0.0, %v1228
      %v1230 = vpop.f32.mrb[0].mxu0
      %1231 = vmatprep.mubr.bf16.mxu0 0
      %1232 = vmatmul.mubr.bf16.gmra.mrb[0].mxu0 %v1122
      %v1233 = vpop.f32.mrb[0].mxu0
      %v1234 = vadd.f32 0.0, %v1233
      %v1235 = vpop.f32.mrb[0].mxu0
      %v1236 = vpop.f32.mrb[0].mxu0
      %v1237 = vadd.f32 0.0, %v1236
      %v1238 = vpop.f32.mrb[0].mxu0
      %1239 = vdwg.mxu0
      %v1240 = vadd.f32 %v881, %v1162
      %v1241 = vadd.f32 %v884, %v1165
      %v1242 = vadd.f32 %v889, %v1170
      %v1243 = vadd.f32 %v892, %v1173
      %v1244 = vadd.f32 %v897, %v1178
      %v1245 = vadd.f32 %v900, %v1181
      %v1246 = vadd.f32 %v905, %v1186
      %v1247 = vadd.f32 %v908, %v1189
      %v1248 = vadd.f32 %v913, %v1194
      %v1249 = vadd.f32 %v916, %v1197
      %v1250 = vadd.f32 %v921, %v1202
      %v1251 = vadd.f32 %v924, %v1205
      %v1252 = vadd.f32 %v929, %v1210
      %v1253 = vadd.f32 %v932, %v1213
      %v1254 = vadd.f32 %v937, %v1218
      %v1255 = vadd.f32 %v940, %v1221
      %v1256 = vadd.f32 %v945, %v1226
      %v1257 = vadd.f32 %v948, %v1229
      %v1258 = vadd.f32 %v953, %v1234
      %v1259 = vadd.f32 %v956, %v1237
      %s1260 = sadd.s32 %s305, 1
      %s1261 = smul.u32 %s1260, 3
      %s1262 = smul.addr %s1261, 4
      %s1263 = scalar_lea.vmem %s292, %s1262
      %v1264 = vld [vmem:[%s1263] sm:$0xf]
      %v1265 = vld [vmem:[%s1263 + $0x4] sm:$0xf]
      %v1266 = vld [vmem:[%s1263 + $0xc] sm:$0xf]
      %v1267 = vld [vmem:[%s1263 + $0x10] sm:$0xf]
      %v1268 = vld [vmem:[%s1263 + $0x18] sm:$0xf]
      %v1269 = vld [vmem:[%s1263 + $0x1c] sm:$0xf]
      %v1270 = vld [vmem:[%s1263 + $0x24] sm:$0xf]
      %v1271 = vld [vmem:[%s1263 + $0x28] sm:$0xf]
      %v1272 = vld [vmem:[%s1263 + $0x30] sm:$0xf]
      %v1273 = vld [vmem:[%s1263 + $0x34] sm:$0xf]
      %v1274 = vld [vmem:[%s1263 + $0x3c] sm:$0xf]
      %v1275 = vld [vmem:[%s1263 + $0x40] sm:$0xf]
      %v1276 = vld [vmem:[%s1263 + $0x48] sm:$0xf]
      %v1277 = vld [vmem:[%s1263 + $0x4c] sm:$0xf]
      %v1278 = vld [vmem:[%s1263 + $0x54] sm:$0xf]
      %v1279 = vld [vmem:[%s1263 + $0x58] sm:$0xf]
      %v1280 = vld [vmem:[%s1263 + $0x60] sm:$0xf]
      %v1281 = vld [vmem:[%s1263 + $0x64] sm:$0xf]
      %v1282 = vld [vmem:[%s1263 + $0x6c] sm:$0xf]
      %v1283 = vld [vmem:[%s1263 + $0x70] sm:$0xf]
      %s1284 = scalar_lea.vmem %s1, 6
      %v1285 = vld [vmem:[%s1284] sm:$0x3]
      %v1306 = vunpack.c.l.b16 %v1264
      %v1307 = vunpack.c.l.b16 %v1265
      %v1308 = vunpack.c.l.b16 %v1266
      %v1309 = vunpack.c.l.b16 %v1267
      %v1310 = vunpack.c.l.b16 %v1268
      %v1311 = vunpack.c.l.b16 %v1269
      %v1312 = vunpack.c.l.b16 %v1270
      %v1313 = vunpack.c.l.b16 %v1271
      %v1314 = vunpack.c.l.b16 %v1272
      %v1315 = vunpack.c.l.b16 %v1273
      %v1316 = vunpack.c.l.b16 %v1274
      %v1317 = vunpack.c.l.b16 %v1275
      %v1318 = vunpack.c.l.b16 %v1276
      %v1319 = vunpack.c.l.b16 %v1277
      %v1320 = vunpack.c.l.b16 %v1278
      %v1321 = vunpack.c.l.b16 %v1279
      %v1322 = vunpack.c.l.b16 %v1280
      %v1323 = vunpack.c.l.b16 %v1281
      %v1324 = vunpack.c.l.b16 %v1282
      %v1325 = vunpack.c.l.b16 %v1283
      %v1326 = vpack.c.b16 %v1307, %v1306
      %v1327 = vpack.c.b16 %v1309, %v1308
      %v1328 = vpack.c.b16 %v1311, %v1310
      %v1329 = vpack.c.b16 %v1313, %v1312
      %v1330 = vpack.c.b16 %v1315, %v1314
      %v1331 = vpack.c.b16 %v1317, %v1316
      %v1332 = vpack.c.b16 %v1319, %v1318
      %v1333 = vpack.c.b16 %v1321, %v1320
      %v1334 = vpack.c.b16 %v1323, %v1322
      %v1335 = vpack.c.b16 %v1325, %v1324
      %v1337 = vsel %vm615, %v1326, 0
      %v1340 = vsel %vm615, %v1327, 0
      %v1343 = vsel %vm615, %v1328, 0
      %v1346 = vsel %vm615, %v1329, 0
      %v1349 = vsel %vm615, %v1330, 0
      %v1352 = vsel %vm615, %v1331, 0
      %v1355 = vsel %vm615, %v1332, 0
      %v1358 = vsel %vm615, %v1333, 0
      %v1361 = vsel %vm615, %v1334, 0
      %v1364 = vsel %vm615, %v1335, 0
      %v1367 = vsel %vm646, %v1285, 0
      %1369 = vmatprep.subr.bf16.mxu0 0
      %1370 = vmatpush1.bf16.msra.mxu0 %v1367
      %1371 = vmatprep.subr.bf16.mxu0 0
      %1372 = vmatpush1.bf16.msra.mxu0 0
      %1373 = vmatprep.subr.bf16.mxu0 0
      %1374 = vmatpush1.bf16.msra.mxu0 0
      %1375 = vmatprep.subr.bf16.mxu0 0
      %1376 = vmatpush1.bf16.msra.mxu0 0
      %1377 = vmatprep.subr.bf16.mxu0 0
      %1378 = vmatpush1.bf16.msra.mxu0 0
      %1379 = vmatprep.subr.bf16.mxu0 0
      %1380 = vmatpush1.bf16.msra.mxu0 0
      %1381 = vmatprep.subr.bf16.mxu0 0
      %1382 = vmatpush1.bf16.msra.mxu0 0
      %1383 = vmatprep.subr.bf16.mxu0 0
      %1384 = vmatpush1.bf16.msra.mxu0 0
      %1385 = vmatprep.subr.bf16.mxu0 0
      %1386 = vmatpush1.bf16.msra.mxu0 0
      %1387 = vmatprep.subr.bf16.mxu0 0
      %1388 = vmatpush1.bf16.msra.mxu0 0
      %1389 = vmatprep.subr.bf16.mxu0 0
      %1390 = vmatpush1.bf16.msra.mxu0 0
      %1391 = vmatprep.subr.bf16.mxu0 0
      %1392 = vmatpush1.bf16.msra.mxu0 0
      %1393 = vmatprep.subr.bf16.mxu0 0
      %1394 = vmatpush1.bf16.msra.mxu0 0
      %1395 = vmatprep.subr.bf16.mxu0 0
      %1396 = vmatpush1.bf16.msra.mxu0 0
      %1397 = vmatprep.subr.bf16.mxu0 0
      %1398 = vmatpush1.bf16.msra.mxu0 0
      %1399 = vmatprep.subr.bf16.mxu0 0
      %1400 = vmatpush1.bf16.msra.mxu0 0
      %1401 = vmatprep.mubr.bf16.mxu0 0
      %1402 = vmatmul.mubr.bf16.gmra.mrb[0].mxu0 %v1337
      %v1403 = vpop.f32.mrb[0].mxu0
      %v1404 = vadd.f32 0.0, %v1403
      %v1405 = vpop.f32.mrb[0].mxu0
      %v1406 = vpop.f32.mrb[0].mxu0
      %v1407 = vadd.f32 0.0, %v1406
      %v1408 = vpop.f32.mrb[0].mxu0
      %1409 = vmatprep.mubr.bf16.mxu0 0
      %1410 = vmatmul.mubr.bf16.gmra.mrb[0].mxu0 %v1340
      %v1411 = vpop.f32.mrb[0].mxu0
      %v1412 = vadd.f32 0.0, %v1411
      %v1413 = vpop.f32.mrb[0].mxu0
      %v1414 = vpop.f32.mrb[0].mxu0
      %v1415 = vadd.f32 0.0, %v1414
      %v1416 = vpop.f32.mrb[0].mxu0
      %1417 = vmatprep.mubr.bf16.mxu0 0
      %1418 = vmatmul.mubr.bf16.gmra.mrb[0].mxu0 %v1343
      %v1419 = vpop.f32.mrb[0].mxu0
      %v1420 = vadd.f32 0.0, %v1419
      %v1421 = vpop.f32.mrb[0].mxu0
      %v1422 = vpop.f32.mrb[0].mxu0
      %v1423 = vadd.f32 0.0, %v1422
      %v1424 = vpop.f32.mrb[0].mxu0
      %1425 = vmatprep.mubr.bf16.mxu0 0
      %1426 = vmatmul.mubr.bf16.gmra.mrb[0].mxu0 %v1346
      %v1427 = vpop.f32.mrb[0].mxu0
      %v1428 = vadd.f32 0.0, %v1427
      %v1429 = vpop.f32.mrb[0].mxu0
      %v1430 = vpop.f32.mrb[0].mxu0
      %v1431 = vadd.f32 0.0, %v1430
      %v1432 = vpop.f32.mrb[0].mxu0
      %1433 = vmatprep.mubr.bf16.mxu0 0
      %1434 = vmatmul.mubr.bf16.gmra.mrb[0].mxu0 %v1349
      %v1435 = vpop.f32.mrb[0].mxu0
      %v1436 = vadd.f32 0.0, %v1435
      %v1437 = vpop.f32.mrb[0].mxu0
      %v1438 = vpop.f32.mrb[0].mxu0
      %v1439 = vadd.f32 0.0, %v1438
      %v1440 = vpop.f32.mrb[0].mxu0
      %1441 = vmatprep.mubr.bf16.mxu0 0
      %1442 = vmatmul.mubr.bf16.gmra.mrb[0].mxu0 %v1352
      %v1443 = vpop.f32.mrb[0].mxu0
      %v1444 = vadd.f32 0.0, %v1443
      %v1445 = vpop.f32.mrb[0].mxu0
      %v1446 = vpop.f32.mrb[0].mxu0
      %v1447 = vadd.f32 0.0, %v1446
      %v1448 = vpop.f32.mrb[0].mxu0
      %1449 = vmatprep.mubr.bf16.mxu0 0
      %1450 = vmatmul.mubr.bf16.gmra.mrb[0].mxu0 %v1355
      %v1451 = vpop.f32.mrb[0].mxu0
      %v1452 = vadd.f32 0.0, %v1451
      %v1453 = vpop.f32.mrb[0].mxu0
      %v1454 = vpop.f32.mrb[0].mxu0
      %v1455 = vadd.f32 0.0, %v1454
      %v1456 = vpop.f32.mrb[0].mxu0
      %1457 = vmatprep.mubr.bf16.mxu0 0
      %1458 = vmatmul.mubr.bf16.gmra.mrb[0].mxu0 %v1358
      %v1459 = vpop.f32.mrb[0].mxu0
      %v1460 = vadd.f32 0.0, %v1459
      %v1461 = vpop.f32.mrb[0].mxu0
      %v1462 = vpop.f32.mrb[0].mxu0
      %v1463 = vadd.f32 0.0, %v1462
      %v1464 = vpop.f32.mrb[0].mxu0
      %1465 = vmatprep.mubr.bf16.mxu0 0
      %1466 = vmatmul.mubr.bf16.gmra.mrb[0].mxu0 %v1361
      %v1467 = vpop.f32.mrb[0].mxu0
      %v1468 = vadd.f32 0.0, %v1467
      %v1469 = vpop.f32.mrb[0].mxu0
      %v1470 = vpop.f32.mrb[0].mxu0
      %v1471 = vadd.f32 0.0, %v1470
      %v1472 = vpop.f32.mrb[0].mxu0
      %1473 = vmatprep.mubr.bf16.mxu0 0
      %1474 = vmatmul.mubr.bf16.gmra.mrb[0].mxu0 %v1364
      %v1475 = vpop.f32.mrb[0].mxu0
      %v1476 = vadd.f32 0.0, %v1475
      %v1477 = vpop.f32.mrb[0].mxu0
      %v1478 = vpop.f32.mrb[0].mxu0
      %v1479 = vadd.f32 0.0, %v1478
      %v1480 = vpop.f32.mrb[0].mxu0
      %1481 = vdwg.mxu0
      %v1482 = vadd.f32 %v1240, %v1404
      %v1483 = vadd.f32 %v1241, %v1407
      %v1484 = vadd.f32 %v1242, %v1412
      %v1485 = vadd.f32 %v1243, %v1415
      %v1486 = vadd.f32 %v1244, %v1420
      %v1487 = vadd.f32 %v1245, %v1423
      %v1488 = vadd.f32 %v1246, %v1428
      %v1489 = vadd.f32 %v1247, %v1431
      %v1490 = vadd.f32 %v1248, %v1436
      %v1491 = vadd.f32 %v1249, %v1439
      %v1492 = vadd.f32 %v1250, %v1444
      %v1493 = vadd.f32 %v1251, %v1447
      %v1494 = vadd.f32 %v1252, %v1452
      %v1495 = vadd.f32 %v1253, %v1455
      %v1496 = vadd.f32 %v1254, %v1460
      %v1497 = vadd.f32 %v1255, %v1463
      %v1498 = vadd.f32 %v1256, %v1468
      %v1499 = vadd.f32 %v1257, %v1471
      %v1500 = vadd.f32 %v1258, %v1476
      %v1501 = vadd.f32 %v1259, %v1479
      %v1502 = vld [vmem:[%s1263] sm:$0xf]
      %v1503 = vld [vmem:[%s1263 + $0x4] sm:$0xf]
      %v1504 = vld [vmem:[%s1263 + $0x8] sm:$0x1]
      %v1505 = vld [vmem:[%s1263 + $0xc] sm:$0xf]
      %v1506 = vld [vmem:[%s1263 + $0x10] sm:$0xf]
      %v1507 = vld [vmem:[%s1263 + $0x14] sm:$0x1]
      %v1508 = vld [vmem:[%s1263 + $0x18] sm:$0xf]
      %v1509 = vld [vmem:[%s1263 + $0x1c] sm:$0xf]
      %v1510 = vld [vmem:[%s1263 + $0x20] sm:$0x1]
      %v1511 = vld [vmem:[%s1263 + $0x24] sm:$0xf]
      %v1512 = vld [vmem:[%s1263 + $0x28] sm:$0xf]
      %v1513 = vld [vmem:[%s1263 + $0x2c] sm:$0x1]
      %v1514 = vld [vmem:[%s1263 + $0x30] sm:$0xf]
      %v1515 = vld [vmem:[%s1263 + $0x34] sm:$0xf]
      %v1516 = vld [vmem:[%s1263 + $0x38] sm:$0x1]
      %v1517 = vld [vmem:[%s1263 + $0x3c] sm:$0xf]
      %v1518 = vld [vmem:[%s1263 + $0x40] sm:$0xf]
      %v1519 = vld [vmem:[%s1263 + $0x44] sm:$0x1]
      %v1520 = vld [vmem:[%s1263 + $0x48] sm:$0xf]
      %v1521 = vld [vmem:[%s1263 + $0x4c] sm:$0xf]
      %v1522 = vld [vmem:[%s1263 + $0x50] sm:$0x1]
      %v1523 = vld [vmem:[%s1263 + $0x54] sm:$0xf]
      %v1524 = vld [vmem:[%s1263 + $0x58] sm:$0xf]
      %v1525 = vld [vmem:[%s1263 + $0x5c] sm:$0x1]
      %v1526 = vld [vmem:[%s1263 + $0x60] sm:$0xf]
      %v1527 = vld [vmem:[%s1263 + $0x64] sm:$0xf]
      %v1528 = vld [vmem:[%s1263 + $0x68] sm:$0x1]
      %v1529 = vld [vmem:[%s1263 + $0x6c] sm:$0xf]
      %v1530 = vld [vmem:[%s1263 + $0x70] sm:$0xf]
      %v1531 = vld [vmem:[%s1263 + $0x74] sm:$0x1]
      %v1533 = vshrl.u32 %v1502, 16
      %v1535 = vrot.slane %v1533, 4
      %v1536 = vshll.u32 %v1502, 16
      %v1538 = vrot.slane %v1536, 5
      %v1539 = vor.u32 %v1535, %v1538
      %v1540 = vrot.slane %v1539, 4
      %v1542 = vshll.u32 %v1503, 16
      %v1544 = vrot.slane %v1542, 5
      %v1545 = vsel %vm342, %v1540, %v1544
      %v1546 = vshrl.u32 %v1503, 16
      %v1548 = vrot.slane %v1546, 4
      %v1549 = vor.u32 %v1548, %v1544
      %v1550 = vrot.slane %v1549, 4
      %v1552 = vshll.u32 %v1504, 16
      %v1554 = vrot.slane %v1552, 5
      %v1555 = vsel %vm342, %v1550, %v1554
      %v1557 = vshrl.u32 %v1505, 16
      %v1559 = vrot.slane %v1557, 4
      %v1560 = vshll.u32 %v1505, 16
      %v1562 = vrot.slane %v1560, 5
      %v1563 = vor.u32 %v1559, %v1562
      %v1564 = vrot.slane %v1563, 4
      %v1566 = vshll.u32 %v1506, 16
      %v1568 = vrot.slane %v1566, 5
      %v1569 = vsel %vm342, %v1564, %v1568
      %v1570 = vshrl.u32 %v1506, 16
      %v1572 = vrot.slane %v1570, 4
      %v1573 = vor.u32 %v1572, %v1568
      %v1574 = vrot.slane %v1573, 4
      %v1576 = vshll.u32 %v1507, 16
      %v1578 = vrot.slane %v1576, 5
      %v1579 = vsel %vm342, %v1574, %v1578
      %v1581 = vshrl.u32 %v1508, 16
      %v1583 = vrot.slane %v1581, 4
      %v1584 = vshll.u32 %v1508, 16
      %v1586 = vrot.slane %v1584, 5
      %v1587 = vor.u32 %v1583, %v1586
      %v1588 = vrot.slane %v1587, 4
      %v1590 = vshll.u32 %v1509, 16
      %v1592 = vrot.slane %v1590, 5
      %v1593 = vsel %vm342, %v1588, %v1592
      %v1594 = vshrl.u32 %v1509, 16
      %v1596 = vrot.slane %v1594, 4
      %v1597 = vor.u32 %v1596, %v1592
      %v1598 = vrot.slane %v1597, 4
      %v1600 = vshll.u32 %v1510, 16
      %v1602 = vrot.slane %v1600, 5
      %v1603 = vsel %vm342, %v1598, %v1602
      %v1605 = vshrl.u32 %v1511, 16
      %v1607 = vrot.slane %v1605, 4
      %v1608 = vshll.u32 %v1511, 16
      %v1610 = vrot.slane %v1608, 5
      %v1611 = vor.u32 %v1607, %v1610
      %v1612 = vrot.slane %v1611, 4
      %v1614 = vshll.u32 %v1512, 16
      %v1616 = vrot.slane %v1614, 5
      %v1617 = vsel %vm342, %v1612, %v1616
      %v1618 = vshrl.u32 %v1512, 16
      %v1620 = vrot.slane %v1618, 4
      %v1621 = vor.u32 %v1620, %v1616
      %v1622 = vrot.slane %v1621, 4
      %v1624 = vshll.u32 %v1513, 16
      %v1626 = vrot.slane %v1624, 5
      %v1627 = vsel %vm342, %v1622, %v1626
      %v1629 = vshrl.u32 %v1514, 16
      %v1631 = vrot.slane %v1629, 4
      %v1632 = vshll.u32 %v1514, 16
      %v1634 = vrot.slane %v1632, 5
      %v1635 = vor.u32 %v1631, %v1634
      %v1636 = vrot.slane %v1635, 4
      %v1638 = vshll.u32 %v1515, 16
      %v1640 = vrot.slane %v1638, 5
      %v1641 = vsel %vm342, %v1636, %v1640
      %v1642 = vshrl.u32 %v1515, 16
      %v1644 = vrot.slane %v1642, 4
      %v1645 = vor.u32 %v1644, %v1640
      %v1646 = vrot.slane %v1645, 4
      %v1648 = vshll.u32 %v1516, 16
      %v1650 = vrot.slane %v1648, 5
      %v1651 = vsel %vm342, %v1646, %v1650
      %v1653 = vshrl.u32 %v1517, 16
      %v1655 = vrot.slane %v1653, 4
      %v1656 = vshll.u32 %v1517, 16
      %v1658 = vrot.slane %v1656, 5
      %v1659 = vor.u32 %v1655, %v1658
      %v1660 = vrot.slane %v1659, 4
      %v1662 = vshll.u32 %v1518, 16
      %v1664 = vrot.slane %v1662, 5
      %v1665 = vsel %vm342, %v1660, %v1664
      %v1666 = vshrl.u32 %v1518, 16
      %v1668 = vrot.slane %v1666, 4
      %v1669 = vor.u32 %v1668, %v1664
      %v1670 = vrot.slane %v1669, 4
      %v1672 = vshll.u32 %v1519, 16
      %v1674 = vrot.slane %v1672, 5
      %v1675 = vsel %vm342, %v1670, %v1674
      %v1677 = vshrl.u32 %v1520, 16
      %v1679 = vrot.slane %v1677, 4
      %v1680 = vshll.u32 %v1520, 16
      %v1682 = vrot.slane %v1680, 5
      %v1683 = vor.u32 %v1679, %v1682
      %v1684 = vrot.slane %v1683, 4
      %v1686 = vshll.u32 %v1521, 16
      %v1688 = vrot.slane %v1686, 5
      %v1689 = vsel %vm342, %v1684, %v1688
      %v1690 = vshrl.u32 %v1521, 16
      %v1692 = vrot.slane %v1690, 4
      %v1693 = vor.u32 %v1692, %v1688
      %v1694 = vrot.slane %v1693, 4
      %v1696 = vshll.u32 %v1522, 16
      %v1698 = vrot.slane %v1696, 5
      %v1699 = vsel %vm342, %v1694, %v1698
      %v1701 = vshrl.u32 %v1523, 16
      %v1703 = vrot.slane %v1701, 4
      %v1704 = vshll.u32 %v1523, 16
      %v1706 = vrot.slane %v1704, 5
      %v1707 = vor.u32 %v1703, %v1706
      %v1708 = vrot.slane %v1707, 4
      %v1710 = vshll.u32 %v1524, 16
      %v1712 = vrot.slane %v1710, 5
      %v1713 = vsel %vm342, %v1708, %v1712
      %v1714 = vshrl.u32 %v1524, 16
      %v1716 = vrot.slane %v1714, 4
      %v1717 = vor.u32 %v1716, %v1712
      %v1718 = vrot.slane %v1717, 4
      %v1720 = vshll.u32 %v1525, 16
      %v1722 = vrot.slane %v1720, 5
      %v1723 = vsel %vm342, %v1718, %v1722
      %v1725 = vshrl.u32 %v1526, 16
      %v1727 = vrot.slane %v1725, 4
      %v1728 = vshll.u32 %v1526, 16
      %v1730 = vrot.slane %v1728, 5
      %v1731 = vor.u32 %v1727, %v1730
      %v1732 = vrot.slane %v1731, 4
      %v1734 = vshll.u32 %v1527, 16
      %v1736 = vrot.slane %v1734, 5
      %v1737 = vsel %vm342, %v1732, %v1736
      %v1738 = vshrl.u32 %v1527, 16
      %v1740 = vrot.slane %v1738, 4
      %v1741 = vor.u32 %v1740, %v1736
      %v1742 = vrot.slane %v1741, 4
      %v1744 = vshll.u32 %v1528, 16
      %v1746 = vrot.slane %v1744, 5
      %v1747 = vsel %vm342, %v1742, %v1746
      %v1749 = vshrl.u32 %v1529, 16
      %v1751 = vrot.slane %v1749, 4
      %v1752 = vshll.u32 %v1529, 16
      %v1754 = vrot.slane %v1752, 5
      %v1755 = vor.u32 %v1751, %v1754
      %v1756 = vrot.slane %v1755, 4
      %v1758 = vshll.u32 %v1530, 16
      %v1760 = vrot.slane %v1758, 5
      %v1761 = vsel %vm342, %v1756, %v1760
      %v1762 = vshrl.u32 %v1530, 16
      %v1764 = vrot.slane %v1762, 4
      %v1765 = vor.u32 %v1764, %v1760
      %v1766 = vrot.slane %v1765, 4
      %v1768 = vshll.u32 %v1531, 16
      %v1770 = vrot.slane %v1768, 5
      %v1771 = vsel %vm342, %v1766, %v1770
      %s1772 = scalar_lea.vmem %s1, 8
      %v1773 = vld [vmem:[%s1772] sm:$0x3]
      %v1774 = vunpack.c.l.b16 %v1545
      %v1775 = vunpack.c.l.b16 %v1555
      %v1776 = vunpack.c.l.b16 %v1569
      %v1777 = vunpack.c.l.b16 %v1579
      %v1778 = vunpack.c.l.b16 %v1593
      %v1779 = vunpack.c.l.b16 %v1603
      %v1780 = vunpack.c.l.b16 %v1617
      %v1781 = vunpack.c.l.b16 %v1627
      %v1782 = vunpack.c.l.b16 %v1641
      %v1783 = vunpack.c.l.b16 %v1651
      %v1784 = vunpack.c.l.b16 %v1665
      %v1785 = vunpack.c.l.b16 %v1675
      %v1786 = vunpack.c.l.b16 %v1689
      %v1787 = vunpack.c.l.b16 %v1699
      %v1788 = vunpack.c.l.b16 %v1713
      %v1789 = vunpack.c.l.b16 %v1723
      %v1790 = vunpack.c.l.b16 %v1737
      %v1791 = vunpack.c.l.b16 %v1747
      %v1792 = vunpack.c.l.b16 %v1761
      %v1793 = vunpack.c.l.b16 %v1771
      %v1794 = vpack.c.b16 %v1775, %v1774
      %v1795 = vpack.c.b16 %v1777, %v1776
      %v1796 = vpack.c.b16 %v1779, %v1778
      %v1797 = vpack.c.b16 %v1781, %v1780
      %v1798 = vpack.c.b16 %v1783, %v1782
      %v1799 = vpack.c.b16 %v1785, %v1784
      %v1800 = vpack.c.b16 %v1787, %v1786
      %v1801 = vpack.c.b16 %v1789, %v1788
      %v1802 = vpack.c.b16 %v1791, %v1790
      %v1803 = vpack.c.b16 %v1793, %v1792
      %v1805 = vsel %vm615, %v1794, 0
      %v1808 = vsel %vm615, %v1795, 0
      %v1811 = vsel %vm615, %v1796, 0
      %v1814 = vsel %vm615, %v1797, 0
      %v1817 = vsel %vm615, %v1798, 0
      %v1820 = vsel %vm615, %v1799, 0
      %v1823 = vsel %vm615, %v1800, 0
      %v1826 = vsel %vm615, %v1801, 0
      %v1829 = vsel %vm615, %v1802, 0
      %v1832 = vsel %vm615, %v1803, 0
      %v1835 = vsel %vm646, %v1773, 0
      %1837 = vmatprep.subr.bf16.mxu0 0
      %1838 = vmatpush1.bf16.msra.mxu0 %v1835
      %1839 = vmatprep.subr.bf16.mxu0 0
      %1840 = vmatpush1.bf16.msra.mxu0 0
      %1841 = vmatprep.subr.bf16.mxu0 0
      %1842 = vmatpush1.bf16.msra.mxu0 0
      %1843 = vmatprep.subr.bf16.mxu0 0
      %1844 = vmatpush1.bf16.msra.mxu0 0
      %1845 = vmatprep.subr.bf16.mxu0 0
      %1846 = vmatpush1.bf16.msra.mxu0 0
      %1847 = vmatprep.subr.bf16.mxu0 0
      %1848 = vmatpush1.bf16.msra.mxu0 0
      %1849 = vmatprep.subr.bf16.mxu0 0
      %1850 = vmatpush1.bf16.msra.mxu0 0
      %1851 = vmatprep.subr.bf16.mxu0 0
      %1852 = vmatpush1.bf16.msra.mxu0 0
      %1853 = vmatprep.subr.bf16.mxu0 0
      %1854 = vmatpush1.bf16.msra.mxu0 0
      %1855 = vmatprep.subr.bf16.mxu0 0
      %1856 = vmatpush1.bf16.msra.mxu0 0
      %1857 = vmatprep.subr.bf16.mxu0 0
      %1858 = vmatpush1.bf16.msra.mxu0 0
      %1859 = vmatprep.subr.bf16.mxu0 0
      %1860 = vmatpush1.bf16.msra.mxu0 0
      %1861 = vmatprep.subr.bf16.mxu0 0
      %1862 = vmatpush1.bf16.msra.mxu0 0
      %1863 = vmatprep.subr.bf16.mxu0 0
      %1864 = vmatpush1.bf16.msra.mxu0 0
      %1865 = vmatprep.subr.bf16.mxu0 0
      %1866 = vmatpush1.bf16.msra.mxu0 0
      %1867 = vmatprep.subr.bf16.mxu0 0
      %1868 = vmatpush1.bf16.msra.mxu0 0
      %1869 = vmatprep.mubr.bf16.mxu0 0
      %1870 = vmatmul.mubr.bf16.gmra.mrb[0].mxu0 %v1805
      %v1871 = vpop.f32.mrb[0].mxu0
      %v1872 = vadd.f32 0.0, %v1871
      %v1873 = vpop.f32.mrb[0].mxu0
      %v1874 = vpop.f32.mrb[0].mxu0
      %v1875 = vadd.f32 0.0, %v1874
      %v1876 = vpop.f32.mrb[0].mxu0
      %1877 = vmatprep.mubr.bf16.mxu0 0
      %1878 = vmatmul.mubr.bf16.gmra.mrb[0].mxu0 %v1808
      %v1879 = vpop.f32.mrb[0].mxu0
      %v1880 = vadd.f32 0.0, %v1879
      %v1881 = vpop.f32.mrb[0].mxu0
      %v1882 = vpop.f32.mrb[0].mxu0
      %v1883 = vadd.f32 0.0, %v1882
      %v1884 = vpop.f32.mrb[0].mxu0
      %1885 = vmatprep.mubr.bf16.mxu0 0
      %1886 = vmatmul.mubr.bf16.gmra.mrb[0].mxu0 %v1811
      %v1887 = vpop.f32.mrb[0].mxu0
      %v1888 = vadd.f32 0.0, %v1887
      %v1889 = vpop.f32.mrb[0].mxu0
      %v1890 = vpop.f32.mrb[0].mxu0
      %v1891 = vadd.f32 0.0, %v1890
      %v1892 = vpop.f32.mrb[0].mxu0
      %1893 = vmatprep.mubr.bf16.mxu0 0
      %1894 = vmatmul.mubr.bf16.gmra.mrb[0].mxu0 %v1814
      %v1895 = vpop.f32.mrb[0].mxu0
      %v1896 = vadd.f32 0.0, %v1895
      %v1897 = vpop.f32.mrb[0].mxu0
      %v1898 = vpop.f32.mrb[0].mxu0
      %v1899 = vadd.f32 0.0, %v1898
      %v1900 = vpop.f32.mrb[0].mxu0
      %1901 = vmatprep.mubr.bf16.mxu0 0
      %1902 = vmatmul.mubr.bf16.gmra.mrb[0].mxu0 %v1817
      %v1903 = vpop.f32.mrb[0].mxu0
      %v1904 = vadd.f32 0.0, %v1903
      %v1905 = vpop.f32.mrb[0].mxu0
      %v1906 = vpop.f32.mrb[0].mxu0
      %v1907 = vadd.f32 0.0, %v1906
      %v1908 = vpop.f32.mrb[0].mxu0
      %1909 = vmatprep.mubr.bf16.mxu0 0
      %1910 = vmatmul.mubr.bf16.gmra.mrb[0].mxu0 %v1820
      %v1911 = vpop.f32.mrb[0].mxu0
      %v1912 = vadd.f32 0.0, %v1911
      %v1913 = vpop.f32.mrb[0].mxu0
      %v1914 = vpop.f32.mrb[0].mxu0
      %v1915 = vadd.f32 0.0, %v1914
      %v1916 = vpop.f32.mrb[0].mxu0
      %1917 = vmatprep.mubr.bf16.mxu0 0
      %1918 = vmatmul.mubr.bf16.gmra.mrb[0].mxu0 %v1823
      %v1919 = vpop.f32.mrb[0].mxu0
      %v1920 = vadd.f32 0.0, %v1919
      %v1921 = vpop.f32.mrb[0].mxu0
      %v1922 = vpop.f32.mrb[0].mxu0
      %v1923 = vadd.f32 0.0, %v1922
      %v1924 = vpop.f32.mrb[0].mxu0
      %1925 = vmatprep.mubr.bf16.mxu0 0
      %1926 = vmatmul.mubr.bf16.gmra.mrb[0].mxu0 %v1826
      %v1927 = vpop.f32.mrb[0].mxu0
      %v1928 = vadd.f32 0.0, %v1927
      %v1929 = vpop.f32.mrb[0].mxu0
      %v1930 = vpop.f32.mrb[0].mxu0
      %v1931 = vadd.f32 0.0, %v1930
      %v1932 = vpop.f32.mrb[0].mxu0
      %1933 = vmatprep.mubr.bf16.mxu0 0
      %1934 = vmatmul.mubr.bf16.gmra.mrb[0].mxu0 %v1829
      %v1935 = vpop.f32.mrb[0].mxu0
      %v1936 = vadd.f32 0.0, %v1935
      %v1937 = vpop.f32.mrb[0].mxu0
      %v1938 = vpop.f32.mrb[0].mxu0
      %v1939 = vadd.f32 0.0, %v1938
      %v1940 = vpop.f32.mrb[0].mxu0
      %1941 = vmatprep.mubr.bf16.mxu0 0
      %1942 = vmatmul.mubr.bf16.gmra.mrb[0].mxu0 %v1832
      %v1943 = vpop.f32.mrb[0].mxu0
      %v1944 = vadd.f32 0.0, %v1943
      %v1945 = vpop.f32.mrb[0].mxu0
      %v1946 = vpop.f32.mrb[0].mxu0
      %v1947 = vadd.f32 0.0, %v1946
      %v1948 = vpop.f32.mrb[0].mxu0
      %1949 = vdwg.mxu0
      %v1950 = vadd.f32 %v1482, %v1872
      %v1951 = vadd.f32 %v1483, %v1875
      %v1952 = vadd.f32 %v1484, %v1880
      %v1953 = vadd.f32 %v1485, %v1883
      %v1954 = vadd.f32 %v1486, %v1888
      %v1955 = vadd.f32 %v1487, %v1891
      %v1956 = vadd.f32 %v1488, %v1896
      %v1957 = vadd.f32 %v1489, %v1899
      %v1958 = vadd.f32 %v1490, %v1904
      %v1959 = vadd.f32 %v1491, %v1907
      %v1960 = vadd.f32 %v1492, %v1912
      %v1961 = vadd.f32 %v1493, %v1915
      %v1962 = vadd.f32 %v1494, %v1920
      %v1963 = vadd.f32 %v1495, %v1923
      %v1964 = vadd.f32 %v1496, %v1928
      %v1965 = vadd.f32 %v1497, %v1931
      %v1966 = vadd.f32 %v1498, %v1936
      %v1967 = vadd.f32 %v1499, %v1939
      %v1968 = vadd.f32 %v1500, %v1944
      %v1969 = vadd.f32 %v1501, %v1947
      %v1970 = vld [vmem:[%s1263] sm:$0xe]
      %v1971 = vld [vmem:[%s1263 + $0xc] sm:$0xe]
      %v1972 = vld [vmem:[%s1263 + $0x18] sm:$0xe]
      %v1973 = vld [vmem:[%s1263 + $0x24] sm:$0xe]
      %v1974 = vld [vmem:[%s1263 + $0x30] sm:$0xe]
      %v1975 = vld [vmem:[%s1263 + $0x3c] sm:$0xe]
      %v1976 = vld [vmem:[%s1263 + $0x48] sm:$0xe]
      %v1977 = vld [vmem:[%s1263 + $0x54] sm:$0xe]
      %v1978 = vld [vmem:[%s1263 + $0x60] sm:$0xe]
      %v1979 = vld [vmem:[%s1263 + $0x6c] sm:$0xe]
      %v2010 = vrot.slane %v1970, 5
      %v2011 = vrot.slane %v2010, 4
      %v2012 = vrot.slane %v1503, 5
      %v2013 = vsel %vm991, %v2011, %v2012
      %v2014 = vrot.slane %v2012, 4
      %v2015 = vrot.slane %v1504, 5
      %v2016 = vsel %vm991, %v2014, %v2015
      %v2017 = vrot.slane %v1971, 5
      %v2018 = vrot.slane %v2017, 4
      %v2019 = vrot.slane %v1506, 5
      %v2020 = vsel %vm991, %v2018, %v2019
      %v2021 = vrot.slane %v2019, 4
      %v2022 = vrot.slane %v1507, 5
      %v2023 = vsel %vm991, %v2021, %v2022
      %v2024 = vrot.slane %v1972, 5
      %v2025 = vrot.slane %v2024, 4
      %v2026 = vrot.slane %v1509, 5
      %v2027 = vsel %vm991, %v2025, %v2026
      %v2028 = vrot.slane %v2026, 4
      %v2029 = vrot.slane %v1510, 5
      %v2030 = vsel %vm991, %v2028, %v2029
      %v2031 = vrot.slane %v1973, 5
      %v2032 = vrot.slane %v2031, 4
      %v2033 = vrot.slane %v1512, 5
      %v2034 = vsel %vm991, %v2032, %v2033
      %v2035 = vrot.slane %v2033, 4
      %v2036 = vrot.slane %v1513, 5
      %v2037 = vsel %vm991, %v2035, %v2036
      %v2038 = vrot.slane %v1974, 5
      %v2039 = vrot.slane %v2038, 4
      %v2040 = vrot.slane %v1515, 5
      %v2041 = vsel %vm991, %v2039, %v2040
      %v2042 = vrot.slane %v2040, 4
      %v2043 = vrot.slane %v1516, 5
      %v2044 = vsel %vm991, %v2042, %v2043
      %v2045 = vrot.slane %v1975, 5
      %v2046 = vrot.slane %v2045, 4
      %v2047 = vrot.slane %v1518, 5
      %v2048 = vsel %vm991, %v2046, %v2047
      %v2049 = vrot.slane %v2047, 4
      %v2050 = vrot.slane %v1519, 5
      %v2051 = vsel %vm991, %v2049, %v2050
      %v2052 = vrot.slane %v1976, 5
      %v2053 = vrot.slane %v2052, 4
      %v2054 = vrot.slane %v1521, 5
      %v2055 = vsel %vm991, %v2053, %v2054
      %v2056 = vrot.slane %v2054, 4
      %v2057 = vrot.slane %v1522, 5
      %v2058 = vsel %vm991, %v2056, %v2057
      %v2059 = vrot.slane %v1977, 5
      %v2060 = vrot.slane %v2059, 4
      %v2061 = vrot.slane %v1524, 5
      %v2062 = vsel %vm991, %v2060, %v2061
      %v2063 = vrot.slane %v2061, 4
      %v2064 = vrot.slane %v1525, 5
      %v2065 = vsel %vm991, %v2063, %v2064
      %v2066 = vrot.slane %v1978, 5
      %v2067 = vrot.slane %v2066, 4
      %v2068 = vrot.slane %v1527, 5
      %v2069 = vsel %vm991, %v2067, %v2068
      %v2070 = vrot.slane %v2068, 4
      %v2071 = vrot.slane %v1528, 5
      %v2072 = vsel %vm991, %v2070, %v2071
      %v2073 = vrot.slane %v1979, 5
      %v2074 = vrot.slane %v2073, 4
      %v2075 = vrot.slane %v1530, 5
      %v2076 = vsel %vm991, %v2074, %v2075
      %v2077 = vrot.slane %v2075, 4
      %v2078 = vrot.slane %v1531, 5
      %v2079 = vsel %vm991, %v2077, %v2078
      %s2080 = scalar_lea.vmem %s1, 10
      %v2081 = vld [vmem:[%s2080] sm:$0x3]
      %v2082 = vunpack.c.l.b16 %v2013
      %v2083 = vunpack.c.l.b16 %v2016
      %v2084 = vunpack.c.l.b16 %v2020
      %v2085 = vunpack.c.l.b16 %v2023
      %v2086 = vunpack.c.l.b16 %v2027
      %v2087 = vunpack.c.l.b16 %v2030
      %v2088 = vunpack.c.l.b16 %v2034
      %v2089 = vunpack.c.l.b16 %v2037
      %v2090 = vunpack.c.l.b16 %v2041
      %v2091 = vunpack.c.l.b16 %v2044
      %v2092 = vunpack.c.l.b16 %v2048
      %v2093 = vunpack.c.l.b16 %v2051
      %v2094 = vunpack.c.l.b16 %v2055
      %v2095 = vunpack.c.l.b16 %v2058
      %v2096 = vunpack.c.l.b16 %v2062
      %v2097 = vunpack.c.l.b16 %v2065
      %v2098 = vunpack.c.l.b16 %v2069
      %v2099 = vunpack.c.l.b16 %v2072
      %v2100 = vunpack.c.l.b16 %v2076
      %v2101 = vunpack.c.l.b16 %v2079
      %v2102 = vpack.c.b16 %v2083, %v2082
      %v2103 = vpack.c.b16 %v2085, %v2084
      %v2104 = vpack.c.b16 %v2087, %v2086
      %v2105 = vpack.c.b16 %v2089, %v2088
      %v2106 = vpack.c.b16 %v2091, %v2090
      %v2107 = vpack.c.b16 %v2093, %v2092
      %v2108 = vpack.c.b16 %v2095, %v2094
      %v2109 = vpack.c.b16 %v2097, %v2096
      %v2110 = vpack.c.b16 %v2099, %v2098
      %v2111 = vpack.c.b16 %v2101, %v2100
      %v2113 = vsel %vm615, %v2102, 0
      %v2116 = vsel %vm615, %v2103, 0
      %v2119 = vsel %vm615, %v2104, 0
      %v2122 = vsel %vm615, %v2105, 0
      %v2125 = vsel %vm615, %v2106, 0
      %v2128 = vsel %vm615, %v2107, 0
      %v2131 = vsel %vm615, %v2108, 0
      %v2134 = vsel %vm615, %v2109, 0
      %v2137 = vsel %vm615, %v2110, 0
      %v2140 = vsel %vm615, %v2111, 0
      %v2143 = vsel %vm646, %v2081, 0
      %2145 = vmatprep.subr.bf16.mxu0 0
      %2146 = vmatpush1.bf16.msra.mxu0 %v2143
      %2147 = vmatprep.subr.bf16.mxu0 0
      %2148 = vmatpush1.bf16.msra.mxu0 0
      %2149 = vmatprep.subr.bf16.mxu0 0
      %2150 = vmatpush1.bf16.msra.mxu0 0
      %2151 = vmatprep.subr.bf16.mxu0 0
      %2152 = vmatpush1.bf16.msra.mxu0 0
      %2153 = vmatprep.subr.bf16.mxu0 0
      %2154 = vmatpush1.bf16.msra.mxu0 0
      %2155 = vmatprep.subr.bf16.mxu0 0
      %2156 = vmatpush1.bf16.msra.mxu0 0
      %2157 = vmatprep.subr.bf16.mxu0 0
      %2158 = vmatpush1.bf16.msra.mxu0 0
      %2159 = vmatprep.subr.bf16.mxu0 0
      %2160 = vmatpush1.bf16.msra.mxu0 0
      %2161 = vmatprep.subr.bf16.mxu0 0
      %2162 = vmatpush1.bf16.msra.mxu0 0
      %2163 = vmatprep.subr.bf16.mxu0 0
      %2164 = vmatpush1.bf16.msra.mxu0 0
      %2165 = vmatprep.subr.bf16.mxu0 0
      %2166 = vmatpush1.bf16.msra.mxu0 0
      %2167 = vmatprep.subr.bf16.mxu0 0
      %2168 = vmatpush1.bf16.msra.mxu0 0
      %2169 = vmatprep.subr.bf16.mxu0 0
      %2170 = vmatpush1.bf16.msra.mxu0 0
      %2171 = vmatprep.subr.bf16.mxu0 0
      %2172 = vmatpush1.bf16.msra.mxu0 0
      %2173 = vmatprep.subr.bf16.mxu0 0
      %2174 = vmatpush1.bf16.msra.mxu0 0
      %2175 = vmatprep.subr.bf16.mxu0 0
      %2176 = vmatpush1.bf16.msra.mxu0 0
      %2177 = vmatprep.mubr.bf16.mxu0 0
      %2178 = vmatmul.mubr.bf16.gmra.mrb[0].mxu0 %v2113
      %v2179 = vpop.f32.mrb[0].mxu0
      %v2180 = vadd.f32 0.0, %v2179
      %v2181 = vpop.f32.mrb[0].mxu0
      %v2182 = vpop.f32.mrb[0].mxu0
      %v2183 = vadd.f32 0.0, %v2182
      %v2184 = vpop.f32.mrb[0].mxu0
      %2185 = vmatprep.mubr.bf16.mxu0 0
      %2186 = vmatmul.mubr.bf16.gmra.mrb[0].mxu0 %v2116
      %v2187 = vpop.f32.mrb[0].mxu0
      %v2188 = vadd.f32 0.0, %v2187
      %v2189 = vpop.f32.mrb[0].mxu0
      %v2190 = vpop.f32.mrb[0].mxu0
      %v2191 = vadd.f32 0.0, %v2190
      %v2192 = vpop.f32.mrb[0].mxu0
      %2193 = vmatprep.mubr.bf16.mxu0 0
      %2194 = vmatmul.mubr.bf16.gmra.mrb[0].mxu0 %v2119
      %v2195 = vpop.f32.mrb[0].mxu0
      %v2196 = vadd.f32 0.0, %v2195
      %v2197 = vpop.f32.mrb[0].mxu0
      %v2198 = vpop.f32.mrb[0].mxu0
      %v2199 = vadd.f32 0.0, %v2198
      %v2200 = vpop.f32.mrb[0].mxu0
      %2201 = vmatprep.mubr.bf16.mxu0 0
      %2202 = vmatmul.mubr.bf16.gmra.mrb[0].mxu0 %v2122
      %v2203 = vpop.f32.mrb[0].mxu0
      %v2204 = vadd.f32 0.0, %v2203
      %v2205 = vpop.f32.mrb[0].mxu0
      %v2206 = vpop.f32.mrb[0].mxu0
      %v2207 = vadd.f32 0.0, %v2206
      %v2208 = vpop.f32.mrb[0].mxu0
      %2209 = vmatprep.mubr.bf16.mxu0 0
      %2210 = vmatmul.mubr.bf16.gmra.mrb[0].mxu0 %v2125
      %v2211 = vpop.f32.mrb[0].mxu0
      %v2212 = vadd.f32 0.0, %v2211
      %v2213 = vpop.f32.mrb[0].mxu0
      %v2214 = vpop.f32.mrb[0].mxu0
      %v2215 = vadd.f32 0.0, %v2214
      %v2216 = vpop.f32.mrb[0].mxu0
      %2217 = vmatprep.mubr.bf16.mxu0 0
      %2218 = vmatmul.mubr.bf16.gmra.mrb[0].mxu0 %v2128
      %v2219 = vpop.f32.mrb[0].mxu0
      %v2220 = vadd.f32 0.0, %v2219
      %v2221 = vpop.f32.mrb[0].mxu0
      %v2222 = vpop.f32.mrb[0].mxu0
      %v2223 = vadd.f32 0.0, %v2222
      %v2224 = vpop.f32.mrb[0].mxu0
      %2225 = vmatprep.mubr.bf16.mxu0 0
      %2226 = vmatmul.mubr.bf16.gmra.mrb[0].mxu0 %v2131
      %v2227 = vpop.f32.mrb[0].mxu0
      %v2228 = vadd.f32 0.0, %v2227
      %v2229 = vpop.f32.mrb[0].mxu0
      %v2230 = vpop.f32.mrb[0].mxu0
      %v2231 = vadd.f32 0.0, %v2230
      %v2232 = vpop.f32.mrb[0].mxu0
      %2233 = vmatprep.mubr.bf16.mxu0 0
      %2234 = vmatmul.mubr.bf16.gmra.mrb[0].mxu0 %v2134
      %v2235 = vpop.f32.mrb[0].mxu0
      %v2236 = vadd.f32 0.0, %v2235
      %v2237 = vpop.f32.mrb[0].mxu0
      %v2238 = vpop.f32.mrb[0].mxu0
      %v2239 = vadd.f32 0.0, %v2238
      %v2240 = vpop.f32.mrb[0].mxu0
      %2241 = vmatprep.mubr.bf16.mxu0 0
      %2242 = vmatmul.mubr.bf16.gmra.mrb[0].mxu0 %v2137
      %v2243 = vpop.f32.mrb[0].mxu0
      %v2244 = vadd.f32 0.0, %v2243
      %v2245 = vpop.f32.mrb[0].mxu0
      %v2246 = vpop.f32.mrb[0].mxu0
      %v2247 = vadd.f32 0.0, %v2246
      %v2248 = vpop.f32.mrb[0].mxu0
      %2249 = vmatprep.mubr.bf16.mxu0 0
      %2250 = vmatmul.mubr.bf16.gmra.mrb[0].mxu0 %v2140
      %v2251 = vpop.f32.mrb[0].mxu0
      %v2252 = vadd.f32 0.0, %v2251
      %v2253 = vpop.f32.mrb[0].mxu0
      %v2254 = vpop.f32.mrb[0].mxu0
      %v2255 = vadd.f32 0.0, %v2254
      %v2256 = vpop.f32.mrb[0].mxu0
      %2257 = vdwg.mxu0
      %v2258 = vadd.f32 %v1950, %v2180
      %v2259 = vadd.f32 %v1951, %v2183
      %v2260 = vadd.f32 %v1952, %v2188
      %v2261 = vadd.f32 %v1953, %v2191
      %v2262 = vadd.f32 %v1954, %v2196
      %v2263 = vadd.f32 %v1955, %v2199
      %v2264 = vadd.f32 %v1956, %v2204
      %v2265 = vadd.f32 %v1957, %v2207
      %v2266 = vadd.f32 %v1958, %v2212
      %v2267 = vadd.f32 %v1959, %v2215
      %v2268 = vadd.f32 %v1960, %v2220
      %v2269 = vadd.f32 %v1961, %v2223
      %v2270 = vadd.f32 %v1962, %v2228
      %v2271 = vadd.f32 %v1963, %v2231
      %v2272 = vadd.f32 %v1964, %v2236
      %v2273 = vadd.f32 %v1965, %v2239
      %v2274 = vadd.f32 %v1966, %v2244
      %v2275 = vadd.f32 %v1967, %v2247
      %v2276 = vadd.f32 %v1968, %v2252
      %v2277 = vadd.f32 %v1969, %v2255
      %s2278 = sadd.s32 %s305, 2
      %s2279 = smul.u32 %s2278, 3
      %s2280 = smul.addr %s2279, 4
      %s2281 = scalar_lea.vmem %s292, %s2280
      %v2282 = vld [vmem:[%s2281] sm:$0xf]
      %v2283 = vld [vmem:[%s2281 + $0x4] sm:$0xf]
      %v2284 = vld [vmem:[%s2281 + $0xc] sm:$0xf]
      %v2285 = vld [vmem:[%s2281 + $0x10] sm:$0xf]
      %v2286 = vld [vmem:[%s2281 + $0x18] sm:$0xf]
      %v2287 = vld [vmem:[%s2281 + $0x1c] sm:$0xf]
      %v2288 = vld [vmem:[%s2281 + $0x24] sm:$0xf]
      %v2289 = vld [vmem:[%s2281 + $0x28] sm:$0xf]
      %v2290 = vld [vmem:[%s2281 + $0x30] sm:$0xf]
      %v2291 = vld [vmem:[%s2281 + $0x34] sm:$0xf]
      %v2292 = vld [vmem:[%s2281 + $0x3c] sm:$0xf]
      %v2293 = vld [vmem:[%s2281 + $0x40] sm:$0xf]
      %v2294 = vld [vmem:[%s2281 + $0x48] sm:$0xf]
      %v2295 = vld [vmem:[%s2281 + $0x4c] sm:$0xf]
      %v2296 = vld [vmem:[%s2281 + $0x54] sm:$0xf]
      %v2297 = vld [vmem:[%s2281 + $0x58] sm:$0xf]
      %v2298 = vld [vmem:[%s2281 + $0x60] sm:$0xf]
      %v2299 = vld [vmem:[%s2281 + $0x64] sm:$0xf]
      %v2300 = vld [vmem:[%s2281 + $0x6c] sm:$0xf]
      %v2301 = vld [vmem:[%s2281 + $0x70] sm:$0xf]
      %s2302 = scalar_lea.vmem %s1, 12
      %v2303 = vld [vmem:[%s2302] sm:$0x3]
      %v2324 = vunpack.c.l.b16 %v2282
      %v2325 = vunpack.c.l.b16 %v2283
      %v2326 = vunpack.c.l.b16 %v2284
      %v2327 = vunpack.c.l.b16 %v2285
      %v2328 = vunpack.c.l.b16 %v2286
      %v2329 = vunpack.c.l.b16 %v2287
      %v2330 = vunpack.c.l.b16 %v2288
      %v2331 = vunpack.c.l.b16 %v2289
      %v2332 = vunpack.c.l.b16 %v2290
      %v2333 = vunpack.c.l.b16 %v2291
      %v2334 = vunpack.c.l.b16 %v2292
      %v2335 = vunpack.c.l.b16 %v2293
      %v2336 = vunpack.c.l.b16 %v2294
      %v2337 = vunpack.c.l.b16 %v2295
      %v2338 = vunpack.c.l.b16 %v2296
      %v2339 = vunpack.c.l.b16 %v2297
      %v2340 = vunpack.c.l.b16 %v2298
      %v2341 = vunpack.c.l.b16 %v2299
      %v2342 = vunpack.c.l.b16 %v2300
      %v2343 = vunpack.c.l.b16 %v2301
      %v2344 = vpack.c.b16 %v2325, %v2324
      %v2345 = vpack.c.b16 %v2327, %v2326
      %v2346 = vpack.c.b16 %v2329, %v2328
      %v2347 = vpack.c.b16 %v2331, %v2330
      %v2348 = vpack.c.b16 %v2333, %v2332
      %v2349 = vpack.c.b16 %v2335, %v2334
      %v2350 = vpack.c.b16 %v2337, %v2336
      %v2351 = vpack.c.b16 %v2339, %v2338
      %v2352 = vpack.c.b16 %v2341, %v2340
      %v2353 = vpack.c.b16 %v2343, %v2342
      %v2355 = vsel %vm615, %v2344, 0
      %v2358 = vsel %vm615, %v2345, 0
      %v2361 = vsel %vm615, %v2346, 0
      %v2364 = vsel %vm615, %v2347, 0
      %v2367 = vsel %vm615, %v2348, 0
      %v2370 = vsel %vm615, %v2349, 0
      %v2373 = vsel %vm615, %v2350, 0
      %v2376 = vsel %vm615, %v2351, 0
      %v2379 = vsel %vm615, %v2352, 0
      %v2382 = vsel %vm615, %v2353, 0
      %v2385 = vsel %vm646, %v2303, 0
      %2387 = vmatprep.subr.bf16.mxu0 0
      %2388 = vmatpush1.bf16.msra.mxu0 %v2385
      %2389 = vmatprep.subr.bf16.mxu0 0
      %2390 = vmatpush1.bf16.msra.mxu0 0
      %2391 = vmatprep.subr.bf16.mxu0 0
      %2392 = vmatpush1.bf16.msra.mxu0 0
      %2393 = vmatprep.subr.bf16.mxu0 0
      %2394 = vmatpush1.bf16.msra.mxu0 0
      %2395 = vmatprep.subr.bf16.mxu0 0
      %2396 = vmatpush1.bf16.msra.mxu0 0
      %2397 = vmatprep.subr.bf16.mxu0 0
      %2398 = vmatpush1.bf16.msra.mxu0 0
      %2399 = vmatprep.subr.bf16.mxu0 0
      %2400 = vmatpush1.bf16.msra.mxu0 0
      %2401 = vmatprep.subr.bf16.mxu0 0
      %2402 = vmatpush1.bf16.msra.mxu0 0
      %2403 = vmatprep.subr.bf16.mxu0 0
      %2404 = vmatpush1.bf16.msra.mxu0 0
      %2405 = vmatprep.subr.bf16.mxu0 0
      %2406 = vmatpush1.bf16.msra.mxu0 0
      %2407 = vmatprep.subr.bf16.mxu0 0
      %2408 = vmatpush1.bf16.msra.mxu0 0
      %2409 = vmatprep.subr.bf16.mxu0 0
      %2410 = vmatpush1.bf16.msra.mxu0 0
      %2411 = vmatprep.subr.bf16.mxu0 0
      %2412 = vmatpush1.bf16.msra.mxu0 0
      %2413 = vmatprep.subr.bf16.mxu0 0
      %2414 = vmatpush1.bf16.msra.mxu0 0
      %2415 = vmatprep.subr.bf16.mxu0 0
      %2416 = vmatpush1.bf16.msra.mxu0 0
      %2417 = vmatprep.subr.bf16.mxu0 0
      %2418 = vmatpush1.bf16.msra.mxu0 0
      %2419 = vmatprep.mubr.bf16.mxu0 0
      %2420 = vmatmul.mubr.bf16.gmra.mrb[0].mxu0 %v2355
      %v2421 = vpop.f32.mrb[0].mxu0
      %v2422 = vadd.f32 0.0, %v2421
      %v2423 = vpop.f32.mrb[0].mxu0
      %v2424 = vpop.f32.mrb[0].mxu0
      %v2425 = vadd.f32 0.0, %v2424
      %v2426 = vpop.f32.mrb[0].mxu0
      %2427 = vmatprep.mubr.bf16.mxu0 0
      %2428 = vmatmul.mubr.bf16.gmra.mrb[0].mxu0 %v2358
      %v2429 = vpop.f32.mrb[0].mxu0
      %v2430 = vadd.f32 0.0, %v2429
      %v2431 = vpop.f32.mrb[0].mxu0
      %v2432 = vpop.f32.mrb[0].mxu0
      %v2433 = vadd.f32 0.0, %v2432
      %v2434 = vpop.f32.mrb[0].mxu0
      %2435 = vmatprep.mubr.bf16.mxu0 0
      %2436 = vmatmul.mubr.bf16.gmra.mrb[0].mxu0 %v2361
      %v2437 = vpop.f32.mrb[0].mxu0
      %v2438 = vadd.f32 0.0, %v2437
      %v2439 = vpop.f32.mrb[0].mxu0
      %v2440 = vpop.f32.mrb[0].mxu0
      %v2441 = vadd.f32 0.0, %v2440
      %v2442 = vpop.f32.mrb[0].mxu0
      %2443 = vmatprep.mubr.bf16.mxu0 0
      %2444 = vmatmul.mubr.bf16.gmra.mrb[0].mxu0 %v2364
      %v2445 = vpop.f32.mrb[0].mxu0
      %v2446 = vadd.f32 0.0, %v2445
      %v2447 = vpop.f32.mrb[0].mxu0
      %v2448 = vpop.f32.mrb[0].mxu0
      %v2449 = vadd.f32 0.0, %v2448
      %v2450 = vpop.f32.mrb[0].mxu0
      %2451 = vmatprep.mubr.bf16.mxu0 0
      %2452 = vmatmul.mubr.bf16.gmra.mrb[0].mxu0 %v2367
      %v2453 = vpop.f32.mrb[0].mxu0
      %v2454 = vadd.f32 0.0, %v2453
      %v2455 = vpop.f32.mrb[0].mxu0
      %v2456 = vpop.f32.mrb[0].mxu0
      %v2457 = vadd.f32 0.0, %v2456
      %v2458 = vpop.f32.mrb[0].mxu0
      %2459 = vmatprep.mubr.bf16.mxu0 0
      %2460 = vmatmul.mubr.bf16.gmra.mrb[0].mxu0 %v2370
      %v2461 = vpop.f32.mrb[0].mxu0
      %v2462 = vadd.f32 0.0, %v2461
      %v2463 = vpop.f32.mrb[0].mxu0
      %v2464 = vpop.f32.mrb[0].mxu0
      %v2465 = vadd.f32 0.0, %v2464
      %v2466 = vpop.f32.mrb[0].mxu0
      %2467 = vmatprep.mubr.bf16.mxu0 0
      %2468 = vmatmul.mubr.bf16.gmra.mrb[0].mxu0 %v2373
      %v2469 = vpop.f32.mrb[0].mxu0
      %v2470 = vadd.f32 0.0, %v2469
      %v2471 = vpop.f32.mrb[0].mxu0
      %v2472 = vpop.f32.mrb[0].mxu0
      %v2473 = vadd.f32 0.0, %v2472
      %v2474 = vpop.f32.mrb[0].mxu0
      %2475 = vmatprep.mubr.bf16.mxu0 0
      %2476 = vmatmul.mubr.bf16.gmra.mrb[0].mxu0 %v2376
      %v2477 = vpop.f32.mrb[0].mxu0
      %v2478 = vadd.f32 0.0, %v2477
      %v2479 = vpop.f32.mrb[0].mxu0
      %v2480 = vpop.f32.mrb[0].mxu0
      %v2481 = vadd.f32 0.0, %v2480
      %v2482 = vpop.f32.mrb[0].mxu0
      %2483 = vmatprep.mubr.bf16.mxu0 0
      %2484 = vmatmul.mubr.bf16.gmra.mrb[0].mxu0 %v2379
      %v2485 = vpop.f32.mrb[0].mxu0
      %v2486 = vadd.f32 0.0, %v2485
      %v2487 = vpop.f32.mrb[0].mxu0
      %v2488 = vpop.f32.mrb[0].mxu0
      %v2489 = vadd.f32 0.0, %v2488
      %v2490 = vpop.f32.mrb[0].mxu0
      %2491 = vmatprep.mubr.bf16.mxu0 0
      %2492 = vmatmul.mubr.bf16.gmra.mrb[0].mxu0 %v2382
      %v2493 = vpop.f32.mrb[0].mxu0
      %v2494 = vadd.f32 0.0, %v2493
      %v2495 = vpop.f32.mrb[0].mxu0
      %v2496 = vpop.f32.mrb[0].mxu0
      %v2497 = vadd.f32 0.0, %v2496
      %v2498 = vpop.f32.mrb[0].mxu0
      %2499 = vdwg.mxu0
      %v2500 = vadd.f32 %v2258, %v2422
      %v2501 = vadd.f32 %v2259, %v2425
      %v2502 = vadd.f32 %v2260, %v2430
      %v2503 = vadd.f32 %v2261, %v2433
      %v2504 = vadd.f32 %v2262, %v2438
      %v2505 = vadd.f32 %v2263, %v2441
      %v2506 = vadd.f32 %v2264, %v2446
      %v2507 = vadd.f32 %v2265, %v2449
      %v2508 = vadd.f32 %v2266, %v2454
      %v2509 = vadd.f32 %v2267, %v2457
      %v2510 = vadd.f32 %v2268, %v2462
      %v2511 = vadd.f32 %v2269, %v2465
      %v2512 = vadd.f32 %v2270, %v2470
      %v2513 = vadd.f32 %v2271, %v2473
      %v2514 = vadd.f32 %v2272, %v2478
      %v2515 = vadd.f32 %v2273, %v2481
      %v2516 = vadd.f32 %v2274, %v2486
      %v2517 = vadd.f32 %v2275, %v2489
      %v2518 = vadd.f32 %v2276, %v2494
      %v2519 = vadd.f32 %v2277, %v2497
      %v2520 = vld [vmem:[%s2281] sm:$0xf]
      %v2521 = vld [vmem:[%s2281 + $0x4] sm:$0xf]
      %v2522 = vld [vmem:[%s2281 + $0x8] sm:$0x1]
      %v2523 = vld [vmem:[%s2281 + $0xc] sm:$0xf]
      %v2524 = vld [vmem:[%s2281 + $0x10] sm:$0xf]
      %v2525 = vld [vmem:[%s2281 + $0x14] sm:$0x1]
      %v2526 = vld [vmem:[%s2281 + $0x18] sm:$0xf]
      %v2527 = vld [vmem:[%s2281 + $0x1c] sm:$0xf]
      %v2528 = vld [vmem:[%s2281 + $0x20] sm:$0x1]
      %v2529 = vld [vmem:[%s2281 + $0x24] sm:$0xf]
      %v2530 = vld [vmem:[%s2281 + $0x28] sm:$0xf]
      %v2531 = vld [vmem:[%s2281 + $0x2c] sm:$0x1]
      %v2532 = vld [vmem:[%s2281 + $0x30] sm:$0xf]
      %v2533 = vld [vmem:[%s2281 + $0x34] sm:$0xf]
      %v2534 = vld [vmem:[%s2281 + $0x38] sm:$0x1]
      %v2535 = vld [vmem:[%s2281 + $0x3c] sm:$0xf]
      %v2536 = vld [vmem:[%s2281 + $0x40] sm:$0xf]
      %v2537 = vld [vmem:[%s2281 + $0x44] sm:$0x1]
      %v2538 = vld [vmem:[%s2281 + $0x48] sm:$0xf]
      %v2539 = vld [vmem:[%s2281 + $0x4c] sm:$0xf]
      %v2540 = vld [vmem:[%s2281 + $0x50] sm:$0x1]
      %v2541 = vld [vmem:[%s2281 + $0x54] sm:$0xf]
      %v2542 = vld [vmem:[%s2281 + $0x58] sm:$0xf]
      %v2543 = vld [vmem:[%s2281 + $0x5c] sm:$0x1]
      %v2544 = vld [vmem:[%s2281 + $0x60] sm:$0xf]
      %v2545 = vld [vmem:[%s2281 + $0x64] sm:$0xf]
      %v2546 = vld [vmem:[%s2281 + $0x68] sm:$0x1]
      %v2547 = vld [vmem:[%s2281 + $0x6c] sm:$0xf]
      %v2548 = vld [vmem:[%s2281 + $0x70] sm:$0xf]
      %v2549 = vld [vmem:[%s2281 + $0x74] sm:$0x1]
      %v2551 = vshrl.u32 %v2520, 16
      %v2553 = vrot.slane %v2551, 4
      %v2554 = vshll.u32 %v2520, 16
      %v2556 = vrot.slane %v2554, 5
      %v2557 = vor.u32 %v2553, %v2556
      %v2558 = vrot.slane %v2557, 4
      %v2560 = vshll.u32 %v2521, 16
      %v2562 = vrot.slane %v2560, 5
      %v2563 = vsel %vm342, %v2558, %v2562
      %v2564 = vshrl.u32 %v2521, 16
      %v2566 = vrot.slane %v2564, 4
      %v2567 = vor.u32 %v2566, %v2562
      %v2568 = vrot.slane %v2567, 4
      %v2570 = vshll.u32 %v2522, 16
      %v2572 = vrot.slane %v2570, 5
      %v2573 = vsel %vm342, %v2568, %v2572
      %v2575 = vshrl.u32 %v2523, 16
      %v2577 = vrot.slane %v2575, 4
      %v2578 = vshll.u32 %v2523, 16
      %v2580 = vrot.slane %v2578, 5
      %v2581 = vor.u32 %v2577, %v2580
      %v2582 = vrot.slane %v2581, 4
      %v2584 = vshll.u32 %v2524, 16
      %v2586 = vrot.slane %v2584, 5
      %v2587 = vsel %vm342, %v2582, %v2586
      %v2588 = vshrl.u32 %v2524, 16
      %v2590 = vrot.slane %v2588, 4
      %v2591 = vor.u32 %v2590, %v2586
      %v2592 = vrot.slane %v2591, 4
      %v2594 = vshll.u32 %v2525, 16
      %v2596 = vrot.slane %v2594, 5
      %v2597 = vsel %vm342, %v2592, %v2596
      %v2599 = vshrl.u32 %v2526, 16
      %v2601 = vrot.slane %v2599, 4
      %v2602 = vshll.u32 %v2526, 16
      %v2604 = vrot.slane %v2602, 5
      %v2605 = vor.u32 %v2601, %v2604
      %v2606 = vrot.slane %v2605, 4
      %v2608 = vshll.u32 %v2527, 16
      %v2610 = vrot.slane %v2608, 5
      %v2611 = vsel %vm342, %v2606, %v2610
      %v2612 = vshrl.u32 %v2527, 16
      %v2614 = vrot.slane %v2612, 4
      %v2615 = vor.u32 %v2614, %v2610
      %v2616 = vrot.slane %v2615, 4
      %v2618 = vshll.u32 %v2528, 16
      %v2620 = vrot.slane %v2618, 5
      %v2621 = vsel %vm342, %v2616, %v2620
      %v2623 = vshrl.u32 %v2529, 16
      %v2625 = vrot.slane %v2623, 4
      %v2626 = vshll.u32 %v2529, 16
      %v2628 = vrot.slane %v2626, 5
      %v2629 = vor.u32 %v2625, %v2628
      %v2630 = vrot.slane %v2629, 4
      %v2632 = vshll.u32 %v2530, 16
      %v2634 = vrot.slane %v2632, 5
      %v2635 = vsel %vm342, %v2630, %v2634
      %v2636 = vshrl.u32 %v2530, 16
      %v2638 = vrot.slane %v2636, 4
      %v2639 = vor.u32 %v2638, %v2634
      %v2640 = vrot.slane %v2639, 4
      %v2642 = vshll.u32 %v2531, 16
      %v2644 = vrot.slane %v2642, 5
      %v2645 = vsel %vm342, %v2640, %v2644
      %v2647 = vshrl.u32 %v2532, 16
      %v2649 = vrot.slane %v2647, 4
      %v2650 = vshll.u32 %v2532, 16
      %v2652 = vrot.slane %v2650, 5
      %v2653 = vor.u32 %v2649, %v2652
      %v2654 = vrot.slane %v2653, 4
      %v2656 = vshll.u32 %v2533, 16
      %v2658 = vrot.slane %v2656, 5
      %v2659 = vsel %vm342, %v2654, %v2658
      %v2660 = vshrl.u32 %v2533, 16
      %v2662 = vrot.slane %v2660, 4
      %v2663 = vor.u32 %v2662, %v2658
      %v2664 = vrot.slane %v2663, 4
      %v2666 = vshll.u32 %v2534, 16
      %v2668 = vrot.slane %v2666, 5
      %v2669 = vsel %vm342, %v2664, %v2668
      %v2671 = vshrl.u32 %v2535, 16
      %v2673 = vrot.slane %v2671, 4
      %v2674 = vshll.u32 %v2535, 16
      %v2676 = vrot.slane %v2674, 5
      %v2677 = vor.u32 %v2673, %v2676
      %v2678 = vrot.slane %v2677, 4
      %v2680 = vshll.u32 %v2536, 16
      %v2682 = vrot.slane %v2680, 5
      %v2683 = vsel %vm342, %v2678, %v2682
      %v2684 = vshrl.u32 %v2536, 16
      %v2686 = vrot.slane %v2684, 4
      %v2687 = vor.u32 %v2686, %v2682
      %v2688 = vrot.slane %v2687, 4
      %v2690 = vshll.u32 %v2537, 16
      %v2692 = vrot.slane %v2690, 5
      %v2693 = vsel %vm342, %v2688, %v2692
      %v2695 = vshrl.u32 %v2538, 16
      %v2697 = vrot.slane %v2695, 4
      %v2698 = vshll.u32 %v2538, 16
      %v2700 = vrot.slane %v2698, 5
      %v2701 = vor.u32 %v2697, %v2700
      %v2702 = vrot.slane %v2701, 4
      %v2704 = vshll.u32 %v2539, 16
      %v2706 = vrot.slane %v2704, 5
      %v2707 = vsel %vm342, %v2702, %v2706
      %v2708 = vshrl.u32 %v2539, 16
      %v2710 = vrot.slane %v2708, 4
      %v2711 = vor.u32 %v2710, %v2706
      %v2712 = vrot.slane %v2711, 4
      %v2714 = vshll.u32 %v2540, 16
      %v2716 = vrot.slane %v2714, 5
      %v2717 = vsel %vm342, %v2712, %v2716
      %v2719 = vshrl.u32 %v2541, 16
      %v2721 = vrot.slane %v2719, 4
      %v2722 = vshll.u32 %v2541, 16
      %v2724 = vrot.slane %v2722, 5
      %v2725 = vor.u32 %v2721, %v2724
      %v2726 = vrot.slane %v2725, 4
      %v2728 = vshll.u32 %v2542, 16
      %v2730 = vrot.slane %v2728, 5
      %v2731 = vsel %vm342, %v2726, %v2730
      %v2732 = vshrl.u32 %v2542, 16
      %v2734 = vrot.slane %v2732, 4
      %v2735 = vor.u32 %v2734, %v2730
      %v2736 = vrot.slane %v2735, 4
      %v2738 = vshll.u32 %v2543, 16
      %v2740 = vrot.slane %v2738, 5
      %v2741 = vsel %vm342, %v2736, %v2740
      %v2743 = vshrl.u32 %v2544, 16
      %v2745 = vrot.slane %v2743, 4
      %v2746 = vshll.u32 %v2544, 16
      %v2748 = vrot.slane %v2746, 5
      %v2749 = vor.u32 %v2745, %v2748
      %v2750 = vrot.slane %v2749, 4
      %v2752 = vshll.u32 %v2545, 16
      %v2754 = vrot.slane %v2752, 5
      %v2755 = vsel %vm342, %v2750, %v2754
      %v2756 = vshrl.u32 %v2545, 16
      %v2758 = vrot.slane %v2756, 4
      %v2759 = vor.u32 %v2758, %v2754
      %v2760 = vrot.slane %v2759, 4
      %v2762 = vshll.u32 %v2546, 16
      %v2764 = vrot.slane %v2762, 5
      %v2765 = vsel %vm342, %v2760, %v2764
      %v2767 = vshrl.u32 %v2547, 16
      %v2769 = vrot.slane %v2767, 4
      %v2770 = vshll.u32 %v2547, 16
      %v2772 = vrot.slane %v2770, 5
      %v2773 = vor.u32 %v2769, %v2772
      %v2774 = vrot.slane %v2773, 4
      %v2776 = vshll.u32 %v2548, 16
      %v2778 = vrot.slane %v2776, 5
      %v2779 = vsel %vm342, %v2774, %v2778
      %v2780 = vshrl.u32 %v2548, 16
      %v2782 = vrot.slane %v2780, 4
      %v2783 = vor.u32 %v2782, %v2778
      %v2784 = vrot.slane %v2783, 4
      %v2786 = vshll.u32 %v2549, 16
      %v2788 = vrot.slane %v2786, 5
      %v2789 = vsel %vm342, %v2784, %v2788
      %s2790 = scalar_lea.vmem %s1, 14
      %v2791 = vld [vmem:[%s2790] sm:$0x3]
      %v2792 = vunpack.c.l.b16 %v2563
      %v2793 = vunpack.c.l.b16 %v2573
      %v2794 = vunpack.c.l.b16 %v2587
      %v2795 = vunpack.c.l.b16 %v2597
      %v2796 = vunpack.c.l.b16 %v2611
      %v2797 = vunpack.c.l.b16 %v2621
      %v2798 = vunpack.c.l.b16 %v2635
      %v2799 = vunpack.c.l.b16 %v2645
      %v2800 = vunpack.c.l.b16 %v2659
      %v2801 = vunpack.c.l.b16 %v2669
      %v2802 = vunpack.c.l.b16 %v2683
      %v2803 = vunpack.c.l.b16 %v2693
      %v2804 = vunpack.c.l.b16 %v2707
      %v2805 = vunpack.c.l.b16 %v2717
      %v2806 = vunpack.c.l.b16 %v2731
      %v2807 = vunpack.c.l.b16 %v2741
      %v2808 = vunpack.c.l.b16 %v2755
      %v2809 = vunpack.c.l.b16 %v2765
      %v2810 = vunpack.c.l.b16 %v2779
      %v2811 = vunpack.c.l.b16 %v2789
      %v2812 = vpack.c.b16 %v2793, %v2792
      %v2813 = vpack.c.b16 %v2795, %v2794
      %v2814 = vpack.c.b16 %v2797, %v2796
      %v2815 = vpack.c.b16 %v2799, %v2798
      %v2816 = vpack.c.b16 %v2801, %v2800
      %v2817 = vpack.c.b16 %v2803, %v2802
      %v2818 = vpack.c.b16 %v2805, %v2804
      %v2819 = vpack.c.b16 %v2807, %v2806
      %v2820 = vpack.c.b16 %v2809, %v2808
      %v2821 = vpack.c.b16 %v2811, %v2810
      %v2823 = vsel %vm615, %v2812, 0
      %v2826 = vsel %vm615, %v2813, 0
      %v2829 = vsel %vm615, %v2814, 0
      %v2832 = vsel %vm615, %v2815, 0
      %v2835 = vsel %vm615, %v2816, 0
      %v2838 = vsel %vm615, %v2817, 0
      %v2841 = vsel %vm615, %v2818, 0
      %v2844 = vsel %vm615, %v2819, 0
      %v2847 = vsel %vm615, %v2820, 0
      %v2850 = vsel %vm615, %v2821, 0
      %v2853 = vsel %vm646, %v2791, 0
      %2855 = vmatprep.subr.bf16.mxu0 0
      %2856 = vmatpush1.bf16.msra.mxu0 %v2853
      %2857 = vmatprep.subr.bf16.mxu0 0
      %2858 = vmatpush1.bf16.msra.mxu0 0
      %2859 = vmatprep.subr.bf16.mxu0 0
      %2860 = vmatpush1.bf16.msra.mxu0 0
      %2861 = vmatprep.subr.bf16.mxu0 0
      %2862 = vmatpush1.bf16.msra.mxu0 0
      %2863 = vmatprep.subr.bf16.mxu0 0
      %2864 = vmatpush1.bf16.msra.mxu0 0
      %2865 = vmatprep.subr.bf16.mxu0 0
      %2866 = vmatpush1.bf16.msra.mxu0 0
      %2867 = vmatprep.subr.bf16.mxu0 0
      %2868 = vmatpush1.bf16.msra.mxu0 0
      %2869 = vmatprep.subr.bf16.mxu0 0
      %2870 = vmatpush1.bf16.msra.mxu0 0
      %2871 = vmatprep.subr.bf16.mxu0 0
      %2872 = vmatpush1.bf16.msra.mxu0 0
      %2873 = vmatprep.subr.bf16.mxu0 0
      %2874 = vmatpush1.bf16.msra.mxu0 0
      %2875 = vmatprep.subr.bf16.mxu0 0
      %2876 = vmatpush1.bf16.msra.mxu0 0
      %2877 = vmatprep.subr.bf16.mxu0 0
      %2878 = vmatpush1.bf16.msra.mxu0 0
      %2879 = vmatprep.subr.bf16.mxu0 0
      %2880 = vmatpush1.bf16.msra.mxu0 0
      %2881 = vmatprep.subr.bf16.mxu0 0
      %2882 = vmatpush1.bf16.msra.mxu0 0
      %2883 = vmatprep.subr.bf16.mxu0 0
      %2884 = vmatpush1.bf16.msra.mxu0 0
      %2885 = vmatprep.subr.bf16.mxu0 0
      %2886 = vmatpush1.bf16.msra.mxu0 0
      %2887 = vmatprep.mubr.bf16.mxu0 0
      %2888 = vmatmul.mubr.bf16.gmra.mrb[0].mxu0 %v2823
      %v2889 = vpop.f32.mrb[0].mxu0
      %v2890 = vadd.f32 0.0, %v2889
      %v2891 = vpop.f32.mrb[0].mxu0
      %v2892 = vpop.f32.mrb[0].mxu0
      %v2893 = vadd.f32 0.0, %v2892
      %v2894 = vpop.f32.mrb[0].mxu0
      %2895 = vmatprep.mubr.bf16.mxu0 0
      %2896 = vmatmul.mubr.bf16.gmra.mrb[0].mxu0 %v2826
      %v2897 = vpop.f32.mrb[0].mxu0
      %v2898 = vadd.f32 0.0, %v2897
      %v2899 = vpop.f32.mrb[0].mxu0
      %v2900 = vpop.f32.mrb[0].mxu0
      %v2901 = vadd.f32 0.0, %v2900
      %v2902 = vpop.f32.mrb[0].mxu0
      %2903 = vmatprep.mubr.bf16.mxu0 0
      %2904 = vmatmul.mubr.bf16.gmra.mrb[0].mxu0 %v2829
      %v2905 = vpop.f32.mrb[0].mxu0
      %v2906 = vadd.f32 0.0, %v2905
      %v2907 = vpop.f32.mrb[0].mxu0
      %v2908 = vpop.f32.mrb[0].mxu0
      %v2909 = vadd.f32 0.0, %v2908
      %v2910 = vpop.f32.mrb[0].mxu0
      %2911 = vmatprep.mubr.bf16.mxu0 0
      %2912 = vmatmul.mubr.bf16.gmra.mrb[0].mxu0 %v2832
      %v2913 = vpop.f32.mrb[0].mxu0
      %v2914 = vadd.f32 0.0, %v2913
      %v2915 = vpop.f32.mrb[0].mxu0
      %v2916 = vpop.f32.mrb[0].mxu0
      %v2917 = vadd.f32 0.0, %v2916
      %v2918 = vpop.f32.mrb[0].mxu0
      %2919 = vmatprep.mubr.bf16.mxu0 0
      %2920 = vmatmul.mubr.bf16.gmra.mrb[0].mxu0 %v2835
      %v2921 = vpop.f32.mrb[0].mxu0
      %v2922 = vadd.f32 0.0, %v2921
      %v2923 = vpop.f32.mrb[0].mxu0
      %v2924 = vpop.f32.mrb[0].mxu0
      %v2925 = vadd.f32 0.0, %v2924
      %v2926 = vpop.f32.mrb[0].mxu0
      %2927 = vmatprep.mubr.bf16.mxu0 0
      %2928 = vmatmul.mubr.bf16.gmra.mrb[0].mxu0 %v2838
      %v2929 = vpop.f32.mrb[0].mxu0
      %v2930 = vadd.f32 0.0, %v2929
      %v2931 = vpop.f32.mrb[0].mxu0
      %v2932 = vpop.f32.mrb[0].mxu0
      %v2933 = vadd.f32 0.0, %v2932
      %v2934 = vpop.f32.mrb[0].mxu0
      %2935 = vmatprep.mubr.bf16.mxu0 0
      %2936 = vmatmul.mubr.bf16.gmra.mrb[0].mxu0 %v2841
      %v2937 = vpop.f32.mrb[0].mxu0
      %v2938 = vadd.f32 0.0, %v2937
      %v2939 = vpop.f32.mrb[0].mxu0
      %v2940 = vpop.f32.mrb[0].mxu0
      %v2941 = vadd.f32 0.0, %v2940
      %v2942 = vpop.f32.mrb[0].mxu0
      %2943 = vmatprep.mubr.bf16.mxu0 0
      %2944 = vmatmul.mubr.bf16.gmra.mrb[0].mxu0 %v2844
      %v2945 = vpop.f32.mrb[0].mxu0
      %v2946 = vadd.f32 0.0, %v2945
      %v2947 = vpop.f32.mrb[0].mxu0
      %v2948 = vpop.f32.mrb[0].mxu0
      %v2949 = vadd.f32 0.0, %v2948
      %v2950 = vpop.f32.mrb[0].mxu0
      %2951 = vmatprep.mubr.bf16.mxu0 0
      %2952 = vmatmul.mubr.bf16.gmra.mrb[0].mxu0 %v2847
      %v2953 = vpop.f32.mrb[0].mxu0
      %v2954 = vadd.f32 0.0, %v2953
      %v2955 = vpop.f32.mrb[0].mxu0
      %v2956 = vpop.f32.mrb[0].mxu0
      %v2957 = vadd.f32 0.0, %v2956
      %v2958 = vpop.f32.mrb[0].mxu0
      %2959 = vmatprep.mubr.bf16.mxu0 0
      %2960 = vmatmul.mubr.bf16.gmra.mrb[0].mxu0 %v2850
      %v2961 = vpop.f32.mrb[0].mxu0
      %v2962 = vadd.f32 0.0, %v2961
      %v2963 = vpop.f32.mrb[0].mxu0
      %v2964 = vpop.f32.mrb[0].mxu0
      %v2965 = vadd.f32 0.0, %v2964
      %v2966 = vpop.f32.mrb[0].mxu0
      %2967 = vdwg.mxu0
      %v2968 = vadd.f32 %v2500, %v2890
      %v2969 = vadd.f32 %v2501, %v2893
      %v2970 = vadd.f32 %v2502, %v2898
      %v2971 = vadd.f32 %v2503, %v2901
      %v2972 = vadd.f32 %v2504, %v2906
      %v2973 = vadd.f32 %v2505, %v2909
      %v2974 = vadd.f32 %v2506, %v2914
      %v2975 = vadd.f32 %v2507, %v2917
      %v2976 = vadd.f32 %v2508, %v2922
      %v2977 = vadd.f32 %v2509, %v2925
      %v2978 = vadd.f32 %v2510, %v2930
      %v2979 = vadd.f32 %v2511, %v2933
      %v2980 = vadd.f32 %v2512, %v2938
      %v2981 = vadd.f32 %v2513, %v2941
      %v2982 = vadd.f32 %v2514, %v2946
      %v2983 = vadd.f32 %v2515, %v2949
      %v2984 = vadd.f32 %v2516, %v2954
      %v2985 = vadd.f32 %v2517, %v2957
      %v2986 = vadd.f32 %v2518, %v2962
      %v2987 = vadd.f32 %v2519, %v2965
      %v2988 = vld [vmem:[%s2281] sm:$0xe]
      %v2989 = vld [vmem:[%s2281 + $0xc] sm:$0xe]
      %v2990 = vld [vmem:[%s2281 + $0x18] sm:$0xe]
      %v2991 = vld [vmem:[%s2281 + $0x24] sm:$0xe]
      %v2992 = vld [vmem:[%s2281 + $0x30] sm:$0xe]
      %v2993 = vld [vmem:[%s2281 + $0x3c] sm:$0xe]
      %v2994 = vld [vmem:[%s2281 + $0x48] sm:$0xe]
      %v2995 = vld [vmem:[%s2281 + $0x54] sm:$0xe]
      %v2996 = vld [vmem:[%s2281 + $0x60] sm:$0xe]
      %v2997 = vld [vmem:[%s2281 + $0x6c] sm:$0xe]
      %v3028 = vrot.slane %v2988, 5
      %v3029 = vrot.slane %v3028, 4
      %v3030 = vrot.slane %v2521, 5
      %v3031 = vsel %vm991, %v3029, %v3030
      %v3032 = vrot.slane %v3030, 4
      %v3033 = vrot.slane %v2522, 5
      %v3034 = vsel %vm991, %v3032, %v3033
      %v3035 = vrot.slane %v2989, 5
      %v3036 = vrot.slane %v3035, 4
      %v3037 = vrot.slane %v2524, 5
      %v3038 = vsel %vm991, %v3036, %v3037
      %v3039 = vrot.slane %v3037, 4
      %v3040 = vrot.slane %v2525, 5
      %v3041 = vsel %vm991, %v3039, %v3040
      %v3042 = vrot.slane %v2990, 5
      %v3043 = vrot.slane %v3042, 4
      %v3044 = vrot.slane %v2527, 5
      %v3045 = vsel %vm991, %v3043, %v3044
      %v3046 = vrot.slane %v3044, 4
      %v3047 = vrot.slane %v2528, 5
      %v3048 = vsel %vm991, %v3046, %v3047
      %v3049 = vrot.slane %v2991, 5
      %v3050 = vrot.slane %v3049, 4
      %v3051 = vrot.slane %v2530, 5
      %v3052 = vsel %vm991, %v3050, %v3051
      %v3053 = vrot.slane %v3051, 4
      %v3054 = vrot.slane %v2531, 5
      %v3055 = vsel %vm991, %v3053, %v3054
      %v3056 = vrot.slane %v2992, 5
      %v3057 = vrot.slane %v3056, 4
      %v3058 = vrot.slane %v2533, 5
      %v3059 = vsel %vm991, %v3057, %v3058
      %v3060 = vrot.slane %v3058, 4
      %v3061 = vrot.slane %v2534, 5
      %v3062 = vsel %vm991, %v3060, %v3061
      %v3063 = vrot.slane %v2993, 5
      %v3064 = vrot.slane %v3063, 4
      %v3065 = vrot.slane %v2536, 5
      %v3066 = vsel %vm991, %v3064, %v3065
      %v3067 = vrot.slane %v3065, 4
      %v3068 = vrot.slane %v2537, 5
      %v3069 = vsel %vm991, %v3067, %v3068
      %v3070 = vrot.slane %v2994, 5
      %v3071 = vrot.slane %v3070, 4
      %v3072 = vrot.slane %v2539, 5
      %v3073 = vsel %vm991, %v3071, %v3072
      %v3074 = vrot.slane %v3072, 4
      %v3075 = vrot.slane %v2540, 5
      %v3076 = vsel %vm991, %v3074, %v3075
      %v3077 = vrot.slane %v2995, 5
      %v3078 = vrot.slane %v3077, 4
      %v3079 = vrot.slane %v2542, 5
      %v3080 = vsel %vm991, %v3078, %v3079
      %v3081 = vrot.slane %v3079, 4
      %v3082 = vrot.slane %v2543, 5
      %v3083 = vsel %vm991, %v3081, %v3082
      %v3084 = vrot.slane %v2996, 5
      %v3085 = vrot.slane %v3084, 4
      %v3086 = vrot.slane %v2545, 5
      %v3087 = vsel %vm991, %v3085, %v3086
      %v3088 = vrot.slane %v3086, 4
      %v3089 = vrot.slane %v2546, 5
      %v3090 = vsel %vm991, %v3088, %v3089
      %v3091 = vrot.slane %v2997, 5
      %v3092 = vrot.slane %v3091, 4
      %v3093 = vrot.slane %v2548, 5
      %v3094 = vsel %vm991, %v3092, %v3093
      %v3095 = vrot.slane %v3093, 4
      %v3096 = vrot.slane %v2549, 5
      %v3097 = vsel %vm991, %v3095, %v3096
      %s3098 = scalar_lea.vmem %s1, 16
      %v3099 = vld [vmem:[%s3098] sm:$0x3]
      %v3100 = vunpack.c.l.b16 %v3031
      %v3101 = vunpack.c.l.b16 %v3034
      %v3102 = vunpack.c.l.b16 %v3038
      %v3103 = vunpack.c.l.b16 %v3041
      %v3104 = vunpack.c.l.b16 %v3045
      %v3105 = vunpack.c.l.b16 %v3048
      %v3106 = vunpack.c.l.b16 %v3052
      %v3107 = vunpack.c.l.b16 %v3055
      %v3108 = vunpack.c.l.b16 %v3059
      %v3109 = vunpack.c.l.b16 %v3062
      %v3110 = vunpack.c.l.b16 %v3066
      %v3111 = vunpack.c.l.b16 %v3069
      %v3112 = vunpack.c.l.b16 %v3073
      %v3113 = vunpack.c.l.b16 %v3076
      %v3114 = vunpack.c.l.b16 %v3080
      %v3115 = vunpack.c.l.b16 %v3083
      %v3116 = vunpack.c.l.b16 %v3087
      %v3117 = vunpack.c.l.b16 %v3090
      %v3118 = vunpack.c.l.b16 %v3094
      %v3119 = vunpack.c.l.b16 %v3097
      %v3120 = vpack.c.b16 %v3101, %v3100
      %v3121 = vpack.c.b16 %v3103, %v3102
      %v3122 = vpack.c.b16 %v3105, %v3104
      %v3123 = vpack.c.b16 %v3107, %v3106
      %v3124 = vpack.c.b16 %v3109, %v3108
      %v3125 = vpack.c.b16 %v3111, %v3110
      %v3126 = vpack.c.b16 %v3113, %v3112
      %v3127 = vpack.c.b16 %v3115, %v3114
      %v3128 = vpack.c.b16 %v3117, %v3116
      %v3129 = vpack.c.b16 %v3119, %v3118
      %v3131 = vsel %vm615, %v3120, 0
      %v3134 = vsel %vm615, %v3121, 0
      %v3137 = vsel %vm615, %v3122, 0
      %v3140 = vsel %vm615, %v3123, 0
      %v3143 = vsel %vm615, %v3124, 0
      %v3146 = vsel %vm615, %v3125, 0
      %v3149 = vsel %vm615, %v3126, 0
      %v3152 = vsel %vm615, %v3127, 0
      %v3155 = vsel %vm615, %v3128, 0
      %v3158 = vsel %vm615, %v3129, 0
      %v3161 = vsel %vm646, %v3099, 0
      %3163 = vmatprep.subr.bf16.mxu0 0
      %3164 = vmatpush1.bf16.msra.mxu0 %v3161
      %3165 = vmatprep.subr.bf16.mxu0 0
      %3166 = vmatpush1.bf16.msra.mxu0 0
      %3167 = vmatprep.subr.bf16.mxu0 0
      %3168 = vmatpush1.bf16.msra.mxu0 0
      %3169 = vmatprep.subr.bf16.mxu0 0
      %3170 = vmatpush1.bf16.msra.mxu0 0
      %3171 = vmatprep.subr.bf16.mxu0 0
      %3172 = vmatpush1.bf16.msra.mxu0 0
      %3173 = vmatprep.subr.bf16.mxu0 0
      %3174 = vmatpush1.bf16.msra.mxu0 0
      %3175 = vmatprep.subr.bf16.mxu0 0
      %3176 = vmatpush1.bf16.msra.mxu0 0
      %3177 = vmatprep.subr.bf16.mxu0 0
      %3178 = vmatpush1.bf16.msra.mxu0 0
      %3179 = vmatprep.subr.bf16.mxu0 0
      %3180 = vmatpush1.bf16.msra.mxu0 0
      %3181 = vmatprep.subr.bf16.mxu0 0
      %3182 = vmatpush1.bf16.msra.mxu0 0
      %3183 = vmatprep.subr.bf16.mxu0 0
      %3184 = vmatpush1.bf16.msra.mxu0 0
      %3185 = vmatprep.subr.bf16.mxu0 0
      %3186 = vmatpush1.bf16.msra.mxu0 0
      %3187 = vmatprep.subr.bf16.mxu0 0
      %3188 = vmatpush1.bf16.msra.mxu0 0
      %3189 = vmatprep.subr.bf16.mxu0 0
      %3190 = vmatpush1.bf16.msra.mxu0 0
      %3191 = vmatprep.subr.bf16.mxu0 0
      %3192 = vmatpush1.bf16.msra.mxu0 0
      %3193 = vmatprep.subr.bf16.mxu0 0
      %3194 = vmatpush1.bf16.msra.mxu0 0
      %3195 = vmatprep.mubr.bf16.mxu0 0
      %3196 = vmatmul.mubr.bf16.gmra.mrb[0].mxu0 %v3131
      %v3197 = vpop.f32.mrb[0].mxu0
      %v3198 = vadd.f32 0.0, %v3197
      %v3199 = vpop.f32.mrb[0].mxu0
      %v3200 = vpop.f32.mrb[0].mxu0
      %v3201 = vadd.f32 0.0, %v3200
      %v3202 = vpop.f32.mrb[0].mxu0
      %3203 = vmatprep.mubr.bf16.mxu0 0
      %3204 = vmatmul.mubr.bf16.gmra.mrb[0].mxu0 %v3134
      %v3205 = vpop.f32.mrb[0].mxu0
      %v3206 = vadd.f32 0.0, %v3205
      %v3207 = vpop.f32.mrb[0].mxu0
      %v3208 = vpop.f32.mrb[0].mxu0
      %v3209 = vadd.f32 0.0, %v3208
      %v3210 = vpop.f32.mrb[0].mxu0
      %3211 = vmatprep.mubr.bf16.mxu0 0
      %3212 = vmatmul.mubr.bf16.gmra.mrb[0].mxu0 %v3137
      %v3213 = vpop.f32.mrb[0].mxu0
      %v3214 = vadd.f32 0.0, %v3213
      %v3215 = vpop.f32.mrb[0].mxu0
      %v3216 = vpop.f32.mrb[0].mxu0
      %v3217 = vadd.f32 0.0, %v3216
      %v3218 = vpop.f32.mrb[0].mxu0
      %3219 = vmatprep.mubr.bf16.mxu0 0
      %3220 = vmatmul.mubr.bf16.gmra.mrb[0].mxu0 %v3140
      %v3221 = vpop.f32.mrb[0].mxu0
      %v3222 = vadd.f32 0.0, %v3221
      %v3223 = vpop.f32.mrb[0].mxu0
      %v3224 = vpop.f32.mrb[0].mxu0
      %v3225 = vadd.f32 0.0, %v3224
      %v3226 = vpop.f32.mrb[0].mxu0
      %3227 = vmatprep.mubr.bf16.mxu0 0
      %3228 = vmatmul.mubr.bf16.gmra.mrb[0].mxu0 %v3143
      %v3229 = vpop.f32.mrb[0].mxu0
      %v3230 = vadd.f32 0.0, %v3229
      %v3231 = vpop.f32.mrb[0].mxu0
      %v3232 = vpop.f32.mrb[0].mxu0
      %v3233 = vadd.f32 0.0, %v3232
      %v3234 = vpop.f32.mrb[0].mxu0
      %3235 = vmatprep.mubr.bf16.mxu0 0
      %3236 = vmatmul.mubr.bf16.gmra.mrb[0].mxu0 %v3146
      %v3237 = vpop.f32.mrb[0].mxu0
      %v3238 = vadd.f32 0.0, %v3237
      %v3239 = vpop.f32.mrb[0].mxu0
      %v3240 = vpop.f32.mrb[0].mxu0
      %v3241 = vadd.f32 0.0, %v3240
      %v3242 = vpop.f32.mrb[0].mxu0
      %3243 = vmatprep.mubr.bf16.mxu0 0
      %3244 = vmatmul.mubr.bf16.gmra.mrb[0].mxu0 %v3149
      %v3245 = vpop.f32.mrb[0].mxu0
      %v3246 = vadd.f32 0.0, %v3245
      %v3247 = vpop.f32.mrb[0].mxu0
      %v3248 = vpop.f32.mrb[0].mxu0
      %v3249 = vadd.f32 0.0, %v3248
      %v3250 = vpop.f32.mrb[0].mxu0
      %3251 = vmatprep.mubr.bf16.mxu0 0
      %3252 = vmatmul.mubr.bf16.gmra.mrb[0].mxu0 %v3152
      %v3253 = vpop.f32.mrb[0].mxu0
      %v3254 = vadd.f32 0.0, %v3253
      %v3255 = vpop.f32.mrb[0].mxu0
      %v3256 = vpop.f32.mrb[0].mxu0
      %v3257 = vadd.f32 0.0, %v3256
      %v3258 = vpop.f32.mrb[0].mxu0
      %3259 = vmatprep.mubr.bf16.mxu0 0
      %3260 = vmatmul.mubr.bf16.gmra.mrb[0].mxu0 %v3155
      %v3261 = vpop.f32.mrb[0].mxu0
      %v3262 = vadd.f32 0.0, %v3261
      %v3263 = vpop.f32.mrb[0].mxu0
      %v3264 = vpop.f32.mrb[0].mxu0
      %v3265 = vadd.f32 0.0, %v3264
      %v3266 = vpop.f32.mrb[0].mxu0
      %3267 = vmatprep.mubr.bf16.mxu0 0
      %3268 = vmatmul.mubr.bf16.gmra.mrb[0].mxu0 %v3158
      %v3269 = vpop.f32.mrb[0].mxu0
      %v3270 = vadd.f32 0.0, %v3269
      %v3271 = vpop.f32.mrb[0].mxu0
      %v3272 = vpop.f32.mrb[0].mxu0
      %v3273 = vadd.f32 0.0, %v3272
      %v3274 = vpop.f32.mrb[0].mxu0
      %3275 = vdwg.mxu0
      %v3276 = vadd.f32 %v2968, %v3198
      %v3277 = vadd.f32 %v2969, %v3201
      %v3278 = vadd.f32 %v2970, %v3206
      %v3279 = vadd.f32 %v2971, %v3209
      %v3280 = vadd.f32 %v2972, %v3214
      %v3281 = vadd.f32 %v2973, %v3217
      %v3282 = vadd.f32 %v2974, %v3222
      %v3283 = vadd.f32 %v2975, %v3225
      %v3284 = vadd.f32 %v2976, %v3230
      %v3285 = vadd.f32 %v2977, %v3233
      %v3286 = vadd.f32 %v2978, %v3238
      %v3287 = vadd.f32 %v2979, %v3241
      %v3288 = vadd.f32 %v2980, %v3246
      %v3289 = vadd.f32 %v2981, %v3249
      %v3290 = vadd.f32 %v2982, %v3254
      %v3291 = vadd.f32 %v2983, %v3257
      %v3292 = vadd.f32 %v2984, %v3262
      %v3293 = vadd.f32 %v2985, %v3265
      %v3294 = vadd.f32 %v2986, %v3270
      %v3295 = vadd.f32 %v2987, %v3273
      %v3296 = vld [vmem:[%s2] sm:$0x1]
      %v3298 = vlaneseq
      %v3299 = vshrl.u32 %v3298, 7
      %v3300 = vsub.s32 0, %v3299
      %v3301 = vrot.slane %v3296, %v3300
      %v3303 = vadd.f32 %v3276, %v3301
      %v3304 = vadd.f32 %v3277, %v3301
      %v3305 = vadd.f32 %v3278, %v3301
      %v3306 = vadd.f32 %v3279, %v3301
      %v3307 = vadd.f32 %v3280, %v3301
      %v3308 = vadd.f32 %v3281, %v3301
      %v3309 = vadd.f32 %v3282, %v3301
      %v3310 = vadd.f32 %v3283, %v3301
      %v3311 = vadd.f32 %v3284, %v3301
      %v3312 = vadd.f32 %v3285, %v3301
      %v3313 = vadd.f32 %v3286, %v3301
      %v3314 = vadd.f32 %v3287, %v3301
      %v3315 = vadd.f32 %v3288, %v3301
      %v3316 = vadd.f32 %v3289, %v3301
      %v3317 = vadd.f32 %v3290, %v3301
      %v3318 = vadd.f32 %v3291, %v3301
      %v3319 = vadd.f32 %v3292, %v3301
      %v3320 = vadd.f32 %v3293, %v3301
      %v3321 = vadd.f32 %v3294, %v3301
      %v3322 = vadd.f32 %v3295, %v3301
      %v3323 = vmax.f32 %v3303, 0.0
      %v3324 = vmax.f32 %v3304, 0.0
      %v3325 = vmax.f32 %v3305, 0.0
      %v3326 = vmax.f32 %v3306, 0.0
      %v3327 = vmax.f32 %v3307, 0.0
      %v3328 = vmax.f32 %v3308, 0.0
      %v3329 = vmax.f32 %v3309, 0.0
      %v3330 = vmax.f32 %v3310, 0.0
      %v3331 = vmax.f32 %v3311, 0.0
      %v3332 = vmax.f32 %v3312, 0.0
      %v3333 = vmax.f32 %v3313, 0.0
      %v3334 = vmax.f32 %v3314, 0.0
      %v3335 = vmax.f32 %v3315, 0.0
      %v3336 = vmax.f32 %v3316, 0.0
      %v3337 = vmax.f32 %v3317, 0.0
      %v3338 = vmax.f32 %v3318, 0.0
      %v3339 = vmax.f32 %v3319, 0.0
      %v3340 = vmax.f32 %v3320, 0.0
      %v3341 = vmax.f32 %v3321, 0.0
      %v3342 = vmax.f32 %v3322, 0.0
      %vm3343 = vcmask 57344
      %vm3344 = vsmask.f32 256
      %vm3345 = vmand %vm3343, %vm3344
      %v3346 = vld [vmem:[#allocation2] sm:$0x1]
      %v3347 = vsel %vm3345, 0, %v3346
      %3348 = vst [vmem:[#allocation2] sm:$0x1] %v3347
      %v3349 = vld [vmem:[#allocation2 + $0xc] sm:$0x1]
      %v3350 = vsel %vm3345, 0, %v3349
      %3351 = vst [vmem:[#allocation2 + $0xc] sm:$0x1] %v3350
      %v3352 = vld [vmem:[#allocation2 + $0x18] sm:$0x1]
      %v3353 = vsel %vm3345, 0, %v3352
      %3354 = vst [vmem:[#allocation2 + $0x18] sm:$0x1] %v3353
      %v3355 = vld [vmem:[#allocation2 + $0x24] sm:$0x1]
      %v3356 = vsel %vm3345, 0, %v3355
      %3357 = vst [vmem:[#allocation2 + $0x24] sm:$0x1] %v3356
      %v3358 = vld [vmem:[#allocation2 + $0x30] sm:$0x1]
      %v3359 = vsel %vm3345, 0, %v3358
      %3360 = vst [vmem:[#allocation2 + $0x30] sm:$0x1] %v3359
      %v3361 = vld [vmem:[#allocation2 + $0x3c] sm:$0x1]
      %v3362 = vsel %vm3345, 0, %v3361
      %3363 = vst [vmem:[#allocation2 + $0x3c] sm:$0x1] %v3362
      %v3364 = vld [vmem:[#allocation2 + $0x48] sm:$0x1]
      %v3365 = vsel %vm3345, 0, %v3364
      %3366 = vst [vmem:[#allocation2 + $0x48] sm:$0x1] %v3365
      %v3367 = vld [vmem:[#allocation2 + $0x54] sm:$0x1]
      %v3368 = vsel %vm3345, 0, %v3367
      %3369 = vst [vmem:[#allocation2 + $0x54] sm:$0x1] %v3368
      %v3370 = vld [vmem:[#allocation2 + $0x60] sm:$0x1]
      %v3371 = vsel %vm3345, 0, %v3370
      %3372 = vst [vmem:[#allocation2 + $0x60] sm:$0x1] %v3371
      %v3373 = vld [vmem:[#allocation2 + $0x6c] sm:$0x1]
      %v3374 = vsel %vm3345, 0, %v3373
      %3375 = vst [vmem:[#allocation2 + $0x6c] sm:$0x1] %v3374
      %vm3376 = vsmask.f32 7938
      %vm3377 = vmand %vm3343, %vm3376
      %v3378 = vld [vmem:[#allocation2 + $0x8] sm:$0x1]
      %v3379 = vsel %vm3377, 0, %v3378
      %3380 = vst [vmem:[#allocation2 + $0x8] sm:$0x1] %v3379
      %v3381 = vld [vmem:[#allocation2 + $0x14] sm:$0x1]
      %v3382 = vsel %vm3377, 0, %v3381
      %3383 = vst [vmem:[#allocation2 + $0x14] sm:$0x1] %v3382
      %v3384 = vld [vmem:[#allocation2 + $0x20] sm:$0x1]
      %v3385 = vsel %vm3377, 0, %v3384
      %3386 = vst [vmem:[#allocation2 + $0x20] sm:$0x1] %v3385
      %v3387 = vld [vmem:[#allocation2 + $0x2c] sm:$0x1]
      %v3388 = vsel %vm3377, 0, %v3387
      %3389 = vst [vmem:[#allocation2 + $0x2c] sm:$0x1] %v3388
      %v3390 = vld [vmem:[#allocation2 + $0x38] sm:$0x1]
      %v3391 = vsel %vm3377, 0, %v3390
      %3392 = vst [vmem:[#allocation2 + $0x38] sm:$0x1] %v3391
      %v3393 = vld [vmem:[#allocation2 + $0x44] sm:$0x1]
      %v3394 = vsel %vm3377, 0, %v3393
      %3395 = vst [vmem:[#allocation2 + $0x44] sm:$0x1] %v3394
      %v3396 = vld [vmem:[#allocation2 + $0x50] sm:$0x1]
      %v3397 = vsel %vm3377, 0, %v3396
      %3398 = vst [vmem:[#allocation2 + $0x50] sm:$0x1] %v3397
      %v3399 = vld [vmem:[#allocation2 + $0x5c] sm:$0x1]
      %v3400 = vsel %vm3377, 0, %v3399
      %3401 = vst [vmem:[#allocation2 + $0x5c] sm:$0x1] %v3400
      %v3402 = vld [vmem:[#allocation2 + $0x68] sm:$0x1]
      %v3403 = vsel %vm3377, 0, %v3402
      %3404 = vst [vmem:[#allocation2 + $0x68] sm:$0x1] %v3403
      %v3405 = vld [vmem:[#allocation2 + $0x74] sm:$0x1]
      %v3406 = vsel %vm3377, 0, %v3405
      %3407 = vst [vmem:[#allocation2 + $0x74] sm:$0x1] %v3406
      %v3408 = vpack.c.bf16 %v3324, %v3323
      %v3409 = vpack.c.bf16 %v3326, %v3325
      %v3410 = vpack.c.bf16 %v3328, %v3327
      %v3411 = vpack.c.bf16 %v3330, %v3329
      %v3412 = vpack.c.bf16 %v3332, %v3331
      %v3413 = vpack.c.bf16 %v3334, %v3333
      %v3414 = vpack.c.bf16 %v3336, %v3335
      %v3415 = vpack.c.bf16 %v3338, %v3337
      %v3416 = vpack.c.bf16 %v3340, %v3339
      %v3417 = vpack.c.bf16 %v3342, %v3341
      %v3428 = vunpack.c.l.b16 %v3408
      %v3429 = vunpack.c.h.b16 %v3408
      %v3430 = vunpack.c.l.b16 %v3409
      %v3431 = vunpack.c.h.b16 %v3409
      %v3432 = vunpack.c.l.b16 %v3410
      %v3433 = vunpack.c.h.b16 %v3410
      %v3434 = vunpack.c.l.b16 %v3411
      %v3435 = vunpack.c.h.b16 %v3411
      %v3436 = vunpack.c.l.b16 %v3412
      %v3437 = vunpack.c.h.b16 %v3412
      %v3438 = vunpack.c.l.b16 %v3413
      %v3439 = vunpack.c.h.b16 %v3413
      %v3440 = vunpack.c.l.b16 %v3414
      %v3441 = vunpack.c.h.b16 %v3414
      %v3442 = vunpack.c.l.b16 %v3415
      %v3443 = vunpack.c.h.b16 %v3415
      %v3444 = vunpack.c.l.b16 %v3416
      %v3445 = vunpack.c.h.b16 %v3416
      %v3446 = vunpack.c.l.b16 %v3417
      %v3447 = vunpack.c.h.b16 %v3417
      %v3448 = vpack.c.b16 %v3428, %v3428
      %v3449 = vpack.c.b16 %v3429, %v3429
      %v3450 = vpack.c.b16 %v3430, %v3430
      %v3451 = vpack.c.b16 %v3431, %v3431
      %v3452 = vpack.c.b16 %v3432, %v3432
      %v3453 = vpack.c.b16 %v3433, %v3433
      %v3454 = vpack.c.b16 %v3434, %v3434
      %v3455 = vpack.c.b16 %v3435, %v3435
      %v3456 = vpack.c.b16 %v3436, %v3436
      %v3457 = vpack.c.b16 %v3437, %v3437
      %v3458 = vpack.c.b16 %v3438, %v3438
      %v3459 = vpack.c.b16 %v3439, %v3439
      %v3460 = vpack.c.b16 %v3440, %v3440
      %v3461 = vpack.c.b16 %v3441, %v3441
      %v3462 = vpack.c.b16 %v3442, %v3442
      %v3463 = vpack.c.b16 %v3443, %v3443
      %v3464 = vpack.c.b16 %v3444, %v3444
      %v3465 = vpack.c.b16 %v3445, %v3445
      %v3466 = vpack.c.b16 %v3446, %v3446
      %v3467 = vpack.c.b16 %v3447, %v3447
      %vm3468 = vsmask.f32 4368
      %vm3469 = vmor %vm3344, %vm3468
      %v3471 = vshrl.u32 %v3448, 16
      %v3473 = vrot.slane %v3471, 7
      %v3474 = vshll.u32 %v3448, 16
      %v3476 = vor.u32 %v3473, %v3474
      %v3477 = vrot.slane %v3473, 4
      %v3479 = vshrl.u32 %v3449, 16
      %v3481 = vrot.slane %v3479, 7
      %v3482 = vshll.u32 %v3449, 16
      %v3484 = vor.u32 %v3481, %v3482
      %v3485 = vsel %vm3469, %v3477, %v3484
      %v3486 = vrot.slane %v3481, 4
      %v3488 = vshrl.u32 %v3450, 16
      %v3490 = vrot.slane %v3488, 7
      %v3491 = vshll.u32 %v3450, 16
      %v3493 = vor.u32 %v3490, %v3491
      %v3494 = vrot.slane %v3490, 4
      %v3496 = vshrl.u32 %v3451, 16
      %v3498 = vrot.slane %v3496, 7
      %v3499 = vshll.u32 %v3451, 16
      %v3501 = vor.u32 %v3498, %v3499
      %v3502 = vsel %vm3469, %v3494, %v3501
      %v3503 = vrot.slane %v3498, 4
      %v3505 = vshrl.u32 %v3452, 16
      %v3507 = vrot.slane %v3505, 7
      %v3508 = vshll.u32 %v3452, 16
      %v3510 = vor.u32 %v3507, %v3508
      %v3511 = vrot.slane %v3507, 4
      %v3513 = vshrl.u32 %v3453, 16
      %v3515 = vrot.slane %v3513, 7
      %v3516 = vshll.u32 %v3453, 16
      %v3518 = vor.u32 %v3515, %v3516
      %v3519 = vsel %vm3469, %v3511, %v3518
      %v3520 = vrot.slane %v3515, 4
      %v3522 = vshrl.u32 %v3454, 16
      %v3524 = vrot.slane %v3522, 7
      %v3525 = vshll.u32 %v3454, 16
      %v3527 = vor.u32 %v3524, %v3525
      %v3528 = vrot.slane %v3524, 4
      %v3530 = vshrl.u32 %v3455, 16
      %v3532 = vrot.slane %v3530, 7
      %v3533 = vshll.u32 %v3455, 16
      %v3535 = vor.u32 %v3532, %v3533
      %v3536 = vsel %vm3469, %v3528, %v3535
      %v3537 = vrot.slane %v3532, 4
      %v3539 = vshrl.u32 %v3456, 16
      %v3541 = vrot.slane %v3539, 7
      %v3542 = vshll.u32 %v3456, 16
      %v3544 = vor.u32 %v3541, %v3542
      %v3545 = vrot.slane %v3541, 4
      %v3547 = vshrl.u32 %v3457, 16
      %v3549 = vrot.slane %v3547, 7
      %v3550 = vshll.u32 %v3457, 16
      %v3552 = vor.u32 %v3549, %v3550
      %v3553 = vsel %vm3469, %v3545, %v3552
      %v3554 = vrot.slane %v3549, 4
      %v3556 = vshrl.u32 %v3458, 16
      %v3558 = vrot.slane %v3556, 7
      %v3559 = vshll.u32 %v3458, 16
      %v3561 = vor.u32 %v3558, %v3559
      %v3562 = vrot.slane %v3558, 4
      %v3564 = vshrl.u32 %v3459, 16
      %v3566 = vrot.slane %v3564, 7
      %v3567 = vshll.u32 %v3459, 16
      %v3569 = vor.u32 %v3566, %v3567
      %v3570 = vsel %vm3469, %v3562, %v3569
      %v3571 = vrot.slane %v3566, 4
      %v3573 = vshrl.u32 %v3460, 16
      %v3575 = vrot.slane %v3573, 7
      %v3576 = vshll.u32 %v3460, 16
      %v3578 = vor.u32 %v3575, %v3576
      %v3579 = vrot.slane %v3575, 4
      %v3581 = vshrl.u32 %v3461, 16
      %v3583 = vrot.slane %v3581, 7
      %v3584 = vshll.u32 %v3461, 16
      %v3586 = vor.u32 %v3583, %v3584
      %v3587 = vsel %vm3469, %v3579, %v3586
      %v3588 = vrot.slane %v3583, 4
      %v3590 = vshrl.u32 %v3462, 16
      %v3592 = vrot.slane %v3590, 7
      %v3593 = vshll.u32 %v3462, 16
      %v3595 = vor.u32 %v3592, %v3593
      %v3596 = vrot.slane %v3592, 4
      %v3598 = vshrl.u32 %v3463, 16
      %v3600 = vrot.slane %v3598, 7
      %v3601 = vshll.u32 %v3463, 16
      %v3603 = vor.u32 %v3600, %v3601
      %v3604 = vsel %vm3469, %v3596, %v3603
      %v3605 = vrot.slane %v3600, 4
      %v3607 = vshrl.u32 %v3464, 16
      %v3609 = vrot.slane %v3607, 7
      %v3610 = vshll.u32 %v3464, 16
      %v3612 = vor.u32 %v3609, %v3610
      %v3613 = vrot.slane %v3609, 4
      %v3615 = vshrl.u32 %v3465, 16
      %v3617 = vrot.slane %v3615, 7
      %v3618 = vshll.u32 %v3465, 16
      %v3620 = vor.u32 %v3617, %v3618
      %v3621 = vsel %vm3469, %v3613, %v3620
      %v3622 = vrot.slane %v3617, 4
      %v3624 = vshrl.u32 %v3466, 16
      %v3626 = vrot.slane %v3624, 7
      %v3627 = vshll.u32 %v3466, 16
      %v3629 = vor.u32 %v3626, %v3627
      %v3630 = vrot.slane %v3626, 4
      %v3632 = vshrl.u32 %v3467, 16
      %v3634 = vrot.slane %v3632, 7
      %v3635 = vshll.u32 %v3467, 16
      %v3637 = vor.u32 %v3634, %v3635
      %v3638 = vsel %vm3469, %v3630, %v3637
      %v3639 = vrot.slane %v3634, 4
      %vm3670 = vcmask 60416
      %vm3671 = vmand %vm3670, %vm3376
      %v3672 = vld [vmem:[#allocation2] sm:$0xf]
      %v3673 = vsel %vm3671, %v3476, %v3672
      %3674 = vst [vmem:[#allocation2] sm:$0xf] %v3673
      %vm3675 = vcmask 60416
      %3676 = vst.msk [vmem:[#allocation2 + $0x4] sm:$0xf] %vm3675, %v3485
      %v3677 = vld [vmem:[#allocation2 + $0x8] sm:$0x1]
      %v3678 = vsel %vm3345, %v3486, %v3677
      %3679 = vst [vmem:[#allocation2 + $0x8] sm:$0x1] %v3678
      %v3680 = vld [vmem:[#allocation2 + $0xc] sm:$0xf]
      %v3681 = vsel %vm3671, %v3493, %v3680
      %3682 = vst [vmem:[#allocation2 + $0xc] sm:$0xf] %v3681
      %3683 = vst.msk [vmem:[#allocation2 + $0x10] sm:$0xf] %vm3675, %v3502
      %v3684 = vld [vmem:[#allocation2 + $0x14] sm:$0x1]
      %v3685 = vsel %vm3345, %v3503, %v3684
      %3686 = vst [vmem:[#allocation2 + $0x14] sm:$0x1] %v3685
      %v3687 = vld [vmem:[#allocation2 + $0x18] sm:$0xf]
      %v3688 = vsel %vm3671, %v3510, %v3687
      %3689 = vst [vmem:[#allocation2 + $0x18] sm:$0xf] %v3688
      %3690 = vst.msk [vmem:[#allocation2 + $0x1c] sm:$0xf] %vm3675, %v3519
      %v3691 = vld [vmem:[#allocation2 + $0x20] sm:$0x1]
      %v3692 = vsel %vm3345, %v3520, %v3691
      %3693 = vst [vmem:[#allocation2 + $0x20] sm:$0x1] %v3692
      %v3694 = vld [vmem:[#allocation2 + $0x24] sm:$0xf]
      %v3695 = vsel %vm3671, %v3527, %v3694
      %3696 = vst [vmem:[#allocation2 + $0x24] sm:$0xf] %v3695
      %3697 = vst.msk [vmem:[#allocation2 + $0x28] sm:$0xf] %vm3675, %v3536
      %v3698 = vld [vmem:[#allocation2 + $0x2c] sm:$0x1]
      %v3699 = vsel %vm3345, %v3537, %v3698
      %3700 = vst [vmem:[#allocation2 + $0x2c] sm:$0x1] %v3699
      %v3701 = vld [vmem:[#allocation2 + $0x30] sm:$0xf]
      %v3702 = vsel %vm3671, %v3544, %v3701
      %3703 = vst [vmem:[#allocation2 + $0x30] sm:$0xf] %v3702
      %3704 = vst.msk [vmem:[#allocation2 + $0x34] sm:$0xf] %vm3675, %v3553
      %v3705 = vld [vmem:[#allocation2 + $0x38] sm:$0x1]
      %v3706 = vsel %vm3345, %v3554, %v3705
      %3707 = vst [vmem:[#allocation2 + $0x38] sm:$0x1] %v3706
      %v3708 = vld [vmem:[#allocation2 + $0x3c] sm:$0xf]
      %v3709 = vsel %vm3671, %v3561, %v3708
      %3710 = vst [vmem:[#allocation2 + $0x3c] sm:$0xf] %v3709
      %3711 = vst.msk [vmem:[#allocation2 + $0x40] sm:$0xf] %vm3675, %v3570
      %v3712 = vld [vmem:[#allocation2 + $0x44] sm:$0x1]
      %v3713 = vsel %vm3345, %v3571, %v3712
      %3714 = vst [vmem:[#allocation2 + $0x44] sm:$0x1] %v3713
      %v3715 = vld [vmem:[#allocation2 + $0x48] sm:$0xf]
      %v3716 = vsel %vm3671, %v3578, %v3715
      %3717 = vst [vmem:[#allocation2 + $0x48] sm:$0xf] %v3716
      %3718 = vst.msk [vmem:[#allocation2 + $0x4c] sm:$0xf] %vm3675, %v3587
      %v3719 = vld [vmem:[#allocation2 + $0x50] sm:$0x1]
      %v3720 = vsel %vm3345, %v3588, %v3719
      %3721 = vst [vmem:[#allocation2 + $0x50] sm:$0x1] %v3720
      %v3722 = vld [vmem:[#allocation2 + $0x54] sm:$0xf]
      %v3723 = vsel %vm3671, %v3595, %v3722
      %3724 = vst [vmem:[#allocation2 + $0x54] sm:$0xf] %v3723
      %3725 = vst.msk [vmem:[#allocation2 + $0x58] sm:$0xf] %vm3675, %v3604
      %v3726 = vld [vmem:[#allocation2 + $0x5c] sm:$0x1]
      %v3727 = vsel %vm3345, %v3605, %v3726
      %3728 = vst [vmem:[#allocation2 + $0x5c] sm:$0x1] %v3727
      %v3729 = vld [vmem:[#allocation2 + $0x60] sm:$0xf]
      %v3730 = vsel %vm3671, %v3612, %v3729
      %3731 = vst [vmem:[#allocation2 + $0x60] sm:$0xf] %v3730
      %3732 = vst.msk [vmem:[#allocation2 + $0x64] sm:$0xf] %vm3675, %v3621
      %v3733 = vld [vmem:[#allocation2 + $0x68] sm:$0x1]
      %v3734 = vsel %vm3345, %v3622, %v3733
      %3735 = vst [vmem:[#allocation2 + $0x68] sm:$0x1] %v3734
      %v3736 = vld [vmem:[#allocation2 + $0x6c] sm:$0xf]
      %v3737 = vsel %vm3671, %v3629, %v3736
      %3738 = vst [vmem:[#allocation2 + $0x6c] sm:$0xf] %v3737
      %3739 = vst.msk [vmem:[#allocation2 + $0x70] sm:$0xf] %vm3675, %v3638
      %v3740 = vld [vmem:[#allocation2 + $0x74] sm:$0x1]
      %v3741 = vsel %vm3345, %v3639, %v3740
      %3742 = vst [vmem:[#allocation2 + $0x74] sm:$0x1] %v3741
      %p3743 = scmp.eq.s32.totalorder %s23, 0
      // Predicated region
      $region49: #{tpu_custom_call.1} parent=47 // pred_check
        %p3744 = pneg %p3743
      $region50: #{tpu_custom_call.1} parent=47 // pred_check_branch
        %3746 = sbr.rel (%p3744) target = $region52
      $region51: #{tpu_custom_call.1} parent=47 // pred_region
        %3747 = vst.msk [vmem:[#allocation2] sm:$0xf] %vm3675, 0
        %3748 = vst.msk [vmem:[#allocation2 + $0x4] sm:$0xf] %vm3675, 0
        %vm3749 = vcmask 57344
        %3750 = vst.msk [vmem:[#allocation2 + $0x8] sm:$0x1] %vm3749, 0
      $region52: #{tpu_custom_call.1} parent=47 // pred_fallthru
        _
      %p3751 = scmp.eq.s32.totalorder %s23, 1
      // Predicated region
      $region53: #{tpu_custom_call.1} parent=47 // pred_check
        %p3752 = pneg %p3751
      $region54: #{tpu_custom_call.1} parent=47 // pred_check_branch
        %3754 = sbr.rel (%p3752) target = $region56
      $region55: #{tpu_custom_call.1} parent=47 // pred_region
        %s3755 = scalar_lea.vmem [#allocation2], 108
        %3756 = vst.msk [vmem:[%s3755] sm:$0xf] %vm3675, 0
        %3757 = vst.msk [vmem:[%s3755 + $0x4] sm:$0xf] %vm3675, 0
        %vm3758 = vcmask 57344
        %3759 = vst.msk [vmem:[%s3755 + $0x8] sm:$0x1] %vm3758, 0
      $region56: #{tpu_custom_call.1} parent=47 // pred_fallthru
        _
      %v3760 = vld [vmem:[#allocation2] sm:$0xf]
      %v3761 = vld [vmem:[#allocation2 + $0x4] sm:$0xf]
      %v3762 = vld [vmem:[#allocation2 + $0xc] sm:$0xf]
      %v3763 = vld [vmem:[#allocation2 + $0x10] sm:$0xf]
      %v3764 = vld [vmem:[#allocation2 + $0x18] sm:$0xf]
      %v3765 = vld [vmem:[#allocation2 + $0x1c] sm:$0xf]
      %v3766 = vld [vmem:[#allocation2 + $0x24] sm:$0xf]
      %v3767 = vld [vmem:[#allocation2 + $0x28] sm:$0xf]
      %v3768 = vld [vmem:[#allocation2 + $0x30] sm:$0xf]
      %v3769 = vld [vmem:[#allocation2 + $0x34] sm:$0xf]
      %v3770 = vld [vmem:[#allocation2 + $0x3c] sm:$0xf]
      %v3771 = vld [vmem:[#allocation2 + $0x40] sm:$0xf]
      %v3772 = vld [vmem:[#allocation2 + $0x48] sm:$0xf]
      %v3773 = vld [vmem:[#allocation2 + $0x4c] sm:$0xf]
      %v3774 = vld [vmem:[#allocation2 + $0x54] sm:$0xf]
      %v3775 = vld [vmem:[#allocation2 + $0x58] sm:$0xf]
      %v3776 = vld [vmem:[%s3] sm:$0xf]
      %v3777 = vld [vmem:[#allocation2 + $0x8] sm:$0x1]
      %v3778 = vld [vmem:[#allocation2 + $0x14] sm:$0x1]
      %v3779 = vld [vmem:[#allocation2 + $0x20] sm:$0x1]
      %v3780 = vld [vmem:[#allocation2 + $0x2c] sm:$0x1]
      %v3781 = vld [vmem:[#allocation2 + $0x38] sm:$0x1]
      %v3782 = vld [vmem:[#allocation2 + $0x44] sm:$0x1]
      %v3783 = vld [vmem:[#allocation2 + $0x50] sm:$0x1]
      %v3784 = vld [vmem:[#allocation2 + $0x5c] sm:$0x1]
      %v3786 = vshrl.u32 %v3760, 16
      %v3788 = vrot.slane %v3786, 4
      %v3789 = vshll.u32 %v3760, 16
      %v3791 = vrot.slane %v3789, 5
      %v3792 = vor.u32 %v3788, %v3791
      %v3793 = vrot.slane %v3792, 4
      %v3795 = vshll.u32 %v3761, 16
      %v3797 = vrot.slane %v3795, 5
      %v3798 = vsel %vm342, %v3793, %v3797
      %v3799 = vshrl.u32 %v3761, 16
      %v3801 = vrot.slane %v3799, 4
      %v3802 = vor.u32 %v3801, %v3797
      %v3803 = vrot.slane %v3802, 4
      %v3805 = vshll.u32 %v3777, 16
      %v3807 = vrot.slane %v3805, 5
      %v3808 = vsel %vm342, %v3803, %v3807
      %v3810 = vshrl.u32 %v3762, 16
      %v3812 = vrot.slane %v3810, 4
      %v3813 = vshll.u32 %v3762, 16
      %v3815 = vrot.slane %v3813, 5
      %v3816 = vor.u32 %v3812, %v3815
      %v3817 = vrot.slane %v3816, 4
      %v3819 = vshll.u32 %v3763, 16
      %v3821 = vrot.slane %v3819, 5
      %v3822 = vsel %vm342, %v3817, %v3821
      %v3823 = vshrl.u32 %v3763, 16
      %v3825 = vrot.slane %v3823, 4
      %v3826 = vor.u32 %v3825, %v3821
      %v3827 = vrot.slane %v3826, 4
      %v3829 = vshll.u32 %v3778, 16
      %v3831 = vrot.slane %v3829, 5
      %v3832 = vsel %vm342, %v3827, %v3831
      %v3834 = vshrl.u32 %v3764, 16
      %v3836 = vrot.slane %v3834, 4
      %v3837 = vshll.u32 %v3764, 16
      %v3839 = vrot.slane %v3837, 5
      %v3840 = vor.u32 %v3836, %v3839
      %v3841 = vrot.slane %v3840, 4
      %v3843 = vshll.u32 %v3765, 16
      %v3845 = vrot.slane %v3843, 5
      %v3846 = vsel %vm342, %v3841, %v3845
      %v3847 = vshrl.u32 %v3765, 16
      %v3849 = vrot.slane %v3847, 4
      %v3850 = vor.u32 %v3849, %v3845
      %v3851 = vrot.slane %v3850, 4
      %v3853 = vshll.u32 %v3779, 16
      %v3855 = vrot.slane %v3853, 5
      %v3856 = vsel %vm342, %v3851, %v3855
      %v3858 = vshrl.u32 %v3766, 16
      %v3860 = vrot.slane %v3858, 4
      %v3861 = vshll.u32 %v3766, 16
      %v3863 = vrot.slane %v3861, 5
      %v3864 = vor.u32 %v3860, %v3863
      %v3865 = vrot.slane %v3864, 4
      %v3867 = vshll.u32 %v3767, 16
      %v3869 = vrot.slane %v3867, 5
      %v3870 = vsel %vm342, %v3865, %v3869
      %v3871 = vshrl.u32 %v3767, 16
      %v3873 = vrot.slane %v3871, 4
      %v3874 = vor.u32 %v3873, %v3869
      %v3875 = vrot.slane %v3874, 4
      %v3877 = vshll.u32 %v3780, 16
      %v3879 = vrot.slane %v3877, 5
      %v3880 = vsel %vm342, %v3875, %v3879
      %v3882 = vshrl.u32 %v3768, 16
      %v3884 = vrot.slane %v3882, 4
      %v3885 = vshll.u32 %v3768, 16
      %v3887 = vrot.slane %v3885, 5
      %v3888 = vor.u32 %v3884, %v3887
      %v3889 = vrot.slane %v3888, 4
      %v3891 = vshll.u32 %v3769, 16
      %v3893 = vrot.slane %v3891, 5
      %v3894 = vsel %vm342, %v3889, %v3893
      %v3895 = vshrl.u32 %v3769, 16
      %v3897 = vrot.slane %v3895, 4
      %v3898 = vor.u32 %v3897, %v3893
      %v3899 = vrot.slane %v3898, 4
      %v3901 = vshll.u32 %v3781, 16
      %v3903 = vrot.slane %v3901, 5
      %v3904 = vsel %vm342, %v3899, %v3903
      %v3906 = vshrl.u32 %v3770, 16
      %v3908 = vrot.slane %v3906, 4
      %v3909 = vshll.u32 %v3770, 16
      %v3911 = vrot.slane %v3909, 5
      %v3912 = vor.u32 %v3908, %v3911
      %v3913 = vrot.slane %v3912, 4
      %v3915 = vshll.u32 %v3771, 16
      %v3917 = vrot.slane %v3915, 5
      %v3918 = vsel %vm342, %v3913, %v3917
      %v3919 = vshrl.u32 %v3771, 16
      %v3921 = vrot.slane %v3919, 4
      %v3922 = vor.u32 %v3921, %v3917
      %v3923 = vrot.slane %v3922, 4
      %v3925 = vshll.u32 %v3782, 16
      %v3927 = vrot.slane %v3925, 5
      %v3928 = vsel %vm342, %v3923, %v3927
      %v3930 = vshrl.u32 %v3772, 16
      %v3932 = vrot.slane %v3930, 4
      %v3933 = vshll.u32 %v3772, 16
      %v3935 = vrot.slane %v3933, 5
      %v3936 = vor.u32 %v3932, %v3935
      %v3937 = vrot.slane %v3936, 4
      %v3939 = vshll.u32 %v3773, 16
      %v3941 = vrot.slane %v3939, 5
      %v3942 = vsel %vm342, %v3937, %v3941
      %v3943 = vshrl.u32 %v3773, 16
      %v3945 = vrot.slane %v3943, 4
      %v3946 = vor.u32 %v3945, %v3941
      %v3947 = vrot.slane %v3946, 4
      %v3949 = vshll.u32 %v3783, 16
      %v3951 = vrot.slane %v3949, 5
      %v3952 = vsel %vm342, %v3947, %v3951
      %v3954 = vshrl.u32 %v3774, 16
      %v3956 = vrot.slane %v3954, 4
      %v3957 = vshll.u32 %v3774, 16
      %v3959 = vrot.slane %v3957, 5
      %v3960 = vor.u32 %v3956, %v3959
      %v3961 = vrot.slane %v3960, 4
      %v3963 = vshll.u32 %v3775, 16
      %v3965 = vrot.slane %v3963, 5
      %v3966 = vsel %vm342, %v3961, %v3965
      %v3967 = vshrl.u32 %v3775, 16
      %v3969 = vrot.slane %v3967, 4
      %v3970 = vor.u32 %v3969, %v3965
      %v3971 = vrot.slane %v3970, 4
      %v3973 = vshll.u32 %v3784, 16
      %v3975 = vrot.slane %v3973, 5
      %v3976 = vsel %vm342, %v3971, %v3975
      %s3977 = scalar_lea.vmem %s3, 4
      %v3978 = vld [vmem:[%s3977] sm:$0xf]
      %v3979 = vunpack.c.l.b16 %v3798
      %v3980 = vunpack.c.l.b16 %v3808
      %v3981 = vunpack.c.l.b16 %v3822
      %v3982 = vunpack.c.l.b16 %v3832
      %v3983 = vunpack.c.l.b16 %v3846
      %v3984 = vunpack.c.l.b16 %v3856
      %v3985 = vunpack.c.l.b16 %v3870
      %v3986 = vunpack.c.l.b16 %v3880
      %v3987 = vunpack.c.l.b16 %v3894
      %v3988 = vunpack.c.l.b16 %v3904
      %v3989 = vunpack.c.l.b16 %v3918
      %v3990 = vunpack.c.l.b16 %v3928
      %v3991 = vunpack.c.l.b16 %v3942
      %v3992 = vunpack.c.l.b16 %v3952
      %v3993 = vunpack.c.l.b16 %v3966
      %v3994 = vunpack.c.l.b16 %v3976
      %v3995 = vpack.c.b16 %v3980, %v3979
      %v3996 = vpack.c.b16 %v3982, %v3981
      %v3997 = vpack.c.b16 %v3984, %v3983
      %v3998 = vpack.c.b16 %v3986, %v3985
      %v3999 = vpack.c.b16 %v3988, %v3987
      %v4000 = vpack.c.b16 %v3990, %v3989
      %v4001 = vpack.c.b16 %v3992, %v3991
      %v4002 = vpack.c.b16 %v3994, %v3993
      %vm4003 = vcmask 64512
      %v4005 = vsel %vm4003, %v3995, 0
      %v4008 = vsel %vm4003, %v3996, 0
      %v4011 = vsel %vm4003, %v3997, 0
      %v4014 = vsel %vm4003, %v3998, 0
      %v4017 = vsel %vm4003, %v3999, 0
      %v4020 = vsel %vm4003, %v4000, 0
      %v4023 = vsel %vm4003, %v4001, 0
      %v4026 = vsel %vm4003, %v4002, 0
      %vm4028 = vcmask 1043456
      %v4030 = vsel %vm4028, %v3978, 0
      %4032 = vmatprep.subr.bf16.mxu0 0
      %4033 = vmatpush1.bf16.msra.mxu0 %v4030
      %4034 = vmatprep.subr.bf16.mxu0 0
      %4035 = vmatpush1.bf16.msra.mxu0 0
      %4036 = vmatprep.subr.bf16.mxu0 0
      %4037 = vmatpush1.bf16.msra.mxu0 0
      %4038 = vmatprep.subr.bf16.mxu0 0
      %4039 = vmatpush1.bf16.msra.mxu0 0
      %4040 = vmatprep.subr.bf16.mxu0 0
      %4041 = vmatpush1.bf16.msra.mxu0 0
      %4042 = vmatprep.subr.bf16.mxu0 0
      %4043 = vmatpush1.bf16.msra.mxu0 0
      %4044 = vmatprep.subr.bf16.mxu0 0
      %4045 = vmatpush1.bf16.msra.mxu0 0
      %4046 = vmatprep.subr.bf16.mxu0 0
      %4047 = vmatpush1.bf16.msra.mxu0 0
      %4048 = vmatprep.subr.bf16.mxu0 0
      %4049 = vmatpush1.bf16.msra.mxu0 0
      %4050 = vmatprep.subr.bf16.mxu0 0
      %4051 = vmatpush1.bf16.msra.mxu0 0
      %4052 = vmatprep.subr.bf16.mxu0 0
      %4053 = vmatpush1.bf16.msra.mxu0 0
      %4054 = vmatprep.subr.bf16.mxu0 0
      %4055 = vmatpush1.bf16.msra.mxu0 0
      %4056 = vmatprep.subr.bf16.mxu0 0
      %4057 = vmatpush1.bf16.msra.mxu0 0
      %4058 = vmatprep.subr.bf16.mxu0 0
      %4059 = vmatpush1.bf16.msra.mxu0 0
      %4060 = vmatprep.subr.bf16.mxu0 0
      %4061 = vmatpush1.bf16.msra.mxu0 0
      %4062 = vmatprep.subr.bf16.mxu0 0
      %4063 = vmatpush1.bf16.msra.mxu0 0
      %4064 = vmatprep.mubr.bf16.mxu0 0
      %4065 = vmatmul.mubr.bf16.gmra.mrb[0].mxu0 %v4005
      %v4066 = vpop.f32.mrb[0].mxu0
      %v4067 = vadd.f32 0.0, %v4066
      %v4068 = vpop.f32.mrb[0].mxu0
      %v4069 = vpop.f32.mrb[0].mxu0
      %v4070 = vadd.f32 0.0, %v4069
      %v4071 = vpop.f32.mrb[0].mxu0
      %4072 = vmatprep.mubr.bf16.mxu0 0
      %4073 = vmatmul.mubr.bf16.gmra.mrb[0].mxu0 %v4008
      %v4074 = vpop.f32.mrb[0].mxu0
      %v4075 = vadd.f32 0.0, %v4074
      %v4076 = vpop.f32.mrb[0].mxu0
      %v4077 = vpop.f32.mrb[0].mxu0
      %v4078 = vadd.f32 0.0, %v4077
      %v4079 = vpop.f32.mrb[0].mxu0
      %4080 = vmatprep.mubr.bf16.mxu0 0
      %4081 = vmatmul.mubr.bf16.gmra.mrb[0].mxu0 %v4011
      %v4082 = vpop.f32.mrb[0].mxu0
      %v4083 = vadd.f32 0.0, %v4082
      %v4084 = vpop.f32.mrb[0].mxu0
      %v4085 = vpop.f32.mrb[0].mxu0
      %v4086 = vadd.f32 0.0, %v4085
      %v4087 = vpop.f32.mrb[0].mxu0
      %4088 = vmatprep.mubr.bf16.mxu0 0
      %4089 = vmatmul.mubr.bf16.gmra.mrb[0].mxu0 %v4014
      %v4090 = vpop.f32.mrb[0].mxu0
      %v4091 = vadd.f32 0.0, %v4090
      %v4092 = vpop.f32.mrb[0].mxu0
      %v4093 = vpop.f32.mrb[0].mxu0
      %v4094 = vadd.f32 0.0, %v4093
      %v4095 = vpop.f32.mrb[0].mxu0
      %4096 = vmatprep.mubr.bf16.mxu0 0
      %4097 = vmatmul.mubr.bf16.gmra.mrb[0].mxu0 %v4017
      %v4098 = vpop.f32.mrb[0].mxu0
      %v4099 = vadd.f32 0.0, %v4098
      %v4100 = vpop.f32.mrb[0].mxu0
      %v4101 = vpop.f32.mrb[0].mxu0
      %v4102 = vadd.f32 0.0, %v4101
      %v4103 = vpop.f32.mrb[0].mxu0
      %4104 = vmatprep.mubr.bf16.mxu0 0
      %4105 = vmatmul.mubr.bf16.gmra.mrb[0].mxu0 %v4020
      %v4106 = vpop.f32.mrb[0].mxu0
      %v4107 = vadd.f32 0.0, %v4106
      %v4108 = vpop.f32.mrb[0].mxu0
      %v4109 = vpop.f32.mrb[0].mxu0
      %v4110 = vadd.f32 0.0, %v4109
      %v4111 = vpop.f32.mrb[0].mxu0
      %4112 = vmatprep.mubr.bf16.mxu0 0
      %4113 = vmatmul.mubr.bf16.gmra.mrb[0].mxu0 %v4023
      %v4114 = vpop.f32.mrb[0].mxu0
      %v4115 = vadd.f32 0.0, %v4114
      %v4116 = vpop.f32.mrb[0].mxu0
      %v4117 = vpop.f32.mrb[0].mxu0
      %v4118 = vadd.f32 0.0, %v4117
      %v4119 = vpop.f32.mrb[0].mxu0
      %4120 = vmatprep.mubr.bf16.mxu0 0
      %4121 = vmatmul.mubr.bf16.gmra.mrb[0].mxu0 %v4026
      %v4122 = vpop.f32.mrb[0].mxu0
      %v4123 = vadd.f32 0.0, %v4122
      %v4124 = vpop.f32.mrb[0].mxu0
      %v4125 = vpop.f32.mrb[0].mxu0
      %v4126 = vadd.f32 0.0, %v4125
      %v4127 = vpop.f32.mrb[0].mxu0
      %4128 = vdwg.mxu0
      %v4145 = vunpack.c.l.b16 %v3760
      %v4146 = vunpack.c.l.b16 %v3761
      %v4147 = vunpack.c.l.b16 %v3762
      %v4148 = vunpack.c.l.b16 %v3763
      %v4149 = vunpack.c.l.b16 %v3764
      %v4150 = vunpack.c.l.b16 %v3765
      %v4151 = vunpack.c.l.b16 %v3766
      %v4152 = vunpack.c.l.b16 %v3767
      %v4153 = vunpack.c.l.b16 %v3768
      %v4154 = vunpack.c.l.b16 %v3769
      %v4155 = vunpack.c.l.b16 %v3770
      %v4156 = vunpack.c.l.b16 %v3771
      %v4157 = vunpack.c.l.b16 %v3772
      %v4158 = vunpack.c.l.b16 %v3773
      %v4159 = vunpack.c.l.b16 %v3774
      %v4160 = vunpack.c.l.b16 %v3775
      %v4161 = vpack.c.b16 %v4146, %v4145
      %v4162 = vpack.c.b16 %v4148, %v4147
      %v4163 = vpack.c.b16 %v4150, %v4149
      %v4164 = vpack.c.b16 %v4152, %v4151
      %v4165 = vpack.c.b16 %v4154, %v4153
      %v4166 = vpack.c.b16 %v4156, %v4155
      %v4167 = vpack.c.b16 %v4158, %v4157
      %v4168 = vpack.c.b16 %v4160, %v4159
      %v4170 = vsel %vm4003, %v4161, 0
      %v4173 = vsel %vm4003, %v4162, 0
      %v4176 = vsel %vm4003, %v4163, 0
      %v4179 = vsel %vm4003, %v4164, 0
      %v4182 = vsel %vm4003, %v4165, 0
      %v4185 = vsel %vm4003, %v4166, 0
      %v4188 = vsel %vm4003, %v4167, 0
      %v4191 = vsel %vm4003, %v4168, 0
      %v4194 = vsel %vm4028, %v3776, 0
      %4196 = vmatprep.subr.bf16.mxu0 0
      %4197 = vmatpush1.bf16.msra.mxu0 %v4194
      %4198 = vmatprep.subr.bf16.mxu0 0
      %4199 = vmatpush1.bf16.msra.mxu0 0
      %4200 = vmatprep.subr.bf16.mxu0 0
      %4201 = vmatpush1.bf16.msra.mxu0 0
      %4202 = vmatprep.subr.bf16.mxu0 0
      %4203 = vmatpush1.bf16.msra.mxu0 0
      %4204 = vmatprep.subr.bf16.mxu0 0
      %4205 = vmatpush1.bf16.msra.mxu0 0
      %4206 = vmatprep.subr.bf16.mxu0 0
      %4207 = vmatpush1.bf16.msra.mxu0 0
      %4208 = vmatprep.subr.bf16.mxu0 0
      %4209 = vmatpush1.bf16.msra.mxu0 0
      %4210 = vmatprep.subr.bf16.mxu0 0
      %4211 = vmatpush1.bf16.msra.mxu0 0
      %4212 = vmatprep.subr.bf16.mxu0 0
      %4213 = vmatpush1.bf16.msra.mxu0 0
      %4214 = vmatprep.subr.bf16.mxu0 0
      %4215 = vmatpush1.bf16.msra.mxu0 0
      %4216 = vmatprep.subr.bf16.mxu0 0
      %4217 = vmatpush1.bf16.msra.mxu0 0
      %4218 = vmatprep.subr.bf16.mxu0 0
      %4219 = vmatpush1.bf16.msra.mxu0 0
      %4220 = vmatprep.subr.bf16.mxu0 0
      %4221 = vmatpush1.bf16.msra.mxu0 0
      %4222 = vmatprep.subr.bf16.mxu0 0
      %4223 = vmatpush1.bf16.msra.mxu0 0
      %4224 = vmatprep.subr.bf16.mxu0 0
      %4225 = vmatpush1.bf16.msra.mxu0 0
      %4226 = vmatprep.subr.bf16.mxu0 0
      %4227 = vmatpush1.bf16.msra.mxu0 0
      %4228 = vmatprep.mubr.bf16.mxu0 0
      %4229 = vmatmul.mubr.bf16.gmra.mrb[0].mxu0 %v4170
      %v4230 = vpop.f32.mrb[0].mxu0
      %v4231 = vadd.f32 %v4067, %v4230
      %v4232 = vpop.f32.mrb[0].mxu0
      %v4233 = vpop.f32.mrb[0].mxu0
      %v4234 = vadd.f32 %v4070, %v4233
      %v4235 = vpop.f32.mrb[0].mxu0
      %4236 = vmatprep.mubr.bf16.mxu0 0
      %4237 = vmatmul.mubr.bf16.gmra.mrb[0].mxu0 %v4173
      %v4238 = vpop.f32.mrb[0].mxu0
      %v4239 = vadd.f32 %v4075, %v4238
      %v4240 = vpop.f32.mrb[0].mxu0
      %v4241 = vpop.f32.mrb[0].mxu0
      %v4242 = vadd.f32 %v4078, %v4241
      %v4243 = vpop.f32.mrb[0].mxu0
      %4244 = vmatprep.mubr.bf16.mxu0 0
      %4245 = vmatmul.mubr.bf16.gmra.mrb[0].mxu0 %v4176
      %v4246 = vpop.f32.mrb[0].mxu0
      %v4247 = vadd.f32 %v4083, %v4246
      %v4248 = vpop.f32.mrb[0].mxu0
      %v4249 = vpop.f32.mrb[0].mxu0
      %v4250 = vadd.f32 %v4086, %v4249
      %v4251 = vpop.f32.mrb[0].mxu0
      %4252 = vmatprep.mubr.bf16.mxu0 0
      %4253 = vmatmul.mubr.bf16.gmra.mrb[0].mxu0 %v4179
      %v4254 = vpop.f32.mrb[0].mxu0
      %v4255 = vadd.f32 %v4091, %v4254
      %v4256 = vpop.f32.mrb[0].mxu0
      %v4257 = vpop.f32.mrb[0].mxu0
      %v4258 = vadd.f32 %v4094, %v4257
      %v4259 = vpop.f32.mrb[0].mxu0
      %4260 = vmatprep.mubr.bf16.mxu0 0
      %4261 = vmatmul.mubr.bf16.gmra.mrb[0].mxu0 %v4182
      %v4262 = vpop.f32.mrb[0].mxu0
      %v4263 = vadd.f32 %v4099, %v4262
      %v4264 = vpop.f32.mrb[0].mxu0
      %v4265 = vpop.f32.mrb[0].mxu0
      %v4266 = vadd.f32 %v4102, %v4265
      %v4267 = vpop.f32.mrb[0].mxu0
      %4268 = vmatprep.mubr.bf16.mxu0 0
      %4269 = vmatmul.mubr.bf16.gmra.mrb[0].mxu0 %v4185
      %v4270 = vpop.f32.mrb[0].mxu0
      %v4271 = vadd.f32 %v4107, %v4270
      %v4272 = vpop.f32.mrb[0].mxu0
      %v4273 = vpop.f32.mrb[0].mxu0
      %v4274 = vadd.f32 %v4110, %v4273
      %v4275 = vpop.f32.mrb[0].mxu0
      %4276 = vmatprep.mubr.bf16.mxu0 0
      %4277 = vmatmul.mubr.bf16.gmra.mrb[0].mxu0 %v4188
      %v4278 = vpop.f32.mrb[0].mxu0
      %v4279 = vadd.f32 %v4115, %v4278
      %v4280 = vpop.f32.mrb[0].mxu0
      %v4281 = vpop.f32.mrb[0].mxu0
      %v4282 = vadd.f32 %v4118, %v4281
      %v4283 = vpop.f32.mrb[0].mxu0
      %4284 = vmatprep.mubr.bf16.mxu0 0
      %4285 = vmatmul.mubr.bf16.gmra.mrb[0].mxu0 %v4191
      %v4286 = vpop.f32.mrb[0].mxu0
      %v4287 = vadd.f32 %v4123, %v4286
      %v4288 = vpop.f32.mrb[0].mxu0
      %v4289 = vpop.f32.mrb[0].mxu0
      %v4290 = vadd.f32 %v4126, %v4289
      %v4291 = vpop.f32.mrb[0].mxu0
      %4292 = vdwg.mxu0
      %v4293 = vld [vmem:[#allocation2] sm:$0xe]
      %v4294 = vld [vmem:[#allocation2 + $0xc] sm:$0xe]
      %v4295 = vld [vmem:[#allocation2 + $0x18] sm:$0xe]
      %v4296 = vld [vmem:[#allocation2 + $0x24] sm:$0xe]
      %v4297 = vld [vmem:[#allocation2 + $0x30] sm:$0xe]
      %v4298 = vld [vmem:[#allocation2 + $0x3c] sm:$0xe]
      %v4299 = vld [vmem:[#allocation2 + $0x48] sm:$0xe]
      %v4300 = vld [vmem:[#allocation2 + $0x54] sm:$0xe]
      %v4317 = vrot.slane %v4293, 5
      %v4318 = vrot.slane %v4317, 4
      %v4319 = vrot.slane %v3761, 5
      %v4320 = vsel %vm991, %v4318, %v4319
      %v4321 = vrot.slane %v4319, 4
      %v4322 = vrot.slane %v3777, 5
      %v4323 = vsel %vm991, %v4321, %v4322
      %v4324 = vrot.slane %v4294, 5
      %v4325 = vrot.slane %v4324, 4
      %v4326 = vrot.slane %v3763, 5
      %v4327 = vsel %vm991, %v4325, %v4326
      %v4328 = vrot.slane %v4326, 4
      %v4329 = vrot.slane %v3778, 5
      %v4330 = vsel %vm991, %v4328, %v4329
      %v4331 = vrot.slane %v4295, 5
      %v4332 = vrot.slane %v4331, 4
      %v4333 = vrot.slane %v3765, 5
      %v4334 = vsel %vm991, %v4332, %v4333
      %v4335 = vrot.slane %v4333, 4
      %v4336 = vrot.slane %v3779, 5
      %v4337 = vsel %vm991, %v4335, %v4336
      %v4338 = vrot.slane %v4296, 5
      %v4339 = vrot.slane %v4338, 4
      %v4340 = vrot.slane %v3767, 5
      %v4341 = vsel %vm991, %v4339, %v4340
      %v4342 = vrot.slane %v4340, 4
      %v4343 = vrot.slane %v3780, 5
      %v4344 = vsel %vm991, %v4342, %v4343
      %v4345 = vrot.slane %v4297, 5
      %v4346 = vrot.slane %v4345, 4
      %v4347 = vrot.slane %v3769, 5
      %v4348 = vsel %vm991, %v4346, %v4347
      %v4349 = vrot.slane %v4347, 4
      %v4350 = vrot.slane %v3781, 5
      %v4351 = vsel %vm991, %v4349, %v4350
      %v4352 = vrot.slane %v4298, 5
      %v4353 = vrot.slane %v4352, 4
      %v4354 = vrot.slane %v3771, 5
      %v4355 = vsel %vm991, %v4353, %v4354
      %v4356 = vrot.slane %v4354, 4
      %v4357 = vrot.slane %v3782, 5
      %v4358 = vsel %vm991, %v4356, %v4357
      %v4359 = vrot.slane %v4299, 5
      %v4360 = vrot.slane %v4359, 4
      %v4361 = vrot.slane %v3773, 5
      %v4362 = vsel %vm991, %v4360, %v4361
      %v4363 = vrot.slane %v4361, 4
      %v4364 = vrot.slane %v3783, 5
      %v4365 = vsel %vm991, %v4363, %v4364
      %v4366 = vrot.slane %v4300, 5
      %v4367 = vrot.slane %v4366, 4
      %v4368 = vrot.slane %v3775, 5
      %v4369 = vsel %vm991, %v4367, %v4368
      %v4370 = vrot.slane %v4368, 4
      %v4371 = vrot.slane %v3784, 5
      %v4372 = vsel %vm991, %v4370, %v4371
      %s4373 = scalar_lea.vmem %s3, 8
      %v4374 = vld [vmem:[%s4373] sm:$0xf]
      %v4375 = vunpack.c.l.b16 %v4320
      %v4376 = vunpack.c.l.b16 %v4323
      %v4377 = vunpack.c.l.b16 %v4327
      %v4378 = vunpack.c.l.b16 %v4330
      %v4379 = vunpack.c.l.b16 %v4334
      %v4380 = vunpack.c.l.b16 %v4337
      %v4381 = vunpack.c.l.b16 %v4341
      %v4382 = vunpack.c.l.b16 %v4344
      %v4383 = vunpack.c.l.b16 %v4348
      %v4384 = vunpack.c.l.b16 %v4351
      %v4385 = vunpack.c.l.b16 %v4355
      %v4386 = vunpack.c.l.b16 %v4358
      %v4387 = vunpack.c.l.b16 %v4362
      %v4388 = vunpack.c.l.b16 %v4365
      %v4389 = vunpack.c.l.b16 %v4369
      %v4390 = vunpack.c.l.b16 %v4372
      %v4391 = vpack.c.b16 %v4376, %v4375
      %v4392 = vpack.c.b16 %v4378, %v4377
      %v4393 = vpack.c.b16 %v4380, %v4379
      %v4394 = vpack.c.b16 %v4382, %v4381
      %v4395 = vpack.c.b16 %v4384, %v4383
      %v4396 = vpack.c.b16 %v4386, %v4385
      %v4397 = vpack.c.b16 %v4388, %v4387
      %v4398 = vpack.c.b16 %v4390, %v4389
      %v4400 = vsel %vm4003, %v4391, 0
      %v4403 = vsel %vm4003, %v4392, 0
      %v4406 = vsel %vm4003, %v4393, 0
      %v4409 = vsel %vm4003, %v4394, 0
      %v4412 = vsel %vm4003, %v4395, 0
      %v4415 = vsel %vm4003, %v4396, 0
      %v4418 = vsel %vm4003, %v4397, 0
      %v4421 = vsel %vm4003, %v4398, 0
      %v4424 = vsel %vm4028, %v4374, 0
      %4426 = vmatprep.subr.bf16.mxu0 0
      %4427 = vmatpush1.bf16.msra.mxu0 %v4424
      %4428 = vmatprep.subr.bf16.mxu0 0
      %4429 = vmatpush1.bf16.msra.mxu0 0
      %4430 = vmatprep.subr.bf16.mxu0 0
      %4431 = vmatpush1.bf16.msra.mxu0 0
      %4432 = vmatprep.subr.bf16.mxu0 0
      %4433 = vmatpush1.bf16.msra.mxu0 0
      %4434 = vmatprep.subr.bf16.mxu0 0
      %4435 = vmatpush1.bf16.msra.mxu0 0
      %4436 = vmatprep.subr.bf16.mxu0 0
      %4437 = vmatpush1.bf16.msra.mxu0 0
      %4438 = vmatprep.subr.bf16.mxu0 0
      %4439 = vmatpush1.bf16.msra.mxu0 0
      %4440 = vmatprep.subr.bf16.mxu0 0
      %4441 = vmatpush1.bf16.msra.mxu0 0
      %4442 = vmatprep.subr.bf16.mxu0 0
      %4443 = vmatpush1.bf16.msra.mxu0 0
      %4444 = vmatprep.subr.bf16.mxu0 0
      %4445 = vmatpush1.bf16.msra.mxu0 0
      %4446 = vmatprep.subr.bf16.mxu0 0
      %4447 = vmatpush1.bf16.msra.mxu0 0
      %4448 = vmatprep.subr.bf16.mxu0 0
      %4449 = vmatpush1.bf16.msra.mxu0 0
      %4450 = vmatprep.subr.bf16.mxu0 0
      %4451 = vmatpush1.bf16.msra.mxu0 0
      %4452 = vmatprep.subr.bf16.mxu0 0
      %4453 = vmatpush1.bf16.msra.mxu0 0
      %4454 = vmatprep.subr.bf16.mxu0 0
      %4455 = vmatpush1.bf16.msra.mxu0 0
      %4456 = vmatprep.subr.bf16.mxu0 0
      %4457 = vmatpush1.bf16.msra.mxu0 0
      %4458 = vmatprep.mubr.bf16.mxu0 0
      %4459 = vmatmul.mubr.bf16.gmra.mrb[0].mxu0 %v4400
      %v4460 = vpop.f32.mrb[0].mxu0
      %v4461 = vadd.f32 0.0, %v4460
      %v4462 = vpop.f32.mrb[0].mxu0
      %v4463 = vpop.f32.mrb[0].mxu0
      %v4464 = vadd.f32 0.0, %v4463
      %v4465 = vpop.f32.mrb[0].mxu0
      %4466 = vmatprep.mubr.bf16.mxu0 0
      %4467 = vmatmul.mubr.bf16.gmra.mrb[0].mxu0 %v4403
      %v4468 = vpop.f32.mrb[0].mxu0
      %v4469 = vadd.f32 0.0, %v4468
      %v4470 = vpop.f32.mrb[0].mxu0
      %v4471 = vpop.f32.mrb[0].mxu0
      %v4472 = vadd.f32 0.0, %v4471
      %v4473 = vpop.f32.mrb[0].mxu0
      %4474 = vmatprep.mubr.bf16.mxu0 0
      %4475 = vmatmul.mubr.bf16.gmra.mrb[0].mxu0 %v4406
      %v4476 = vpop.f32.mrb[0].mxu0
      %v4477 = vadd.f32 0.0, %v4476
      %v4478 = vpop.f32.mrb[0].mxu0
      %v4479 = vpop.f32.mrb[0].mxu0
      %v4480 = vadd.f32 0.0, %v4479
      %v4481 = vpop.f32.mrb[0].mxu0
      %4482 = vmatprep.mubr.bf16.mxu0 0
      %4483 = vmatmul.mubr.bf16.gmra.mrb[0].mxu0 %v4409
      %v4484 = vpop.f32.mrb[0].mxu0
      %v4485 = vadd.f32 0.0, %v4484
      %v4486 = vpop.f32.mrb[0].mxu0
      %v4487 = vpop.f32.mrb[0].mxu0
      %v4488 = vadd.f32 0.0, %v4487
      %v4489 = vpop.f32.mrb[0].mxu0
      %4490 = vmatprep.mubr.bf16.mxu0 0
      %4491 = vmatmul.mubr.bf16.gmra.mrb[0].mxu0 %v4412
      %v4492 = vpop.f32.mrb[0].mxu0
      %v4493 = vadd.f32 0.0, %v4492
      %v4494 = vpop.f32.mrb[0].mxu0
      %v4495 = vpop.f32.mrb[0].mxu0
      %v4496 = vadd.f32 0.0, %v4495
      %v4497 = vpop.f32.mrb[0].mxu0
      %4498 = vmatprep.mubr.bf16.mxu0 0
      %4499 = vmatmul.mubr.bf16.gmra.mrb[0].mxu0 %v4415
      %v4500 = vpop.f32.mrb[0].mxu0
      %v4501 = vadd.f32 0.0, %v4500
      %v4502 = vpop.f32.mrb[0].mxu0
      %v4503 = vpop.f32.mrb[0].mxu0
      %v4504 = vadd.f32 0.0, %v4503
      %v4505 = vpop.f32.mrb[0].mxu0
      %4506 = vmatprep.mubr.bf16.mxu0 0
      %4507 = vmatmul.mubr.bf16.gmra.mrb[0].mxu0 %v4418
      %v4508 = vpop.f32.mrb[0].mxu0
      %v4509 = vadd.f32 0.0, %v4508
      %v4510 = vpop.f32.mrb[0].mxu0
      %v4511 = vpop.f32.mrb[0].mxu0
      %v4512 = vadd.f32 0.0, %v4511
      %v4513 = vpop.f32.mrb[0].mxu0
      %4514 = vmatprep.mubr.bf16.mxu0 0
      %4515 = vmatmul.mubr.bf16.gmra.mrb[0].mxu0 %v4421
      %v4516 = vpop.f32.mrb[0].mxu0
      %v4517 = vadd.f32 0.0, %v4516
      %v4518 = vpop.f32.mrb[0].mxu0
      %v4519 = vpop.f32.mrb[0].mxu0
      %v4520 = vadd.f32 0.0, %v4519
      %v4521 = vpop.f32.mrb[0].mxu0
      %4522 = vdwg.mxu0
      %v4523 = vadd.f32 %v4231, %v4461
      %v4524 = vadd.f32 %v4234, %v4464
      %v4525 = vadd.f32 %v4239, %v4469
      %v4526 = vadd.f32 %v4242, %v4472
      %v4527 = vadd.f32 %v4247, %v4477
      %v4528 = vadd.f32 %v4250, %v4480
      %v4529 = vadd.f32 %v4255, %v4485
      %v4530 = vadd.f32 %v4258, %v4488
      %v4531 = vadd.f32 %v4263, %v4493
      %v4532 = vadd.f32 %v4266, %v4496
      %v4533 = vadd.f32 %v4271, %v4501
      %v4534 = vadd.f32 %v4274, %v4504
      %v4535 = vadd.f32 %v4279, %v4509
      %v4536 = vadd.f32 %v4282, %v4512
      %v4537 = vadd.f32 %v4287, %v4517
      %v4538 = vadd.f32 %v4290, %v4520
      %s4539 = scalar_lea.vmem [#allocation2], 12
      %v4540 = vld [vmem:[%s4539] sm:$0xf]
      %v4541 = vld [vmem:[%s4539 + $0x4] sm:$0xf]
      %v4542 = vld [vmem:[%s4539 + $0xc] sm:$0xf]
      %v4543 = vld [vmem:[%s4539 + $0x10] sm:$0xf]
      %v4544 = vld [vmem:[%s4539 + $0x18] sm:$0xf]
      %v4545 = vld [vmem:[%s4539 + $0x1c] sm:$0xf]
      %v4546 = vld [vmem:[%s4539 + $0x24] sm:$0xf]
      %v4547 = vld [vmem:[%s4539 + $0x28] sm:$0xf]
      %v4548 = vld [vmem:[%s4539 + $0x30] sm:$0xf]
      %v4549 = vld [vmem:[%s4539 + $0x34] sm:$0xf]
      %v4550 = vld [vmem:[%s4539 + $0x3c] sm:$0xf]
      %v4551 = vld [vmem:[%s4539 + $0x40] sm:$0xf]
      %v4552 = vld [vmem:[%s4539 + $0x48] sm:$0xf]
      %v4553 = vld [vmem:[%s4539 + $0x4c] sm:$0xf]
      %v4554 = vld [vmem:[%s4539 + $0x54] sm:$0xf]
      %v4555 = vld [vmem:[%s4539 + $0x58] sm:$0xf]
      %s4556 = scalar_lea.vmem %s3, 12
      %v4557 = vld [vmem:[%s4556] sm:$0xf]
      %v4574 = vunpack.c.l.b16 %v4540
      %v4575 = vunpack.c.l.b16 %v4541
      %v4576 = vunpack.c.l.b16 %v4542
      %v4577 = vunpack.c.l.b16 %v4543
      %v4578 = vunpack.c.l.b16 %v4544
      %v4579 = vunpack.c.l.b16 %v4545
      %v4580 = vunpack.c.l.b16 %v4546
      %v4581 = vunpack.c.l.b16 %v4547
      %v4582 = vunpack.c.l.b16 %v4548
      %v4583 = vunpack.c.l.b16 %v4549
      %v4584 = vunpack.c.l.b16 %v4550
      %v4585 = vunpack.c.l.b16 %v4551
      %v4586 = vunpack.c.l.b16 %v4552
      %v4587 = vunpack.c.l.b16 %v4553
      %v4588 = vunpack.c.l.b16 %v4554
      %v4589 = vunpack.c.l.b16 %v4555
      %v4590 = vpack.c.b16 %v4575, %v4574
      %v4591 = vpack.c.b16 %v4577, %v4576
      %v4592 = vpack.c.b16 %v4579, %v4578
      %v4593 = vpack.c.b16 %v4581, %v4580
      %v4594 = vpack.c.b16 %v4583, %v4582
      %v4595 = vpack.c.b16 %v4585, %v4584
      %v4596 = vpack.c.b16 %v4587, %v4586
      %v4597 = vpack.c.b16 %v4589, %v4588
      %v4599 = vsel %vm4003, %v4590, 0
      %v4602 = vsel %vm4003, %v4591, 0
      %v4605 = vsel %vm4003, %v4592, 0
      %v4608 = vsel %vm4003, %v4593, 0
      %v4611 = vsel %vm4003, %v4594, 0
      %v4614 = vsel %vm4003, %v4595, 0
      %v4617 = vsel %vm4003, %v4596, 0
      %v4620 = vsel %vm4003, %v4597, 0
      %v4623 = vsel %vm4028, %v4557, 0
      %4625 = vmatprep.subr.bf16.mxu0 0
      %4626 = vmatpush1.bf16.msra.mxu0 %v4623
      %4627 = vmatprep.subr.bf16.mxu0 0
      %4628 = vmatpush1.bf16.msra.mxu0 0
      %4629 = vmatprep.subr.bf16.mxu0 0
      %4630 = vmatpush1.bf16.msra.mxu0 0
      %4631 = vmatprep.subr.bf16.mxu0 0
      %4632 = vmatpush1.bf16.msra.mxu0 0
      %4633 = vmatprep.subr.bf16.mxu0 0
      %4634 = vmatpush1.bf16.msra.mxu0 0
      %4635 = vmatprep.subr.bf16.mxu0 0
      %4636 = vmatpush1.bf16.msra.mxu0 0
      %4637 = vmatprep.subr.bf16.mxu0 0
      %4638 = vmatpush1.bf16.msra.mxu0 0
      %4639 = vmatprep.subr.bf16.mxu0 0
      %4640 = vmatpush1.bf16.msra.mxu0 0
      %4641 = vmatprep.subr.bf16.mxu0 0
      %4642 = vmatpush1.bf16.msra.mxu0 0
      %4643 = vmatprep.subr.bf16.mxu0 0
      %4644 = vmatpush1.bf16.msra.mxu0 0
      %4645 = vmatprep.subr.bf16.mxu0 0
      %4646 = vmatpush1.bf16.msra.mxu0 0
      %4647 = vmatprep.subr.bf16.mxu0 0
      %4648 = vmatpush1.bf16.msra.mxu0 0
      %4649 = vmatprep.subr.bf16.mxu0 0
      %4650 = vmatpush1.bf16.msra.mxu0 0
      %4651 = vmatprep.subr.bf16.mxu0 0
      %4652 = vmatpush1.bf16.msra.mxu0 0
      %4653 = vmatprep.subr.bf16.mxu0 0
      %4654 = vmatpush1.bf16.msra.mxu0 0
      %4655 = vmatprep.subr.bf16.mxu0 0
      %4656 = vmatpush1.bf16.msra.mxu0 0
      %4657 = vmatprep.mubr.bf16.mxu0 0
      %4658 = vmatmul.mubr.bf16.gmra.mrb[0].mxu0 %v4599
      %v4659 = vpop.f32.mrb[0].mxu0
      %v4660 = vadd.f32 0.0, %v4659
      %v4661 = vpop.f32.mrb[0].mxu0
      %v4662 = vpop.f32.mrb[0].mxu0
      %v4663 = vadd.f32 0.0, %v4662
      %v4664 = vpop.f32.mrb[0].mxu0
      %4665 = vmatprep.mubr.bf16.mxu0 0
      %4666 = vmatmul.mubr.bf16.gmra.mrb[0].mxu0 %v4602
      %v4667 = vpop.f32.mrb[0].mxu0
      %v4668 = vadd.f32 0.0, %v4667
      %v4669 = vpop.f32.mrb[0].mxu0
      %v4670 = vpop.f32.mrb[0].mxu0
      %v4671 = vadd.f32 0.0, %v4670
      %v4672 = vpop.f32.mrb[0].mxu0
      %4673 = vmatprep.mubr.bf16.mxu0 0
      %4674 = vmatmul.mubr.bf16.gmra.mrb[0].mxu0 %v4605
      %v4675 = vpop.f32.mrb[0].mxu0
      %v4676 = vadd.f32 0.0, %v4675
      %v4677 = vpop.f32.mrb[0].mxu0
      %v4678 = vpop.f32.mrb[0].mxu0
      %v4679 = vadd.f32 0.0, %v4678
      %v4680 = vpop.f32.mrb[0].mxu0
      %4681 = vmatprep.mubr.bf16.mxu0 0
      %4682 = vmatmul.mubr.bf16.gmra.mrb[0].mxu0 %v4608
      %v4683 = vpop.f32.mrb[0].mxu0
      %v4684 = vadd.f32 0.0, %v4683
      %v4685 = vpop.f32.mrb[0].mxu0
      %v4686 = vpop.f32.mrb[0].mxu0
      %v4687 = vadd.f32 0.0, %v4686
      %v4688 = vpop.f32.mrb[0].mxu0
      %4689 = vmatprep.mubr.bf16.mxu0 0
      %4690 = vmatmul.mubr.bf16.gmra.mrb[0].mxu0 %v4611
      %v4691 = vpop.f32.mrb[0].mxu0
      %v4692 = vadd.f32 0.0, %v4691
      %v4693 = vpop.f32.mrb[0].mxu0
      %v4694 = vpop.f32.mrb[0].mxu0
      %v4695 = vadd.f32 0.0, %v4694
      %v4696 = vpop.f32.mrb[0].mxu0
      %4697 = vmatprep.mubr.bf16.mxu0 0
      %4698 = vmatmul.mubr.bf16.gmra.mrb[0].mxu0 %v4614
      %v4699 = vpop.f32.mrb[0].mxu0
      %v4700 = vadd.f32 0.0, %v4699
      %v4701 = vpop.f32.mrb[0].mxu0
      %v4702 = vpop.f32.mrb[0].mxu0
      %v4703 = vadd.f32 0.0, %v4702
      %v4704 = vpop.f32.mrb[0].mxu0
      %4705 = vmatprep.mubr.bf16.mxu0 0
      %4706 = vmatmul.mubr.bf16.gmra.mrb[0].mxu0 %v4617
      %v4707 = vpop.f32.mrb[0].mxu0
      %v4708 = vadd.f32 0.0, %v4707
      %v4709 = vpop.f32.mrb[0].mxu0
      %v4710 = vpop.f32.mrb[0].mxu0
      %v4711 = vadd.f32 0.0, %v4710
      %v4712 = vpop.f32.mrb[0].mxu0
      %4713 = vmatprep.mubr.bf16.mxu0 0
      %4714 = vmatmul.mubr.bf16.gmra.mrb[0].mxu0 %v4620
      %v4715 = vpop.f32.mrb[0].mxu0
      %v4716 = vadd.f32 0.0, %v4715
      %v4717 = vpop.f32.mrb[0].mxu0
      %v4718 = vpop.f32.mrb[0].mxu0
      %v4719 = vadd.f32 0.0, %v4718
      %v4720 = vpop.f32.mrb[0].mxu0
      %4721 = vdwg.mxu0
      %v4722 = vadd.f32 %v4523, %v4660
      %v4723 = vadd.f32 %v4524, %v4663
      %v4724 = vadd.f32 %v4525, %v4668
      %v4725 = vadd.f32 %v4526, %v4671
      %v4726 = vadd.f32 %v4527, %v4676
      %v4727 = vadd.f32 %v4528, %v4679
      %v4728 = vadd.f32 %v4529, %v4684
      %v4729 = vadd.f32 %v4530, %v4687
      %v4730 = vadd.f32 %v4531, %v4692
      %v4731 = vadd.f32 %v4532, %v4695
      %v4732 = vadd.f32 %v4533, %v4700
      %v4733 = vadd.f32 %v4534, %v4703
      %v4734 = vadd.f32 %v4535, %v4708
      %v4735 = vadd.f32 %v4536, %v4711
      %v4736 = vadd.f32 %v4537, %v4716
      %v4737 = vadd.f32 %v4538, %v4719
      %v4738 = vld [vmem:[%s4539] sm:$0xf]
      %v4739 = vld [vmem:[%s4539 + $0x4] sm:$0xf]
      %v4740 = vld [vmem:[%s4539 + $0x8] sm:$0x1]
      %v4741 = vld [vmem:[%s4539 + $0xc] sm:$0xf]
      %v4742 = vld [vmem:[%s4539 + $0x10] sm:$0xf]
      %v4743 = vld [vmem:[%s4539 + $0x14] sm:$0x1]
      %v4744 = vld [vmem:[%s4539 + $0x18] sm:$0xf]
      %v4745 = vld [vmem:[%s4539 + $0x1c] sm:$0xf]
      %v4746 = vld [vmem:[%s4539 + $0x20] sm:$0x1]
      %v4747 = vld [vmem:[%s4539 + $0x24] sm:$0xf]
      %v4748 = vld [vmem:[%s4539 + $0x28] sm:$0xf]
      %v4749 = vld [vmem:[%s4539 + $0x2c] sm:$0x1]
      %v4750 = vld [vmem:[%s4539 + $0x30] sm:$0xf]
      %v4751 = vld [vmem:[%s4539 + $0x34] sm:$0xf]
      %v4752 = vld [vmem:[%s4539 + $0x38] sm:$0x1]
      %v4753 = vld [vmem:[%s4539 + $0x3c] sm:$0xf]
      %v4754 = vld [vmem:[%s4539 + $0x40] sm:$0xf]
      %v4755 = vld [vmem:[%s4539 + $0x44] sm:$0x1]
      %v4756 = vld [vmem:[%s4539 + $0x48] sm:$0xf]
      %v4757 = vld [vmem:[%s4539 + $0x4c] sm:$0xf]
      %v4758 = vld [vmem:[%s4539 + $0x50] sm:$0x1]
      %v4759 = vld [vmem:[%s4539 + $0x54] sm:$0xf]
      %v4760 = vld [vmem:[%s4539 + $0x58] sm:$0xf]
      %v4761 = vld [vmem:[%s4539 + $0x5c] sm:$0x1]
      %v4763 = vshrl.u32 %v4738, 16
      %v4765 = vrot.slane %v4763, 4
      %v4766 = vshll.u32 %v4738, 16
      %v4768 = vrot.slane %v4766, 5
      %v4769 = vor.u32 %v4765, %v4768
      %v4770 = vrot.slane %v4769, 4
      %v4772 = vshll.u32 %v4739, 16
      %v4774 = vrot.slane %v4772, 5
      %v4775 = vsel %vm342, %v4770, %v4774
      %v4776 = vshrl.u32 %v4739, 16
      %v4778 = vrot.slane %v4776, 4
      %v4779 = vor.u32 %v4778, %v4774
      %v4780 = vrot.slane %v4779, 4
      %v4782 = vshll.u32 %v4740, 16
      %v4784 = vrot.slane %v4782, 5
      %v4785 = vsel %vm342, %v4780, %v4784
      %v4787 = vshrl.u32 %v4741, 16
      %v4789 = vrot.slane %v4787, 4
      %v4790 = vshll.u32 %v4741, 16
      %v4792 = vrot.slane %v4790, 5
      %v4793 = vor.u32 %v4789, %v4792
      %v4794 = vrot.slane %v4793, 4
      %v4796 = vshll.u32 %v4742, 16
      %v4798 = vrot.slane %v4796, 5
      %v4799 = vsel %vm342, %v4794, %v4798
      %v4800 = vshrl.u32 %v4742, 16
      %v4802 = vrot.slane %v4800, 4
      %v4803 = vor.u32 %v4802, %v4798
      %v4804 = vrot.slane %v4803, 4
      %v4806 = vshll.u32 %v4743, 16
      %v4808 = vrot.slane %v4806, 5
      %v4809 = vsel %vm342, %v4804, %v4808
      %v4811 = vshrl.u32 %v4744, 16
      %v4813 = vrot.slane %v4811, 4
      %v4814 = vshll.u32 %v4744, 16
      %v4816 = vrot.slane %v4814, 5
      %v4817 = vor.u32 %v4813, %v4816
      %v4818 = vrot.slane %v4817, 4
      %v4820 = vshll.u32 %v4745, 16
      %v4822 = vrot.slane %v4820, 5
      %v4823 = vsel %vm342, %v4818, %v4822
      %v4824 = vshrl.u32 %v4745, 16
      %v4826 = vrot.slane %v4824, 4
      %v4827 = vor.u32 %v4826, %v4822
      %v4828 = vrot.slane %v4827, 4
      %v4830 = vshll.u32 %v4746, 16
      %v4832 = vrot.slane %v4830, 5
      %v4833 = vsel %vm342, %v4828, %v4832
      %v4835 = vshrl.u32 %v4747, 16
      %v4837 = vrot.slane %v4835, 4
      %v4838 = vshll.u32 %v4747, 16
      %v4840 = vrot.slane %v4838, 5
      %v4841 = vor.u32 %v4837, %v4840
      %v4842 = vrot.slane %v4841, 4
      %v4844 = vshll.u32 %v4748, 16
      %v4846 = vrot.slane %v4844, 5
      %v4847 = vsel %vm342, %v4842, %v4846
      %v4848 = vshrl.u32 %v4748, 16
      %v4850 = vrot.slane %v4848, 4
      %v4851 = vor.u32 %v4850, %v4846
      %v4852 = vrot.slane %v4851, 4
      %v4854 = vshll.u32 %v4749, 16
      %v4856 = vrot.slane %v4854, 5
      %v4857 = vsel %vm342, %v4852, %v4856
      %v4859 = vshrl.u32 %v4750, 16
      %v4861 = vrot.slane %v4859, 4
      %v4862 = vshll.u32 %v4750, 16
      %v4864 = vrot.slane %v4862, 5
      %v4865 = vor.u32 %v4861, %v4864
      %v4866 = vrot.slane %v4865, 4
      %v4868 = vshll.u32 %v4751, 16
      %v4870 = vrot.slane %v4868, 5
      %v4871 = vsel %vm342, %v4866, %v4870
      %v4872 = vshrl.u32 %v4751, 16
      %v4874 = vrot.slane %v4872, 4
      %v4875 = vor.u32 %v4874, %v4870
      %v4876 = vrot.slane %v4875, 4
      %v4878 = vshll.u32 %v4752, 16
      %v4880 = vrot.slane %v4878, 5
      %v4881 = vsel %vm342, %v4876, %v4880
      %v4883 = vshrl.u32 %v4753, 16
      %v4885 = vrot.slane %v4883, 4
      %v4886 = vshll.u32 %v4753, 16
      %v4888 = vrot.slane %v4886, 5
      %v4889 = vor.u32 %v4885, %v4888
      %v4890 = vrot.slane %v4889, 4
      %v4892 = vshll.u32 %v4754, 16
      %v4894 = vrot.slane %v4892, 5
      %v4895 = vsel %vm342, %v4890, %v4894
      %v4896 = vshrl.u32 %v4754, 16
      %v4898 = vrot.slane %v4896, 4
      %v4899 = vor.u32 %v4898, %v4894
      %v4900 = vrot.slane %v4899, 4
      %v4902 = vshll.u32 %v4755, 16
      %v4904 = vrot.slane %v4902, 5
      %v4905 = vsel %vm342, %v4900, %v4904
      %v4907 = vshrl.u32 %v4756, 16
      %v4909 = vrot.slane %v4907, 4
      %v4910 = vshll.u32 %v4756, 16
      %v4912 = vrot.slane %v4910, 5
      %v4913 = vor.u32 %v4909, %v4912
      %v4914 = vrot.slane %v4913, 4
      %v4916 = vshll.u32 %v4757, 16
      %v4918 = vrot.slane %v4916, 5
      %v4919 = vsel %vm342, %v4914, %v4918
      %v4920 = vshrl.u32 %v4757, 16
      %v4922 = vrot.slane %v4920, 4
      %v4923 = vor.u32 %v4922, %v4918
      %v4924 = vrot.slane %v4923, 4
      %v4926 = vshll.u32 %v4758, 16
      %v4928 = vrot.slane %v4926, 5
      %v4929 = vsel %vm342, %v4924, %v4928
      %v4931 = vshrl.u32 %v4759, 16
      %v4933 = vrot.slane %v4931, 4
      %v4934 = vshll.u32 %v4759, 16
      %v4936 = vrot.slane %v4934, 5
      %v4937 = vor.u32 %v4933, %v4936
      %v4938 = vrot.slane %v4937, 4
      %v4940 = vshll.u32 %v4760, 16
      %v4942 = vrot.slane %v4940, 5
      %v4943 = vsel %vm342, %v4938, %v4942
      %v4944 = vshrl.u32 %v4760, 16
      %v4946 = vrot.slane %v4944, 4
      %v4947 = vor.u32 %v4946, %v4942
      %v4948 = vrot.slane %v4947, 4
      %v4950 = vshll.u32 %v4761, 16
      %v4952 = vrot.slane %v4950, 5
      %v4953 = vsel %vm342, %v4948, %v4952
      %s4954 = scalar_lea.vmem %s3, 16
      %v4955 = vld [vmem:[%s4954] sm:$0xf]
      %v4956 = vunpack.c.l.b16 %v4775
      %v4957 = vunpack.c.l.b16 %v4785
      %v4958 = vunpack.c.l.b16 %v4799
      %v4959 = vunpack.c.l.b16 %v4809
      %v4960 = vunpack.c.l.b16 %v4823
      %v4961 = vunpack.c.l.b16 %v4833
      %v4962 = vunpack.c.l.b16 %v4847
      %v4963 = vunpack.c.l.b16 %v4857
      %v4964 = vunpack.c.l.b16 %v4871
      %v4965 = vunpack.c.l.b16 %v4881
      %v4966 = vunpack.c.l.b16 %v4895
      %v4967 = vunpack.c.l.b16 %v4905
      %v4968 = vunpack.c.l.b16 %v4919
      %v4969 = vunpack.c.l.b16 %v4929
      %v4970 = vunpack.c.l.b16 %v4943
      %v4971 = vunpack.c.l.b16 %v4953
      %v4972 = vpack.c.b16 %v4957, %v4956
      %v4973 = vpack.c.b16 %v4959, %v4958
      %v4974 = vpack.c.b16 %v4961, %v4960
      %v4975 = vpack.c.b16 %v4963, %v4962
      %v4976 = vpack.c.b16 %v4965, %v4964
      %v4977 = vpack.c.b16 %v4967, %v4966
      %v4978 = vpack.c.b16 %v4969, %v4968
      %v4979 = vpack.c.b16 %v4971, %v4970
      %v4981 = vsel %vm4003, %v4972, 0
      %v4984 = vsel %vm4003, %v4973, 0
      %v4987 = vsel %vm4003, %v4974, 0
      %v4990 = vsel %vm4003, %v4975, 0
      %v4993 = vsel %vm4003, %v4976, 0
      %v4996 = vsel %vm4003, %v4977, 0
      %v4999 = vsel %vm4003, %v4978, 0
      %v5002 = vsel %vm4003, %v4979, 0
      %v5005 = vsel %vm4028, %v4955, 0
      %5007 = vmatprep.subr.bf16.mxu0 0
      %5008 = vmatpush1.bf16.msra.mxu0 %v5005
      %5009 = vmatprep.subr.bf16.mxu0 0
      %5010 = vmatpush1.bf16.msra.mxu0 0
      %5011 = vmatprep.subr.bf16.mxu0 0
      %5012 = vmatpush1.bf16.msra.mxu0 0
      %5013 = vmatprep.subr.bf16.mxu0 0
      %5014 = vmatpush1.bf16.msra.mxu0 0
      %5015 = vmatprep.subr.bf16.mxu0 0
      %5016 = vmatpush1.bf16.msra.mxu0 0
      %5017 = vmatprep.subr.bf16.mxu0 0
      %5018 = vmatpush1.bf16.msra.mxu0 0
      %5019 = vmatprep.subr.bf16.mxu0 0
      %5020 = vmatpush1.bf16.msra.mxu0 0
      %5021 = vmatprep.subr.bf16.mxu0 0
      %5022 = vmatpush1.bf16.msra.mxu0 0
      %5023 = vmatprep.subr.bf16.mxu0 0
      %5024 = vmatpush1.bf16.msra.mxu0 0
      %5025 = vmatprep.subr.bf16.mxu0 0
      %5026 = vmatpush1.bf16.msra.mxu0 0
      %5027 = vmatprep.subr.bf16.mxu0 0
      %5028 = vmatpush1.bf16.msra.mxu0 0
      %5029 = vmatprep.subr.bf16.mxu0 0
      %5030 = vmatpush1.bf16.msra.mxu0 0
      %5031 = vmatprep.subr.bf16.mxu0 0
      %5032 = vmatpush1.bf16.msra.mxu0 0
      %5033 = vmatprep.subr.bf16.mxu0 0
      %5034 = vmatpush1.bf16.msra.mxu0 0
      %5035 = vmatprep.subr.bf16.mxu0 0
      %5036 = vmatpush1.bf16.msra.mxu0 0
      %5037 = vmatprep.subr.bf16.mxu0 0
      %5038 = vmatpush1.bf16.msra.mxu0 0
      %5039 = vmatprep.mubr.bf16.mxu0 0
      %5040 = vmatmul.mubr.bf16.gmra.mrb[0].mxu0 %v4981
      %v5041 = vpop.f32.mrb[0].mxu0
      %v5042 = vadd.f32 0.0, %v5041
      %v5043 = vpop.f32.mrb[0].mxu0
      %v5044 = vpop.f32.mrb[0].mxu0
      %v5045 = vadd.f32 0.0, %v5044
      %v5046 = vpop.f32.mrb[0].mxu0
      %5047 = vmatprep.mubr.bf16.mxu0 0
      %5048 = vmatmul.mubr.bf16.gmra.mrb[0].mxu0 %v4984
      %v5049 = vpop.f32.mrb[0].mxu0
      %v5050 = vadd.f32 0.0, %v5049
      %v5051 = vpop.f32.mrb[0].mxu0
      %v5052 = vpop.f32.mrb[0].mxu0
      %v5053 = vadd.f32 0.0, %v5052
      %v5054 = vpop.f32.mrb[0].mxu0
      %5055 = vmatprep.mubr.bf16.mxu0 0
      %5056 = vmatmul.mubr.bf16.gmra.mrb[0].mxu0 %v4987
      %v5057 = vpop.f32.mrb[0].mxu0
      %v5058 = vadd.f32 0.0, %v5057
      %v5059 = vpop.f32.mrb[0].mxu0
      %v5060 = vpop.f32.mrb[0].mxu0
      %v5061 = vadd.f32 0.0, %v5060
      %v5062 = vpop.f32.mrb[0].mxu0
      %5063 = vmatprep.mubr.bf16.mxu0 0
      %5064 = vmatmul.mubr.bf16.gmra.mrb[0].mxu0 %v4990
      %v5065 = vpop.f32.mrb[0].mxu0
      %v5066 = vadd.f32 0.0, %v5065
      %v5067 = vpop.f32.mrb[0].mxu0
      %v5068 = vpop.f32.mrb[0].mxu0
      %v5069 = vadd.f32 0.0, %v5068
      %v5070 = vpop.f32.mrb[0].mxu0
      %5071 = vmatprep.mubr.bf16.mxu0 0
      %5072 = vmatmul.mubr.bf16.gmra.mrb[0].mxu0 %v4993
      %v5073 = vpop.f32.mrb[0].mxu0
      %v5074 = vadd.f32 0.0, %v5073
      %v5075 = vpop.f32.mrb[0].mxu0
      %v5076 = vpop.f32.mrb[0].mxu0
      %v5077 = vadd.f32 0.0, %v5076
      %v5078 = vpop.f32.mrb[0].mxu0
      %5079 = vmatprep.mubr.bf16.mxu0 0
      %5080 = vmatmul.mubr.bf16.gmra.mrb[0].mxu0 %v4996
      %v5081 = vpop.f32.mrb[0].mxu0
      %v5082 = vadd.f32 0.0, %v5081
      %v5083 = vpop.f32.mrb[0].mxu0
      %v5084 = vpop.f32.mrb[0].mxu0
      %v5085 = vadd.f32 0.0, %v5084
      %v5086 = vpop.f32.mrb[0].mxu0
      %5087 = vmatprep.mubr.bf16.mxu0 0
      %5088 = vmatmul.mubr.bf16.gmra.mrb[0].mxu0 %v4999
      %v5089 = vpop.f32.mrb[0].mxu0
      %v5090 = vadd.f32 0.0, %v5089
      %v5091 = vpop.f32.mrb[0].mxu0
      %v5092 = vpop.f32.mrb[0].mxu0
      %v5093 = vadd.f32 0.0, %v5092
      %v5094 = vpop.f32.mrb[0].mxu0
      %5095 = vmatprep.mubr.bf16.mxu0 0
      %5096 = vmatmul.mubr.bf16.gmra.mrb[0].mxu0 %v5002
      %v5097 = vpop.f32.mrb[0].mxu0
      %v5098 = vadd.f32 0.0, %v5097
      %v5099 = vpop.f32.mrb[0].mxu0
      %v5100 = vpop.f32.mrb[0].mxu0
      %v5101 = vadd.f32 0.0, %v5100
      %v5102 = vpop.f32.mrb[0].mxu0
      %5103 = vdwg.mxu0
      %v5104 = vadd.f32 %v4722, %v5042
      %v5105 = vadd.f32 %v4723, %v5045
      %v5106 = vadd.f32 %v4724, %v5050
      %v5107 = vadd.f32 %v4725, %v5053
      %v5108 = vadd.f32 %v4726, %v5058
      %v5109 = vadd.f32 %v4727, %v5061
      %v5110 = vadd.f32 %v4728, %v5066
      %v5111 = vadd.f32 %v4729, %v5069
      %v5112 = vadd.f32 %v4730, %v5074
      %v5113 = vadd.f32 %v4731, %v5077
      %v5114 = vadd.f32 %v4732, %v5082
      %v5115 = vadd.f32 %v4733, %v5085
      %v5116 = vadd.f32 %v4734, %v5090
      %v5117 = vadd.f32 %v4735, %v5093
      %v5118 = vadd.f32 %v4736, %v5098
      %v5119 = vadd.f32 %v4737, %v5101
      %v5120 = vld [vmem:[%s4539] sm:$0xe]
      %v5121 = vld [vmem:[%s4539 + $0xc] sm:$0xe]
      %v5122 = vld [vmem:[%s4539 + $0x18] sm:$0xe]
      %v5123 = vld [vmem:[%s4539 + $0x24] sm:$0xe]
      %v5124 = vld [vmem:[%s4539 + $0x30] sm:$0xe]
      %v5125 = vld [vmem:[%s4539 + $0x3c] sm:$0xe]
      %v5126 = vld [vmem:[%s4539 + $0x48] sm:$0xe]
      %v5127 = vld [vmem:[%s4539 + $0x54] sm:$0xe]
      %v5152 = vrot.slane %v5120, 5
      %v5153 = vrot.slane %v5152, 4
      %v5154 = vrot.slane %v4739, 5
      %v5155 = vsel %vm991, %v5153, %v5154
      %v5156 = vrot.slane %v5154, 4
      %v5157 = vrot.slane %v4740, 5
      %v5158 = vsel %vm991, %v5156, %v5157
      %v5159 = vrot.slane %v5121, 5
      %v5160 = vrot.slane %v5159, 4
      %v5161 = vrot.slane %v4742, 5
      %v5162 = vsel %vm991, %v5160, %v5161
      %v5163 = vrot.slane %v5161, 4
      %v5164 = vrot.slane %v4743, 5
      %v5165 = vsel %vm991, %v5163, %v5164
      %v5166 = vrot.slane %v5122, 5
      %v5167 = vrot.slane %v5166, 4
      %v5168 = vrot.slane %v4745, 5
      %v5169 = vsel %vm991, %v5167, %v5168
      %v5170 = vrot.slane %v5168, 4
      %v5171 = vrot.slane %v4746, 5
      %v5172 = vsel %vm991, %v5170, %v5171
      %v5173 = vrot.slane %v5123, 5
      %v5174 = vrot.slane %v5173, 4
      %v5175 = vrot.slane %v4748, 5
      %v5176 = vsel %vm991, %v5174, %v5175
      %v5177 = vrot.slane %v5175, 4
      %v5178 = vrot.slane %v4749, 5
      %v5179 = vsel %vm991, %v5177, %v5178
      %v5180 = vrot.slane %v5124, 5
      %v5181 = vrot.slane %v5180, 4
      %v5182 = vrot.slane %v4751, 5
      %v5183 = vsel %vm991, %v5181, %v5182
      %v5184 = vrot.slane %v5182, 4
      %v5185 = vrot.slane %v4752, 5
      %v5186 = vsel %vm991, %v5184, %v5185
      %v5187 = vrot.slane %v5125, 5
      %v5188 = vrot.slane %v5187, 4
      %v5189 = vrot.slane %v4754, 5
      %v5190 = vsel %vm991, %v5188, %v5189
      %v5191 = vrot.slane %v5189, 4
      %v5192 = vrot.slane %v4755, 5
      %v5193 = vsel %vm991, %v5191, %v5192
      %v5194 = vrot.slane %v5126, 5
      %v5195 = vrot.slane %v5194, 4
      %v5196 = vrot.slane %v4757, 5
      %v5197 = vsel %vm991, %v5195, %v5196
      %v5198 = vrot.slane %v5196, 4
      %v5199 = vrot.slane %v4758, 5
      %v5200 = vsel %vm991, %v5198, %v5199
      %v5201 = vrot.slane %v5127, 5
      %v5202 = vrot.slane %v5201, 4
      %v5203 = vrot.slane %v4760, 5
      %v5204 = vsel %vm991, %v5202, %v5203
      %v5205 = vrot.slane %v5203, 4
      %v5206 = vrot.slane %v4761, 5
      %v5207 = vsel %vm991, %v5205, %v5206
      %s5208 = scalar_lea.vmem %s3, 20
      %v5209 = vld [vmem:[%s5208] sm:$0xf]
      %v5210 = vunpack.c.l.b16 %v5155
      %v5211 = vunpack.c.l.b16 %v5158
      %v5212 = vunpack.c.l.b16 %v5162
      %v5213 = vunpack.c.l.b16 %v5165
      %v5214 = vunpack.c.l.b16 %v5169
      %v5215 = vunpack.c.l.b16 %v5172
      %v5216 = vunpack.c.l.b16 %v5176
      %v5217 = vunpack.c.l.b16 %v5179
      %v5218 = vunpack.c.l.b16 %v5183
      %v5219 = vunpack.c.l.b16 %v5186
      %v5220 = vunpack.c.l.b16 %v5190
      %v5221 = vunpack.c.l.b16 %v5193
      %v5222 = vunpack.c.l.b16 %v5197
      %v5223 = vunpack.c.l.b16 %v5200
      %v5224 = vunpack.c.l.b16 %v5204
      %v5225 = vunpack.c.l.b16 %v5207
      %v5226 = vpack.c.b16 %v5211, %v5210
      %v5227 = vpack.c.b16 %v5213, %v5212
      %v5228 = vpack.c.b16 %v5215, %v5214
      %v5229 = vpack.c.b16 %v5217, %v5216
      %v5230 = vpack.c.b16 %v5219, %v5218
      %v5231 = vpack.c.b16 %v5221, %v5220
      %v5232 = vpack.c.b16 %v5223, %v5222
      %v5233 = vpack.c.b16 %v5225, %v5224
      %v5235 = vsel %vm4003, %v5226, 0
      %v5238 = vsel %vm4003, %v5227, 0
      %v5241 = vsel %vm4003, %v5228, 0
      %v5244 = vsel %vm4003, %v5229, 0
      %v5247 = vsel %vm4003, %v5230, 0
      %v5250 = vsel %vm4003, %v5231, 0
      %v5253 = vsel %vm4003, %v5232, 0
      %v5256 = vsel %vm4003, %v5233, 0
      %v5259 = vsel %vm4028, %v5209, 0
      %5261 = vmatprep.subr.bf16.mxu0 0
      %5262 = vmatpush1.bf16.msra.mxu0 %v5259
      %5263 = vmatprep.subr.bf16.mxu0 0
      %5264 = vmatpush1.bf16.msra.mxu0 0
      %5265 = vmatprep.subr.bf16.mxu0 0
      %5266 = vmatpush1.bf16.msra.mxu0 0
      %5267 = vmatprep.subr.bf16.mxu0 0
      %5268 = vmatpush1.bf16.msra.mxu0 0
      %5269 = vmatprep.subr.bf16.mxu0 0
      %5270 = vmatpush1.bf16.msra.mxu0 0
      %5271 = vmatprep.subr.bf16.mxu0 0
      %5272 = vmatpush1.bf16.msra.mxu0 0
      %5273 = vmatprep.subr.bf16.mxu0 0
      %5274 = vmatpush1.bf16.msra.mxu0 0
      %5275 = vmatprep.subr.bf16.mxu0 0
      %5276 = vmatpush1.bf16.msra.mxu0 0
      %5277 = vmatprep.subr.bf16.mxu0 0
      %5278 = vmatpush1.bf16.msra.mxu0 0
      %5279 = vmatprep.subr.bf16.mxu0 0
      %5280 = vmatpush1.bf16.msra.mxu0 0
      %5281 = vmatprep.subr.bf16.mxu0 0
      %5282 = vmatpush1.bf16.msra.mxu0 0
      %5283 = vmatprep.subr.bf16.mxu0 0
      %5284 = vmatpush1.bf16.msra.mxu0 0
      %5285 = vmatprep.subr.bf16.mxu0 0
      %5286 = vmatpush1.bf16.msra.mxu0 0
      %5287 = vmatprep.subr.bf16.mxu0 0
      %5288 = vmatpush1.bf16.msra.mxu0 0
      %5289 = vmatprep.subr.bf16.mxu0 0
      %5290 = vmatpush1.bf16.msra.mxu0 0
      %5291 = vmatprep.subr.bf16.mxu0 0
      %5292 = vmatpush1.bf16.msra.mxu0 0
      %5293 = vmatprep.mubr.bf16.mxu0 0
      %5294 = vmatmul.mubr.bf16.gmra.mrb[0].mxu0 %v5235
      %v5295 = vpop.f32.mrb[0].mxu0
      %v5296 = vadd.f32 0.0, %v5295
      %v5297 = vpop.f32.mrb[0].mxu0
      %v5298 = vpop.f32.mrb[0].mxu0
      %v5299 = vadd.f32 0.0, %v5298
      %v5300 = vpop.f32.mrb[0].mxu0
      %5301 = vmatprep.mubr.bf16.mxu0 0
      %5302 = vmatmul.mubr.bf16.gmra.mrb[0].mxu0 %v5238
      %v5303 = vpop.f32.mrb[0].mxu0
      %v5304 = vadd.f32 0.0, %v5303
      %v5305 = vpop.f32.mrb[0].mxu0
      %v5306 = vpop.f32.mrb[0].mxu0
      %v5307 = vadd.f32 0.0, %v5306
      %v5308 = vpop.f32.mrb[0].mxu0
      %5309 = vmatprep.mubr.bf16.mxu0 0
      %5310 = vmatmul.mubr.bf16.gmra.mrb[0].mxu0 %v5241
      %v5311 = vpop.f32.mrb[0].mxu0
      %v5312 = vadd.f32 0.0, %v5311
      %v5313 = vpop.f32.mrb[0].mxu0
      %v5314 = vpop.f32.mrb[0].mxu0
      %v5315 = vadd.f32 0.0, %v5314
      %v5316 = vpop.f32.mrb[0].mxu0
      %5317 = vmatprep.mubr.bf16.mxu0 0
      %5318 = vmatmul.mubr.bf16.gmra.mrb[0].mxu0 %v5244
      %v5319 = vpop.f32.mrb[0].mxu0
      %v5320 = vadd.f32 0.0, %v5319
      %v5321 = vpop.f32.mrb[0].mxu0
      %v5322 = vpop.f32.mrb[0].mxu0
      %v5323 = vadd.f32 0.0, %v5322
      %v5324 = vpop.f32.mrb[0].mxu0
      %5325 = vmatprep.mubr.bf16.mxu0 0
      %5326 = vmatmul.mubr.bf16.gmra.mrb[0].mxu0 %v5247
      %v5327 = vpop.f32.mrb[0].mxu0
      %v5328 = vadd.f32 0.0, %v5327
      %v5329 = vpop.f32.mrb[0].mxu0
      %v5330 = vpop.f32.mrb[0].mxu0
      %v5331 = vadd.f32 0.0, %v5330
      %v5332 = vpop.f32.mrb[0].mxu0
      %5333 = vmatprep.mubr.bf16.mxu0 0
      %5334 = vmatmul.mubr.bf16.gmra.mrb[0].mxu0 %v5250
      %v5335 = vpop.f32.mrb[0].mxu0
      %v5336 = vadd.f32 0.0, %v5335
      %v5337 = vpop.f32.mrb[0].mxu0
      %v5338 = vpop.f32.mrb[0].mxu0
      %v5339 = vadd.f32 0.0, %v5338
      %v5340 = vpop.f32.mrb[0].mxu0
      %5341 = vmatprep.mubr.bf16.mxu0 0
      %5342 = vmatmul.mubr.bf16.gmra.mrb[0].mxu0 %v5253
      %v5343 = vpop.f32.mrb[0].mxu0
      %v5344 = vadd.f32 0.0, %v5343
      %v5345 = vpop.f32.mrb[0].mxu0
      %v5346 = vpop.f32.mrb[0].mxu0
      %v5347 = vadd.f32 0.0, %v5346
      %v5348 = vpop.f32.mrb[0].mxu0
      %5349 = vmatprep.mubr.bf16.mxu0 0
      %5350 = vmatmul.mubr.bf16.gmra.mrb[0].mxu0 %v5256
      %v5351 = vpop.f32.mrb[0].mxu0
      %v5352 = vadd.f32 0.0, %v5351
      %v5353 = vpop.f32.mrb[0].mxu0
      %v5354 = vpop.f32.mrb[0].mxu0
      %v5355 = vadd.f32 0.0, %v5354
      %v5356 = vpop.f32.mrb[0].mxu0
      %5357 = vdwg.mxu0
      %v5358 = vadd.f32 %v5104, %v5296
      %v5359 = vadd.f32 %v5105, %v5299
      %v5360 = vadd.f32 %v5106, %v5304
      %v5361 = vadd.f32 %v5107, %v5307
      %v5362 = vadd.f32 %v5108, %v5312
      %v5363 = vadd.f32 %v5109, %v5315
      %v5364 = vadd.f32 %v5110, %v5320
      %v5365 = vadd.f32 %v5111, %v5323
      %v5366 = vadd.f32 %v5112, %v5328
      %v5367 = vadd.f32 %v5113, %v5331
      %v5368 = vadd.f32 %v5114, %v5336
      %v5369 = vadd.f32 %v5115, %v5339
      %v5370 = vadd.f32 %v5116, %v5344
      %v5371 = vadd.f32 %v5117, %v5347
      %v5372 = vadd.f32 %v5118, %v5352
      %v5373 = vadd.f32 %v5119, %v5355
      %s5374 = scalar_lea.vmem [#allocation2], 24
      %v5375 = vld [vmem:[%s5374] sm:$0xf]
      %v5376 = vld [vmem:[%s5374 + $0x4] sm:$0xf]
      %v5377 = vld [vmem:[%s5374 + $0xc] sm:$0xf]
      %v5378 = vld [vmem:[%s5374 + $0x10] sm:$0xf]
      %v5379 = vld [vmem:[%s5374 + $0x18] sm:$0xf]
      %v5380 = vld [vmem:[%s5374 + $0x1c] sm:$0xf]
      %v5381 = vld [vmem:[%s5374 + $0x24] sm:$0xf]
      %v5382 = vld [vmem:[%s5374 + $0x28] sm:$0xf]
      %v5383 = vld [vmem:[%s5374 + $0x30] sm:$0xf]
      %v5384 = vld [vmem:[%s5374 + $0x34] sm:$0xf]
      %v5385 = vld [vmem:[%s5374 + $0x3c] sm:$0xf]
      %v5386 = vld [vmem:[%s5374 + $0x40] sm:$0xf]
      %v5387 = vld [vmem:[%s5374 + $0x48] sm:$0xf]
      %v5388 = vld [vmem:[%s5374 + $0x4c] sm:$0xf]
      %v5389 = vld [vmem:[%s5374 + $0x54] sm:$0xf]
      %v5390 = vld [vmem:[%s5374 + $0x58] sm:$0xf]
      %s5391 = scalar_lea.vmem %s3, 24
      %v5392 = vld [vmem:[%s5391] sm:$0xf]
      %v5409 = vunpack.c.l.b16 %v5375
      %v5410 = vunpack.c.l.b16 %v5376
      %v5411 = vunpack.c.l.b16 %v5377
      %v5412 = vunpack.c.l.b16 %v5378
      %v5413 = vunpack.c.l.b16 %v5379
      %v5414 = vunpack.c.l.b16 %v5380
      %v5415 = vunpack.c.l.b16 %v5381
      %v5416 = vunpack.c.l.b16 %v5382
      %v5417 = vunpack.c.l.b16 %v5383
      %v5418 = vunpack.c.l.b16 %v5384
      %v5419 = vunpack.c.l.b16 %v5385
      %v5420 = vunpack.c.l.b16 %v5386
      %v5421 = vunpack.c.l.b16 %v5387
      %v5422 = vunpack.c.l.b16 %v5388
      %v5423 = vunpack.c.l.b16 %v5389
      %v5424 = vunpack.c.l.b16 %v5390
      %v5425 = vpack.c.b16 %v5410, %v5409
      %v5426 = vpack.c.b16 %v5412, %v5411
      %v5427 = vpack.c.b16 %v5414, %v5413
      %v5428 = vpack.c.b16 %v5416, %v5415
      %v5429 = vpack.c.b16 %v5418, %v5417
      %v5430 = vpack.c.b16 %v5420, %v5419
      %v5431 = vpack.c.b16 %v5422, %v5421
      %v5432 = vpack.c.b16 %v5424, %v5423
      %v5434 = vsel %vm4003, %v5425, 0
      %v5437 = vsel %vm4003, %v5426, 0
      %v5440 = vsel %vm4003, %v5427, 0
      %v5443 = vsel %vm4003, %v5428, 0
      %v5446 = vsel %vm4003, %v5429, 0
      %v5449 = vsel %vm4003, %v5430, 0
      %v5452 = vsel %vm4003, %v5431, 0
      %v5455 = vsel %vm4003, %v5432, 0
      %v5458 = vsel %vm4028, %v5392, 0
      %5460 = vmatprep.subr.bf16.mxu0 0
      %5461 = vmatpush1.bf16.msra.mxu0 %v5458
      %5462 = vmatprep.subr.bf16.mxu0 0
      %5463 = vmatpush1.bf16.msra.mxu0 0
      %5464 = vmatprep.subr.bf16.mxu0 0
      %5465 = vmatpush1.bf16.msra.mxu0 0
      %5466 = vmatprep.subr.bf16.mxu0 0
      %5467 = vmatpush1.bf16.msra.mxu0 0
      %5468 = vmatprep.subr.bf16.mxu0 0
      %5469 = vmatpush1.bf16.msra.mxu0 0
      %5470 = vmatprep.subr.bf16.mxu0 0
      %5471 = vmatpush1.bf16.msra.mxu0 0
      %5472 = vmatprep.subr.bf16.mxu0 0
      %5473 = vmatpush1.bf16.msra.mxu0 0
      %5474 = vmatprep.subr.bf16.mxu0 0
      %5475 = vmatpush1.bf16.msra.mxu0 0
      %5476 = vmatprep.subr.bf16.mxu0 0
      %5477 = vmatpush1.bf16.msra.mxu0 0
      %5478 = vmatprep.subr.bf16.mxu0 0
      %5479 = vmatpush1.bf16.msra.mxu0 0
      %5480 = vmatprep.subr.bf16.mxu0 0
      %5481 = vmatpush1.bf16.msra.mxu0 0
      %5482 = vmatprep.subr.bf16.mxu0 0
      %5483 = vmatpush1.bf16.msra.mxu0 0
      %5484 = vmatprep.subr.bf16.mxu0 0
      %5485 = vmatpush1.bf16.msra.mxu0 0
      %5486 = vmatprep.subr.bf16.mxu0 0
      %5487 = vmatpush1.bf16.msra.mxu0 0
      %5488 = vmatprep.subr.bf16.mxu0 0
      %5489 = vmatpush1.bf16.msra.mxu0 0
      %5490 = vmatprep.subr.bf16.mxu0 0
      %5491 = vmatpush1.bf16.msra.mxu0 0
      %5492 = vmatprep.mubr.bf16.mxu0 0
      %5493 = vmatmul.mubr.bf16.gmra.mrb[0].mxu0 %v5434
      %v5494 = vpop.f32.mrb[0].mxu0
      %v5495 = vadd.f32 0.0, %v5494
      %v5496 = vpop.f32.mrb[0].mxu0
      %v5497 = vpop.f32.mrb[0].mxu0
      %v5498 = vadd.f32 0.0, %v5497
      %v5499 = vpop.f32.mrb[0].mxu0
      %5500 = vmatprep.mubr.bf16.mxu0 0
      %5501 = vmatmul.mubr.bf16.gmra.mrb[0].mxu0 %v5437
      %v5502 = vpop.f32.mrb[0].mxu0
      %v5503 = vadd.f32 0.0, %v5502
      %v5504 = vpop.f32.mrb[0].mxu0
      %v5505 = vpop.f32.mrb[0].mxu0
      %v5506 = vadd.f32 0.0, %v5505
      %v5507 = vpop.f32.mrb[0].mxu0
      %5508 = vmatprep.mubr.bf16.mxu0 0
      %5509 = vmatmul.mubr.bf16.gmra.mrb[0].mxu0 %v5440
      %v5510 = vpop.f32.mrb[0].mxu0
      %v5511 = vadd.f32 0.0, %v5510
      %v5512 = vpop.f32.mrb[0].mxu0
      %v5513 = vpop.f32.mrb[0].mxu0
      %v5514 = vadd.f32 0.0, %v5513
      %v5515 = vpop.f32.mrb[0].mxu0
      %5516 = vmatprep.mubr.bf16.mxu0 0
      %5517 = vmatmul.mubr.bf16.gmra.mrb[0].mxu0 %v5443
      %v5518 = vpop.f32.mrb[0].mxu0
      %v5519 = vadd.f32 0.0, %v5518
      %v5520 = vpop.f32.mrb[0].mxu0
      %v5521 = vpop.f32.mrb[0].mxu0
      %v5522 = vadd.f32 0.0, %v5521
      %v5523 = vpop.f32.mrb[0].mxu0
      %5524 = vmatprep.mubr.bf16.mxu0 0
      %5525 = vmatmul.mubr.bf16.gmra.mrb[0].mxu0 %v5446
      %v5526 = vpop.f32.mrb[0].mxu0
      %v5527 = vadd.f32 0.0, %v5526
      %v5528 = vpop.f32.mrb[0].mxu0
      %v5529 = vpop.f32.mrb[0].mxu0
      %v5530 = vadd.f32 0.0, %v5529
      %v5531 = vpop.f32.mrb[0].mxu0
      %5532 = vmatprep.mubr.bf16.mxu0 0
      %5533 = vmatmul.mubr.bf16.gmra.mrb[0].mxu0 %v5449
      %v5534 = vpop.f32.mrb[0].mxu0
      %v5535 = vadd.f32 0.0, %v5534
      %v5536 = vpop.f32.mrb[0].mxu0
      %v5537 = vpop.f32.mrb[0].mxu0
      %v5538 = vadd.f32 0.0, %v5537
      %v5539 = vpop.f32.mrb[0].mxu0
      %5540 = vmatprep.mubr.bf16.mxu0 0
      %5541 = vmatmul.mubr.bf16.gmra.mrb[0].mxu0 %v5452
      %v5542 = vpop.f32.mrb[0].mxu0
      %v5543 = vadd.f32 0.0, %v5542
      %v5544 = vpop.f32.mrb[0].mxu0
      %v5545 = vpop.f32.mrb[0].mxu0
      %v5546 = vadd.f32 0.0, %v5545
      %v5547 = vpop.f32.mrb[0].mxu0
      %5548 = vmatprep.mubr.bf16.mxu0 0
      %5549 = vmatmul.mubr.bf16.gmra.mrb[0].mxu0 %v5455
      %v5550 = vpop.f32.mrb[0].mxu0
      %v5551 = vadd.f32 0.0, %v5550
      %v5552 = vpop.f32.mrb[0].mxu0
      %v5553 = vpop.f32.mrb[0].mxu0
      %v5554 = vadd.f32 0.0, %v5553
      %v5555 = vpop.f32.mrb[0].mxu0
      %5556 = vdwg.mxu0
      %v5557 = vadd.f32 %v5358, %v5495
      %v5558 = vadd.f32 %v5359, %v5498
      %v5559 = vadd.f32 %v5360, %v5503
      %v5560 = vadd.f32 %v5361, %v5506
      %v5561 = vadd.f32 %v5362, %v5511
      %v5562 = vadd.f32 %v5363, %v5514
      %v5563 = vadd.f32 %v5364, %v5519
      %v5564 = vadd.f32 %v5365, %v5522
      %v5565 = vadd.f32 %v5366, %v5527
      %v5566 = vadd.f32 %v5367, %v5530
      %v5567 = vadd.f32 %v5368, %v5535
      %v5568 = vadd.f32 %v5369, %v5538
      %v5569 = vadd.f32 %v5370, %v5543
      %v5570 = vadd.f32 %v5371, %v5546
      %v5571 = vadd.f32 %v5372, %v5551
      %v5572 = vadd.f32 %v5373, %v5554
      %v5573 = vld [vmem:[%s5374] sm:$0xf]
      %v5574 = vld [vmem:[%s5374 + $0x4] sm:$0xf]
      %v5575 = vld [vmem:[%s5374 + $0x8] sm:$0x1]
      %v5576 = vld [vmem:[%s5374 + $0xc] sm:$0xf]
      %v5577 = vld [vmem:[%s5374 + $0x10] sm:$0xf]
      %v5578 = vld [vmem:[%s5374 + $0x14] sm:$0x1]
      %v5579 = vld [vmem:[%s5374 + $0x18] sm:$0xf]
      %v5580 = vld [vmem:[%s5374 + $0x1c] sm:$0xf]
      %v5581 = vld [vmem:[%s5374 + $0x20] sm:$0x1]
      %v5582 = vld [vmem:[%s5374 + $0x24] sm:$0xf]
      %v5583 = vld [vmem:[%s5374 + $0x28] sm:$0xf]
      %v5584 = vld [vmem:[%s5374 + $0x2c] sm:$0x1]
      %v5585 = vld [vmem:[%s5374 + $0x30] sm:$0xf]
      %v5586 = vld [vmem:[%s5374 + $0x34] sm:$0xf]
      %v5587 = vld [vmem:[%s5374 + $0x38] sm:$0x1]
      %v5588 = vld [vmem:[%s5374 + $0x3c] sm:$0xf]
      %v5589 = vld [vmem:[%s5374 + $0x40] sm:$0xf]
      %v5590 = vld [vmem:[%s5374 + $0x44] sm:$0x1]
      %v5591 = vld [vmem:[%s5374 + $0x48] sm:$0xf]
      %v5592 = vld [vmem:[%s5374 + $0x4c] sm:$0xf]
      %v5593 = vld [vmem:[%s5374 + $0x50] sm:$0x1]
      %v5594 = vld [vmem:[%s5374 + $0x54] sm:$0xf]
      %v5595 = vld [vmem:[%s5374 + $0x58] sm:$0xf]
      %v5596 = vld [vmem:[%s5374 + $0x5c] sm:$0x1]
      %v5598 = vshrl.u32 %v5573, 16
      %v5600 = vrot.slane %v5598, 4
      %v5601 = vshll.u32 %v5573, 16
      %v5603 = vrot.slane %v5601, 5
      %v5604 = vor.u32 %v5600, %v5603
      %v5605 = vrot.slane %v5604, 4
      %v5607 = vshll.u32 %v5574, 16
      %v5609 = vrot.slane %v5607, 5
      %v5610 = vsel %vm342, %v5605, %v5609
      %v5611 = vshrl.u32 %v5574, 16
      %v5613 = vrot.slane %v5611, 4
      %v5614 = vor.u32 %v5613, %v5609
      %v5615 = vrot.slane %v5614, 4
      %v5617 = vshll.u32 %v5575, 16
      %v5619 = vrot.slane %v5617, 5
      %v5620 = vsel %vm342, %v5615, %v5619
      %v5622 = vshrl.u32 %v5576, 16
      %v5624 = vrot.slane %v5622, 4
      %v5625 = vshll.u32 %v5576, 16
      %v5627 = vrot.slane %v5625, 5
      %v5628 = vor.u32 %v5624, %v5627
      %v5629 = vrot.slane %v5628, 4
      %v5631 = vshll.u32 %v5577, 16
      %v5633 = vrot.slane %v5631, 5
      %v5634 = vsel %vm342, %v5629, %v5633
      %v5635 = vshrl.u32 %v5577, 16
      %v5637 = vrot.slane %v5635, 4
      %v5638 = vor.u32 %v5637, %v5633
      %v5639 = vrot.slane %v5638, 4
      %v5641 = vshll.u32 %v5578, 16
      %v5643 = vrot.slane %v5641, 5
      %v5644 = vsel %vm342, %v5639, %v5643
      %v5646 = vshrl.u32 %v5579, 16
      %v5648 = vrot.slane %v5646, 4
      %v5649 = vshll.u32 %v5579, 16
      %v5651 = vrot.slane %v5649, 5
      %v5652 = vor.u32 %v5648, %v5651
      %v5653 = vrot.slane %v5652, 4
      %v5655 = vshll.u32 %v5580, 16
      %v5657 = vrot.slane %v5655, 5
      %v5658 = vsel %vm342, %v5653, %v5657
      %v5659 = vshrl.u32 %v5580, 16
      %v5661 = vrot.slane %v5659, 4
      %v5662 = vor.u32 %v5661, %v5657
      %v5663 = vrot.slane %v5662, 4
      %v5665 = vshll.u32 %v5581, 16
      %v5667 = vrot.slane %v5665, 5
      %v5668 = vsel %vm342, %v5663, %v5667
      %v5670 = vshrl.u32 %v5582, 16
      %v5672 = vrot.slane %v5670, 4
      %v5673 = vshll.u32 %v5582, 16
      %v5675 = vrot.slane %v5673, 5
      %v5676 = vor.u32 %v5672, %v5675
      %v5677 = vrot.slane %v5676, 4
      %v5679 = vshll.u32 %v5583, 16
      %v5681 = vrot.slane %v5679, 5
      %v5682 = vsel %vm342, %v5677, %v5681
      %v5683 = vshrl.u32 %v5583, 16
      %v5685 = vrot.slane %v5683, 4
      %v5686 = vor.u32 %v5685, %v5681
      %v5687 = vrot.slane %v5686, 4
      %v5689 = vshll.u32 %v5584, 16
      %v5691 = vrot.slane %v5689, 5
      %v5692 = vsel %vm342, %v5687, %v5691
      %v5694 = vshrl.u32 %v5585, 16
      %v5696 = vrot.slane %v5694, 4
      %v5697 = vshll.u32 %v5585, 16
      %v5699 = vrot.slane %v5697, 5
      %v5700 = vor.u32 %v5696, %v5699
      %v5701 = vrot.slane %v5700, 4
      %v5703 = vshll.u32 %v5586, 16
      %v5705 = vrot.slane %v5703, 5
      %v5706 = vsel %vm342, %v5701, %v5705
      %v5707 = vshrl.u32 %v5586, 16
      %v5709 = vrot.slane %v5707, 4
      %v5710 = vor.u32 %v5709, %v5705
      %v5711 = vrot.slane %v5710, 4
      %v5713 = vshll.u32 %v5587, 16
      %v5715 = vrot.slane %v5713, 5
      %v5716 = vsel %vm342, %v5711, %v5715
      %v5718 = vshrl.u32 %v5588, 16
      %v5720 = vrot.slane %v5718, 4
      %v5721 = vshll.u32 %v5588, 16
      %v5723 = vrot.slane %v5721, 5
      %v5724 = vor.u32 %v5720, %v5723
      %v5725 = vrot.slane %v5724, 4
      %v5727 = vshll.u32 %v5589, 16
      %v5729 = vrot.slane %v5727, 5
      %v5730 = vsel %vm342, %v5725, %v5729
      %v5731 = vshrl.u32 %v5589, 16
      %v5733 = vrot.slane %v5731, 4
      %v5734 = vor.u32 %v5733, %v5729
      %v5735 = vrot.slane %v5734, 4
      %v5737 = vshll.u32 %v5590, 16
      %v5739 = vrot.slane %v5737, 5
      %v5740 = vsel %vm342, %v5735, %v5739
      %v5742 = vshrl.u32 %v5591, 16
      %v5744 = vrot.slane %v5742, 4
      %v5745 = vshll.u32 %v5591, 16
      %v5747 = vrot.slane %v5745, 5
      %v5748 = vor.u32 %v5744, %v5747
      %v5749 = vrot.slane %v5748, 4
      %v5751 = vshll.u32 %v5592, 16
      %v5753 = vrot.slane %v5751, 5
      %v5754 = vsel %vm342, %v5749, %v5753
      %v5755 = vshrl.u32 %v5592, 16
      %v5757 = vrot.slane %v5755, 4
      %v5758 = vor.u32 %v5757, %v5753
      %v5759 = vrot.slane %v5758, 4
      %v5761 = vshll.u32 %v5593, 16
      %v5763 = vrot.slane %v5761, 5
      %v5764 = vsel %vm342, %v5759, %v5763
      %v5766 = vshrl.u32 %v5594, 16
      %v5768 = vrot.slane %v5766, 4
      %v5769 = vshll.u32 %v5594, 16
      %v5771 = vrot.slane %v5769, 5
      %v5772 = vor.u32 %v5768, %v5771
      %v5773 = vrot.slane %v5772, 4
      %v5775 = vshll.u32 %v5595, 16
      %v5777 = vrot.slane %v5775, 5
      %v5778 = vsel %vm342, %v5773, %v5777
      %v5779 = vshrl.u32 %v5595, 16
      %v5781 = vrot.slane %v5779, 4
      %v5782 = vor.u32 %v5781, %v5777
      %v5783 = vrot.slane %v5782, 4
      %v5785 = vshll.u32 %v5596, 16
      %v5787 = vrot.slane %v5785, 5
      %v5788 = vsel %vm342, %v5783, %v5787
      %s5789 = scalar_lea.vmem %s3, 28
      %v5790 = vld [vmem:[%s5789] sm:$0xf]
      %v5791 = vunpack.c.l.b16 %v5610
      %v5792 = vunpack.c.l.b16 %v5620
      %v5793 = vunpack.c.l.b16 %v5634
      %v5794 = vunpack.c.l.b16 %v5644
      %v5795 = vunpack.c.l.b16 %v5658
      %v5796 = vunpack.c.l.b16 %v5668
      %v5797 = vunpack.c.l.b16 %v5682
      %v5798 = vunpack.c.l.b16 %v5692
      %v5799 = vunpack.c.l.b16 %v5706
      %v5800 = vunpack.c.l.b16 %v5716
      %v5801 = vunpack.c.l.b16 %v5730
      %v5802 = vunpack.c.l.b16 %v5740
      %v5803 = vunpack.c.l.b16 %v5754
      %v5804 = vunpack.c.l.b16 %v5764
      %v5805 = vunpack.c.l.b16 %v5778
      %v5806 = vunpack.c.l.b16 %v5788
      %v5807 = vpack.c.b16 %v5792, %v5791
      %v5808 = vpack.c.b16 %v5794, %v5793
      %v5809 = vpack.c.b16 %v5796, %v5795
      %v5810 = vpack.c.b16 %v5798, %v5797
      %v5811 = vpack.c.b16 %v5800, %v5799
      %v5812 = vpack.c.b16 %v5802, %v5801
      %v5813 = vpack.c.b16 %v5804, %v5803
      %v5814 = vpack.c.b16 %v5806, %v5805
      %v5816 = vsel %vm4003, %v5807, 0
      %v5819 = vsel %vm4003, %v5808, 0
      %v5822 = vsel %vm4003, %v5809, 0
      %v5825 = vsel %vm4003, %v5810, 0
      %v5828 = vsel %vm4003, %v5811, 0
      %v5831 = vsel %vm4003, %v5812, 0
      %v5834 = vsel %vm4003, %v5813, 0
      %v5837 = vsel %vm4003, %v5814, 0
      %v5840 = vsel %vm4028, %v5790, 0
      %5842 = vmatprep.subr.bf16.mxu0 0
      %5843 = vmatpush1.bf16.msra.mxu0 %v5840
      %5844 = vmatprep.subr.bf16.mxu0 0
      %5845 = vmatpush1.bf16.msra.mxu0 0
      %5846 = vmatprep.subr.bf16.mxu0 0
      %5847 = vmatpush1.bf16.msra.mxu0 0
      %5848 = vmatprep.subr.bf16.mxu0 0
      %5849 = vmatpush1.bf16.msra.mxu0 0
      %5850 = vmatprep.subr.bf16.mxu0 0
      %5851 = vmatpush1.bf16.msra.mxu0 0
      %5852 = vmatprep.subr.bf16.mxu0 0
      %5853 = vmatpush1.bf16.msra.mxu0 0
      %5854 = vmatprep.subr.bf16.mxu0 0
      %5855 = vmatpush1.bf16.msra.mxu0 0
      %5856 = vmatprep.subr.bf16.mxu0 0
      %5857 = vmatpush1.bf16.msra.mxu0 0
      %5858 = vmatprep.subr.bf16.mxu0 0
      %5859 = vmatpush1.bf16.msra.mxu0 0
      %5860 = vmatprep.subr.bf16.mxu0 0
      %5861 = vmatpush1.bf16.msra.mxu0 0
      %5862 = vmatprep.subr.bf16.mxu0 0
      %5863 = vmatpush1.bf16.msra.mxu0 0
      %5864 = vmatprep.subr.bf16.mxu0 0
      %5865 = vmatpush1.bf16.msra.mxu0 0
      %5866 = vmatprep.subr.bf16.mxu0 0
      %5867 = vmatpush1.bf16.msra.mxu0 0
      %5868 = vmatprep.subr.bf16.mxu0 0
      %5869 = vmatpush1.bf16.msra.mxu0 0
      %5870 = vmatprep.subr.bf16.mxu0 0
      %5871 = vmatpush1.bf16.msra.mxu0 0
      %5872 = vmatprep.subr.bf16.mxu0 0
      %5873 = vmatpush1.bf16.msra.mxu0 0
      %5874 = vmatprep.mubr.bf16.mxu0 0
      %5875 = vmatmul.mubr.bf16.gmra.mrb[0].mxu0 %v5816
      %v5876 = vpop.f32.mrb[0].mxu0
      %v5877 = vadd.f32 0.0, %v5876
      %v5878 = vpop.f32.mrb[0].mxu0
      %v5879 = vpop.f32.mrb[0].mxu0
      %v5880 = vadd.f32 0.0, %v5879
      %v5881 = vpop.f32.mrb[0].mxu0
      %5882 = vmatprep.mubr.bf16.mxu0 0
      %5883 = vmatmul.mubr.bf16.gmra.mrb[0].mxu0 %v5819
      %v5884 = vpop.f32.mrb[0].mxu0
      %v5885 = vadd.f32 0.0, %v5884
      %v5886 = vpop.f32.mrb[0].mxu0
      %v5887 = vpop.f32.mrb[0].mxu0
      %v5888 = vadd.f32 0.0, %v5887
      %v5889 = vpop.f32.mrb[0].mxu0
      %5890 = vmatprep.mubr.bf16.mxu0 0
      %5891 = vmatmul.mubr.bf16.gmra.mrb[0].mxu0 %v5822
      %v5892 = vpop.f32.mrb[0].mxu0
      %v5893 = vadd.f32 0.0, %v5892
      %v5894 = vpop.f32.mrb[0].mxu0
      %v5895 = vpop.f32.mrb[0].mxu0
      %v5896 = vadd.f32 0.0, %v5895
      %v5897 = vpop.f32.mrb[0].mxu0
      %5898 = vmatprep.mubr.bf16.mxu0 0
      %5899 = vmatmul.mubr.bf16.gmra.mrb[0].mxu0 %v5825
      %v5900 = vpop.f32.mrb[0].mxu0
      %v5901 = vadd.f32 0.0, %v5900
      %v5902 = vpop.f32.mrb[0].mxu0
      %v5903 = vpop.f32.mrb[0].mxu0
      %v5904 = vadd.f32 0.0, %v5903
      %v5905 = vpop.f32.mrb[0].mxu0
      %5906 = vmatprep.mubr.bf16.mxu0 0
      %5907 = vmatmul.mubr.bf16.gmra.mrb[0].mxu0 %v5828
      %v5908 = vpop.f32.mrb[0].mxu0
      %v5909 = vadd.f32 0.0, %v5908
      %v5910 = vpop.f32.mrb[0].mxu0
      %v5911 = vpop.f32.mrb[0].mxu0
      %v5912 = vadd.f32 0.0, %v5911
      %v5913 = vpop.f32.mrb[0].mxu0
      %5914 = vmatprep.mubr.bf16.mxu0 0
      %5915 = vmatmul.mubr.bf16.gmra.mrb[0].mxu0 %v5831
      %v5916 = vpop.f32.mrb[0].mxu0
      %v5917 = vadd.f32 0.0, %v5916
      %v5918 = vpop.f32.mrb[0].mxu0
      %v5919 = vpop.f32.mrb[0].mxu0
      %v5920 = vadd.f32 0.0, %v5919
      %v5921 = vpop.f32.mrb[0].mxu0
      %5922 = vmatprep.mubr.bf16.mxu0 0
      %5923 = vmatmul.mubr.bf16.gmra.mrb[0].mxu0 %v5834
      %v5924 = vpop.f32.mrb[0].mxu0
      %v5925 = vadd.f32 0.0, %v5924
      %v5926 = vpop.f32.mrb[0].mxu0
      %v5927 = vpop.f32.mrb[0].mxu0
      %v5928 = vadd.f32 0.0, %v5927
      %v5929 = vpop.f32.mrb[0].mxu0
      %5930 = vmatprep.mubr.bf16.mxu0 0
      %5931 = vmatmul.mubr.bf16.gmra.mrb[0].mxu0 %v5837
      %v5932 = vpop.f32.mrb[0].mxu0
      %v5933 = vadd.f32 0.0, %v5932
      %v5934 = vpop.f32.mrb[0].mxu0
      %v5935 = vpop.f32.mrb[0].mxu0
      %v5936 = vadd.f32 0.0, %v5935
      %v5937 = vpop.f32.mrb[0].mxu0
      %5938 = vdwg.mxu0
      %v5939 = vadd.f32 %v5557, %v5877
      %v5940 = vadd.f32 %v5558, %v5880
      %v5941 = vadd.f32 %v5559, %v5885
      %v5942 = vadd.f32 %v5560, %v5888
      %v5943 = vadd.f32 %v5561, %v5893
      %v5944 = vadd.f32 %v5562, %v5896
      %v5945 = vadd.f32 %v5563, %v5901
      %v5946 = vadd.f32 %v5564, %v5904
      %v5947 = vadd.f32 %v5565, %v5909
      %v5948 = vadd.f32 %v5566, %v5912
      %v5949 = vadd.f32 %v5567, %v5917
      %v5950 = vadd.f32 %v5568, %v5920
      %v5951 = vadd.f32 %v5569, %v5925
      %v5952 = vadd.f32 %v5570, %v5928
      %v5953 = vadd.f32 %v5571, %v5933
      %v5954 = vadd.f32 %v5572, %v5936
      %v5955 = vld [vmem:[%s5374] sm:$0xe]
      %v5956 = vld [vmem:[%s5374 + $0xc] sm:$0xe]
      %v5957 = vld [vmem:[%s5374 + $0x18] sm:$0xe]
      %v5958 = vld [vmem:[%s5374 + $0x24] sm:$0xe]
      %v5959 = vld [vmem:[%s5374 + $0x30] sm:$0xe]
      %v5960 = vld [vmem:[%s5374 + $0x3c] sm:$0xe]
      %v5961 = vld [vmem:[%s5374 + $0x48] sm:$0xe]
      %v5962 = vld [vmem:[%s5374 + $0x54] sm:$0xe]
      %v5987 = vrot.slane %v5955, 5
      %v5988 = vrot.slane %v5987, 4
      %v5989 = vrot.slane %v5574, 5
      %v5990 = vsel %vm991, %v5988, %v5989
      %v5991 = vrot.slane %v5989, 4
      %v5992 = vrot.slane %v5575, 5
      %v5993 = vsel %vm991, %v5991, %v5992
      %v5994 = vrot.slane %v5956, 5
      %v5995 = vrot.slane %v5994, 4
      %v5996 = vrot.slane %v5577, 5
      %v5997 = vsel %vm991, %v5995, %v5996
      %v5998 = vrot.slane %v5996, 4
      %v5999 = vrot.slane %v5578, 5
      %v6000 = vsel %vm991, %v5998, %v5999
      %v6001 = vrot.slane %v5957, 5
      %v6002 = vrot.slane %v6001, 4
      %v6003 = vrot.slane %v5580, 5
      %v6004 = vsel %vm991, %v6002, %v6003
      %v6005 = vrot.slane %v6003, 4
      %v6006 = vrot.slane %v5581, 5
      %v6007 = vsel %vm991, %v6005, %v6006
      %v6008 = vrot.slane %v5958, 5
      %v6009 = vrot.slane %v6008, 4
      %v6010 = vrot.slane %v5583, 5
      %v6011 = vsel %vm991, %v6009, %v6010
      %v6012 = vrot.slane %v6010, 4
      %v6013 = vrot.slane %v5584, 5
      %v6014 = vsel %vm991, %v6012, %v6013
      %v6015 = vrot.slane %v5959, 5
      %v6016 = vrot.slane %v6015, 4
      %v6017 = vrot.slane %v5586, 5
      %v6018 = vsel %vm991, %v6016, %v6017
      %v6019 = vrot.slane %v6017, 4
      %v6020 = vrot.slane %v5587, 5
      %v6021 = vsel %vm991, %v6019, %v6020
      %v6022 = vrot.slane %v5960, 5
      %v6023 = vrot.slane %v6022, 4
      %v6024 = vrot.slane %v5589, 5
      %v6025 = vsel %vm991, %v6023, %v6024
      %v6026 = vrot.slane %v6024, 4
      %v6027 = vrot.slane %v5590, 5
      %v6028 = vsel %vm991, %v6026, %v6027
      %v6029 = vrot.slane %v5961, 5
      %v6030 = vrot.slane %v6029, 4
      %v6031 = vrot.slane %v5592, 5
      %v6032 = vsel %vm991, %v6030, %v6031
      %v6033 = vrot.slane %v6031, 4
      %v6034 = vrot.slane %v5593, 5
      %v6035 = vsel %vm991, %v6033, %v6034
      %v6036 = vrot.slane %v5962, 5
      %v6037 = vrot.slane %v6036, 4
      %v6038 = vrot.slane %v5595, 5
      %v6039 = vsel %vm991, %v6037, %v6038
      %v6040 = vrot.slane %v6038, 4
      %v6041 = vrot.slane %v5596, 5
      %v6042 = vsel %vm991, %v6040, %v6041
      %s6043 = scalar_lea.vmem %s3, 32
      %v6044 = vld [vmem:[%s6043] sm:$0xf]
      %v6045 = vunpack.c.l.b16 %v5990
      %v6046 = vunpack.c.l.b16 %v5993
      %v6047 = vunpack.c.l.b16 %v5997
      %v6048 = vunpack.c.l.b16 %v6000
      %v6049 = vunpack.c.l.b16 %v6004
      %v6050 = vunpack.c.l.b16 %v6007
      %v6051 = vunpack.c.l.b16 %v6011
      %v6052 = vunpack.c.l.b16 %v6014
      %v6053 = vunpack.c.l.b16 %v6018
      %v6054 = vunpack.c.l.b16 %v6021
      %v6055 = vunpack.c.l.b16 %v6025
      %v6056 = vunpack.c.l.b16 %v6028
      %v6057 = vunpack.c.l.b16 %v6032
      %v6058 = vunpack.c.l.b16 %v6035
      %v6059 = vunpack.c.l.b16 %v6039
      %v6060 = vunpack.c.l.b16 %v6042
      %v6061 = vpack.c.b16 %v6046, %v6045
      %v6062 = vpack.c.b16 %v6048, %v6047
      %v6063 = vpack.c.b16 %v6050, %v6049
      %v6064 = vpack.c.b16 %v6052, %v6051
      %v6065 = vpack.c.b16 %v6054, %v6053
      %v6066 = vpack.c.b16 %v6056, %v6055
      %v6067 = vpack.c.b16 %v6058, %v6057
      %v6068 = vpack.c.b16 %v6060, %v6059
      %v6070 = vsel %vm4003, %v6061, 0
      %v6073 = vsel %vm4003, %v6062, 0
      %v6076 = vsel %vm4003, %v6063, 0
      %v6079 = vsel %vm4003, %v6064, 0
      %v6082 = vsel %vm4003, %v6065, 0
      %v6085 = vsel %vm4003, %v6066, 0
      %v6088 = vsel %vm4003, %v6067, 0
      %v6091 = vsel %vm4003, %v6068, 0
      %v6094 = vsel %vm4028, %v6044, 0
      %6096 = vmatprep.subr.bf16.mxu0 0
      %6097 = vmatpush1.bf16.msra.mxu0 %v6094
      %6098 = vmatprep.subr.bf16.mxu0 0
      %6099 = vmatpush1.bf16.msra.mxu0 0
      %6100 = vmatprep.subr.bf16.mxu0 0
      %6101 = vmatpush1.bf16.msra.mxu0 0
      %6102 = vmatprep.subr.bf16.mxu0 0
      %6103 = vmatpush1.bf16.msra.mxu0 0
      %6104 = vmatprep.subr.bf16.mxu0 0
      %6105 = vmatpush1.bf16.msra.mxu0 0
      %6106 = vmatprep.subr.bf16.mxu0 0
      %6107 = vmatpush1.bf16.msra.mxu0 0
      %6108 = vmatprep.subr.bf16.mxu0 0
      %6109 = vmatpush1.bf16.msra.mxu0 0
      %6110 = vmatprep.subr.bf16.mxu0 0
      %6111 = vmatpush1.bf16.msra.mxu0 0
      %6112 = vmatprep.subr.bf16.mxu0 0
      %6113 = vmatpush1.bf16.msra.mxu0 0
      %6114 = vmatprep.subr.bf16.mxu0 0
      %6115 = vmatpush1.bf16.msra.mxu0 0
      %6116 = vmatprep.subr.bf16.mxu0 0
      %6117 = vmatpush1.bf16.msra.mxu0 0
      %6118 = vmatprep.subr.bf16.mxu0 0
      %6119 = vmatpush1.bf16.msra.mxu0 0
      %6120 = vmatprep.subr.bf16.mxu0 0
      %6121 = vmatpush1.bf16.msra.mxu0 0
      %6122 = vmatprep.subr.bf16.mxu0 0
      %6123 = vmatpush1.bf16.msra.mxu0 0
      %6124 = vmatprep.subr.bf16.mxu0 0
      %6125 = vmatpush1.bf16.msra.mxu0 0
      %6126 = vmatprep.subr.bf16.mxu0 0
      %6127 = vmatpush1.bf16.msra.mxu0 0
      %6128 = vmatprep.mubr.bf16.mxu0 0
      %6129 = vmatmul.mubr.bf16.gmra.mrb[0].mxu0 %v6070
      %v6130 = vpop.f32.mrb[0].mxu0
      %v6131 = vadd.f32 0.0, %v6130
      %v6132 = vpop.f32.mrb[0].mxu0
      %v6133 = vpop.f32.mrb[0].mxu0
      %v6134 = vadd.f32 0.0, %v6133
      %v6135 = vpop.f32.mrb[0].mxu0
      %6136 = vmatprep.mubr.bf16.mxu0 0
      %6137 = vmatmul.mubr.bf16.gmra.mrb[0].mxu0 %v6073
      %v6138 = vpop.f32.mrb[0].mxu0
      %v6139 = vadd.f32 0.0, %v6138
      %v6140 = vpop.f32.mrb[0].mxu0
      %v6141 = vpop.f32.mrb[0].mxu0
      %v6142 = vadd.f32 0.0, %v6141
      %v6143 = vpop.f32.mrb[0].mxu0
      %6144 = vmatprep.mubr.bf16.mxu0 0
      %6145 = vmatmul.mubr.bf16.gmra.mrb[0].mxu0 %v6076
      %v6146 = vpop.f32.mrb[0].mxu0
      %v6147 = vadd.f32 0.0, %v6146
      %v6148 = vpop.f32.mrb[0].mxu0
      %v6149 = vpop.f32.mrb[0].mxu0
      %v6150 = vadd.f32 0.0, %v6149
      %v6151 = vpop.f32.mrb[0].mxu0
      %6152 = vmatprep.mubr.bf16.mxu0 0
      %6153 = vmatmul.mubr.bf16.gmra.mrb[0].mxu0 %v6079
      %v6154 = vpop.f32.mrb[0].mxu0
      %v6155 = vadd.f32 0.0, %v6154
      %v6156 = vpop.f32.mrb[0].mxu0
      %v6157 = vpop.f32.mrb[0].mxu0
      %v6158 = vadd.f32 0.0, %v6157
      %v6159 = vpop.f32.mrb[0].mxu0
      %6160 = vmatprep.mubr.bf16.mxu0 0
      %6161 = vmatmul.mubr.bf16.gmra.mrb[0].mxu0 %v6082
      %v6162 = vpop.f32.mrb[0].mxu0
      %v6163 = vadd.f32 0.0, %v6162
      %v6164 = vpop.f32.mrb[0].mxu0
      %v6165 = vpop.f32.mrb[0].mxu0
      %v6166 = vadd.f32 0.0, %v6165
      %v6167 = vpop.f32.mrb[0].mxu0
      %6168 = vmatprep.mubr.bf16.mxu0 0
      %6169 = vmatmul.mubr.bf16.gmra.mrb[0].mxu0 %v6085
      %v6170 = vpop.f32.mrb[0].mxu0
      %v6171 = vadd.f32 0.0, %v6170
      %v6172 = vpop.f32.mrb[0].mxu0
      %v6173 = vpop.f32.mrb[0].mxu0
      %v6174 = vadd.f32 0.0, %v6173
      %v6175 = vpop.f32.mrb[0].mxu0
      %6176 = vmatprep.mubr.bf16.mxu0 0
      %6177 = vmatmul.mubr.bf16.gmra.mrb[0].mxu0 %v6088
      %v6178 = vpop.f32.mrb[0].mxu0
      %v6179 = vadd.f32 0.0, %v6178
      %v6180 = vpop.f32.mrb[0].mxu0
      %v6181 = vpop.f32.mrb[0].mxu0
      %v6182 = vadd.f32 0.0, %v6181
      %v6183 = vpop.f32.mrb[0].mxu0
      %6184 = vmatprep.mubr.bf16.mxu0 0
      %6185 = vmatmul.mubr.bf16.gmra.mrb[0].mxu0 %v6091
      %v6186 = vpop.f32.mrb[0].mxu0
      %v6187 = vadd.f32 0.0, %v6186
      %v6188 = vpop.f32.mrb[0].mxu0
      %v6189 = vpop.f32.mrb[0].mxu0
      %v6190 = vadd.f32 0.0, %v6189
      %v6191 = vpop.f32.mrb[0].mxu0
      %6192 = vdwg.mxu0
      %v6193 = vadd.f32 %v5939, %v6131
      %v6194 = vadd.f32 %v5940, %v6134
      %v6195 = vadd.f32 %v5941, %v6139
      %v6196 = vadd.f32 %v5942, %v6142
      %v6197 = vadd.f32 %v5943, %v6147
      %v6198 = vadd.f32 %v5944, %v6150
      %v6199 = vadd.f32 %v5945, %v6155
      %v6200 = vadd.f32 %v5946, %v6158
      %v6201 = vadd.f32 %v5947, %v6163
      %v6202 = vadd.f32 %v5948, %v6166
      %v6203 = vadd.f32 %v5949, %v6171
      %v6204 = vadd.f32 %v5950, %v6174
      %v6205 = vadd.f32 %v5951, %v6179
      %v6206 = vadd.f32 %v5952, %v6182
      %v6207 = vadd.f32 %v5953, %v6187
      %v6208 = vadd.f32 %v5954, %v6190
      %v6209 = vld [vmem:[%s4] sm:$0x1]
      %v6211 = vlaneseq
      %v6212 = vshrl.u32 %v6211, 7
      %v6213 = vsub.s32 0, %v6212
      %v6214 = vrot.slane %v6209, %v6213
      %v6216 = vadd.f32 %v6193, %v6214
      %v6217 = vadd.f32 %v6194, %v6214
      %v6218 = vadd.f32 %v6195, %v6214
      %v6219 = vadd.f32 %v6196, %v6214
      %v6220 = vadd.f32 %v6197, %v6214
      %v6221 = vadd.f32 %v6198, %v6214
      %v6222 = vadd.f32 %v6199, %v6214
      %v6223 = vadd.f32 %v6200, %v6214
      %v6224 = vadd.f32 %v6201, %v6214
      %v6225 = vadd.f32 %v6202, %v6214
      %v6226 = vadd.f32 %v6203, %v6214
      %v6227 = vadd.f32 %v6204, %v6214
      %v6228 = vadd.f32 %v6205, %v6214
      %v6229 = vadd.f32 %v6206, %v6214
      %v6230 = vadd.f32 %v6207, %v6214
      %v6231 = vadd.f32 %v6208, %v6214
      %v6232 = vld [vmem:[%s2281] sm:$0xf]
      %v6233 = vld [vmem:[%s2281 + $0x4] sm:$0xf]
      %v6234 = vld [vmem:[%s2281 + $0x8] sm:$0x1]
      %v6235 = vld [vmem:[%s2281 + $0xc] sm:$0xf]
      %v6236 = vld [vmem:[%s2281 + $0x10] sm:$0xf]
      %v6237 = vld [vmem:[%s2281 + $0x14] sm:$0x1]
      %v6238 = vld [vmem:[%s2281 + $0x18] sm:$0xf]
      %v6239 = vld [vmem:[%s2281 + $0x1c] sm:$0xf]
      %v6240 = vld [vmem:[%s2281 + $0x20] sm:$0x1]
      %v6241 = vld [vmem:[%s2281 + $0x24] sm:$0xf]
      %v6242 = vld [vmem:[%s2281 + $0x28] sm:$0xf]
      %v6243 = vld [vmem:[%s2281 + $0x2c] sm:$0x1]
      %v6244 = vld [vmem:[%s2281 + $0x30] sm:$0xf]
      %v6245 = vld [vmem:[%s2281 + $0x34] sm:$0xf]
      %v6246 = vld [vmem:[%s2281 + $0x38] sm:$0x1]
      %v6247 = vld [vmem:[%s2281 + $0x3c] sm:$0xf]
      %v6248 = vld [vmem:[%s2281 + $0x40] sm:$0xf]
      %v6249 = vld [vmem:[%s2281 + $0x44] sm:$0x1]
      %v6250 = vld [vmem:[%s2281 + $0x48] sm:$0xf]
      %v6251 = vld [vmem:[%s2281 + $0x4c] sm:$0xf]
      %v6252 = vld [vmem:[%s2281 + $0x50] sm:$0x1]
      %v6253 = vld [vmem:[%s2281 + $0x54] sm:$0xf]
      %v6254 = vld [vmem:[%s2281 + $0x58] sm:$0xf]
      %v6255 = vld [vmem:[%s2281 + $0x5c] sm:$0x1]
      %v6257 = vshrl.u32 %v6232, 16
      %v6259 = vrot.slane %v6257, 4
      %v6260 = vshll.u32 %v6232, 16
      %v6262 = vrot.slane %v6260, 5
      %v6263 = vor.u32 %v6259, %v6262
      %v6264 = vrot.slane %v6263, 4
      %v6266 = vshll.u32 %v6233, 16
      %v6268 = vrot.slane %v6266, 5
      %v6269 = vsel %vm342, %v6264, %v6268
      %v6270 = vshrl.u32 %v6233, 16
      %v6272 = vrot.slane %v6270, 4
      %v6273 = vor.u32 %v6272, %v6268
      %v6274 = vrot.slane %v6273, 4
      %v6276 = vshll.u32 %v6234, 16
      %v6278 = vrot.slane %v6276, 5
      %v6279 = vsel %vm342, %v6274, %v6278
      %v6281 = vshrl.u32 %v6235, 16
      %v6283 = vrot.slane %v6281, 4
      %v6284 = vshll.u32 %v6235, 16
      %v6286 = vrot.slane %v6284, 5
      %v6287 = vor.u32 %v6283, %v6286
      %v6288 = vrot.slane %v6287, 4
      %v6290 = vshll.u32 %v6236, 16
      %v6292 = vrot.slane %v6290, 5
      %v6293 = vsel %vm342, %v6288, %v6292
      %v6294 = vshrl.u32 %v6236, 16
      %v6296 = vrot.slane %v6294, 4
      %v6297 = vor.u32 %v6296, %v6292
      %v6298 = vrot.slane %v6297, 4
      %v6300 = vshll.u32 %v6237, 16
      %v6302 = vrot.slane %v6300, 5
      %v6303 = vsel %vm342, %v6298, %v6302
      %v6305 = vshrl.u32 %v6238, 16
      %v6307 = vrot.slane %v6305, 4
      %v6308 = vshll.u32 %v6238, 16
      %v6310 = vrot.slane %v6308, 5
      %v6311 = vor.u32 %v6307, %v6310
      %v6312 = vrot.slane %v6311, 4
      %v6314 = vshll.u32 %v6239, 16
      %v6316 = vrot.slane %v6314, 5
      %v6317 = vsel %vm342, %v6312, %v6316
      %v6318 = vshrl.u32 %v6239, 16
      %v6320 = vrot.slane %v6318, 4
      %v6321 = vor.u32 %v6320, %v6316
      %v6322 = vrot.slane %v6321, 4
      %v6324 = vshll.u32 %v6240, 16
      %v6326 = vrot.slane %v6324, 5
      %v6327 = vsel %vm342, %v6322, %v6326
      %v6329 = vshrl.u32 %v6241, 16
      %v6331 = vrot.slane %v6329, 4
      %v6332 = vshll.u32 %v6241, 16
      %v6334 = vrot.slane %v6332, 5
      %v6335 = vor.u32 %v6331, %v6334
      %v6336 = vrot.slane %v6335, 4
      %v6338 = vshll.u32 %v6242, 16
      %v6340 = vrot.slane %v6338, 5
      %v6341 = vsel %vm342, %v6336, %v6340
      %v6342 = vshrl.u32 %v6242, 16
      %v6344 = vrot.slane %v6342, 4
      %v6345 = vor.u32 %v6344, %v6340
      %v6346 = vrot.slane %v6345, 4
      %v6348 = vshll.u32 %v6243, 16
      %v6350 = vrot.slane %v6348, 5
      %v6351 = vsel %vm342, %v6346, %v6350
      %v6353 = vshrl.u32 %v6244, 16
      %v6355 = vrot.slane %v6353, 4
      %v6356 = vshll.u32 %v6244, 16
      %v6358 = vrot.slane %v6356, 5
      %v6359 = vor.u32 %v6355, %v6358
      %v6360 = vrot.slane %v6359, 4
      %v6362 = vshll.u32 %v6245, 16
      %v6364 = vrot.slane %v6362, 5
      %v6365 = vsel %vm342, %v6360, %v6364
      %v6366 = vshrl.u32 %v6245, 16
      %v6368 = vrot.slane %v6366, 4
      %v6369 = vor.u32 %v6368, %v6364
      %v6370 = vrot.slane %v6369, 4
      %v6372 = vshll.u32 %v6246, 16
      %v6374 = vrot.slane %v6372, 5
      %v6375 = vsel %vm342, %v6370, %v6374
      %v6377 = vshrl.u32 %v6247, 16
      %v6379 = vrot.slane %v6377, 4
      %v6380 = vshll.u32 %v6247, 16
      %v6382 = vrot.slane %v6380, 5
      %v6383 = vor.u32 %v6379, %v6382
      %v6384 = vrot.slane %v6383, 4
      %v6386 = vshll.u32 %v6248, 16
      %v6388 = vrot.slane %v6386, 5
      %v6389 = vsel %vm342, %v6384, %v6388
      %v6390 = vshrl.u32 %v6248, 16
      %v6392 = vrot.slane %v6390, 4
      %v6393 = vor.u32 %v6392, %v6388
      %v6394 = vrot.slane %v6393, 4
      %v6396 = vshll.u32 %v6249, 16
      %v6398 = vrot.slane %v6396, 5
      %v6399 = vsel %vm342, %v6394, %v6398
      %v6401 = vshrl.u32 %v6250, 16
      %v6403 = vrot.slane %v6401, 4
      %v6404 = vshll.u32 %v6250, 16
      %v6406 = vrot.slane %v6404, 5
      %v6407 = vor.u32 %v6403, %v6406
      %v6408 = vrot.slane %v6407, 4
      %v6410 = vshll.u32 %v6251, 16
      %v6412 = vrot.slane %v6410, 5
      %v6413 = vsel %vm342, %v6408, %v6412
      %v6414 = vshrl.u32 %v6251, 16
      %v6416 = vrot.slane %v6414, 4
      %v6417 = vor.u32 %v6416, %v6412
      %v6418 = vrot.slane %v6417, 4
      %v6420 = vshll.u32 %v6252, 16
      %v6422 = vrot.slane %v6420, 5
      %v6423 = vsel %vm342, %v6418, %v6422
      %v6425 = vshrl.u32 %v6253, 16
      %v6427 = vrot.slane %v6425, 4
      %v6428 = vshll.u32 %v6253, 16
      %v6430 = vrot.slane %v6428, 5
      %v6431 = vor.u32 %v6427, %v6430
      %v6432 = vrot.slane %v6431, 4
      %v6434 = vshll.u32 %v6254, 16
      %v6436 = vrot.slane %v6434, 5
      %v6437 = vsel %vm342, %v6432, %v6436
      %v6438 = vshrl.u32 %v6254, 16
      %v6440 = vrot.slane %v6438, 4
      %v6441 = vor.u32 %v6440, %v6436
      %v6442 = vrot.slane %v6441, 4
      %v6444 = vshll.u32 %v6255, 16
      %v6446 = vrot.slane %v6444, 5
      %v6447 = vsel %vm342, %v6442, %v6446
      %v6448 = vld [vmem:[%s5] sm:$0x3]
      %v6449 = vld [vmem:[%s6] sm:$0x1]
      %v6451 = vlaneseq
      %v6452 = vshrl.u32 %v6451, 7
      %v6453 = vsub.s32 0, %v6452
      %v6454 = vrot.slane %v6449, %v6453
      %v6456 = vunpack.c.l.b16 %v6269
      %v6457 = vunpack.c.l.b16 %v6279
      %v6458 = vunpack.c.l.b16 %v6293
      %v6459 = vunpack.c.l.b16 %v6303
      %v6460 = vunpack.c.l.b16 %v6317
      %v6461 = vunpack.c.l.b16 %v6327
      %v6462 = vunpack.c.l.b16 %v6341
      %v6463 = vunpack.c.l.b16 %v6351
      %v6464 = vunpack.c.l.b16 %v6365
      %v6465 = vunpack.c.l.b16 %v6375
      %v6466 = vunpack.c.l.b16 %v6389
      %v6467 = vunpack.c.l.b16 %v6399
      %v6468 = vunpack.c.l.b16 %v6413
      %v6469 = vunpack.c.l.b16 %v6423
      %v6470 = vunpack.c.l.b16 %v6437
      %v6471 = vunpack.c.l.b16 %v6447
      %v6472 = vpack.c.b16 %v6457, %v6456
      %v6473 = vpack.c.b16 %v6459, %v6458
      %v6474 = vpack.c.b16 %v6461, %v6460
      %v6475 = vpack.c.b16 %v6463, %v6462
      %v6476 = vpack.c.b16 %v6465, %v6464
      %v6477 = vpack.c.b16 %v6467, %v6466
      %v6478 = vpack.c.b16 %v6469, %v6468
      %v6479 = vpack.c.b16 %v6471, %v6470
      %v6481 = vsel %vm615, %v6472, 0
      %v6484 = vsel %vm615, %v6473, 0
      %v6487 = vsel %vm615, %v6474, 0
      %v6490 = vsel %vm615, %v6475, 0
      %v6493 = vsel %vm615, %v6476, 0
      %v6496 = vsel %vm615, %v6477, 0
      %v6499 = vsel %vm615, %v6478, 0
      %v6502 = vsel %vm615, %v6479, 0
      %v6505 = vsel %vm646, %v6448, 0
      %6507 = vmatprep.subr.bf16.mxu0 0
      %6508 = vmatpush1.bf16.msra.mxu0 %v6505
      %6509 = vmatprep.subr.bf16.mxu0 0
      %6510 = vmatpush1.bf16.msra.mxu0 0
      %6511 = vmatprep.subr.bf16.mxu0 0
      %6512 = vmatpush1.bf16.msra.mxu0 0
      %6513 = vmatprep.subr.bf16.mxu0 0
      %6514 = vmatpush1.bf16.msra.mxu0 0
      %6515 = vmatprep.subr.bf16.mxu0 0
      %6516 = vmatpush1.bf16.msra.mxu0 0
      %6517 = vmatprep.subr.bf16.mxu0 0
      %6518 = vmatpush1.bf16.msra.mxu0 0
      %6519 = vmatprep.subr.bf16.mxu0 0
      %6520 = vmatpush1.bf16.msra.mxu0 0
      %6521 = vmatprep.subr.bf16.mxu0 0
      %6522 = vmatpush1.bf16.msra.mxu0 0
      %6523 = vmatprep.subr.bf16.mxu0 0
      %6524 = vmatpush1.bf16.msra.mxu0 0
      %6525 = vmatprep.subr.bf16.mxu0 0
      %6526 = vmatpush1.bf16.msra.mxu0 0
      %6527 = vmatprep.subr.bf16.mxu0 0
      %6528 = vmatpush1.bf16.msra.mxu0 0
      %6529 = vmatprep.subr.bf16.mxu0 0
      %6530 = vmatpush1.bf16.msra.mxu0 0
      %6531 = vmatprep.subr.bf16.mxu0 0
      %6532 = vmatpush1.bf16.msra.mxu0 0
      %6533 = vmatprep.subr.bf16.mxu0 0
      %6534 = vmatpush1.bf16.msra.mxu0 0
      %6535 = vmatprep.subr.bf16.mxu0 0
      %6536 = vmatpush1.bf16.msra.mxu0 0
      %6537 = vmatprep.subr.bf16.mxu0 0
      %6538 = vmatpush1.bf16.msra.mxu0 0
      %6539 = vmatprep.mubr.bf16.mxu0 0
      %6540 = vmatmul.mubr.bf16.gmra.mrb[0].mxu0 %v6481
      %v6541 = vpop.f32.mrb[0].mxu0
      %v6542 = vadd.f32 %v6454, %v6541
      %v6543 = vpop.f32.mrb[0].mxu0
      %v6544 = vpop.f32.mrb[0].mxu0
      %v6545 = vadd.f32 %v6454, %v6544
      %v6546 = vpop.f32.mrb[0].mxu0
      %6547 = vmatprep.mubr.bf16.mxu0 0
      %6548 = vmatmul.mubr.bf16.gmra.mrb[0].mxu0 %v6484
      %v6549 = vpop.f32.mrb[0].mxu0
      %v6550 = vadd.f32 %v6454, %v6549
      %v6551 = vpop.f32.mrb[0].mxu0
      %v6552 = vpop.f32.mrb[0].mxu0
      %v6553 = vadd.f32 %v6454, %v6552
      %v6554 = vpop.f32.mrb[0].mxu0
      %6555 = vmatprep.mubr.bf16.mxu0 0
      %6556 = vmatmul.mubr.bf16.gmra.mrb[0].mxu0 %v6487
      %v6557 = vpop.f32.mrb[0].mxu0
      %v6558 = vadd.f32 %v6454, %v6557
      %v6559 = vpop.f32.mrb[0].mxu0
      %v6560 = vpop.f32.mrb[0].mxu0
      %v6561 = vadd.f32 %v6454, %v6560
      %v6562 = vpop.f32.mrb[0].mxu0
      %6563 = vmatprep.mubr.bf16.mxu0 0
      %6564 = vmatmul.mubr.bf16.gmra.mrb[0].mxu0 %v6490
      %v6565 = vpop.f32.mrb[0].mxu0
      %v6566 = vadd.f32 %v6454, %v6565
      %v6567 = vpop.f32.mrb[0].mxu0
      %v6568 = vpop.f32.mrb[0].mxu0
      %v6569 = vadd.f32 %v6454, %v6568
      %v6570 = vpop.f32.mrb[0].mxu0
      %6571 = vmatprep.mubr.bf16.mxu0 0
      %6572 = vmatmul.mubr.bf16.gmra.mrb[0].mxu0 %v6493
      %v6573 = vpop.f32.mrb[0].mxu0
      %v6574 = vadd.f32 %v6454, %v6573
      %v6575 = vpop.f32.mrb[0].mxu0
      %v6576 = vpop.f32.mrb[0].mxu0
      %v6577 = vadd.f32 %v6454, %v6576
      %v6578 = vpop.f32.mrb[0].mxu0
      %6579 = vmatprep.mubr.bf16.mxu0 0
      %6580 = vmatmul.mubr.bf16.gmra.mrb[0].mxu0 %v6496
      %v6581 = vpop.f32.mrb[0].mxu0
      %v6582 = vadd.f32 %v6454, %v6581
      %v6583 = vpop.f32.mrb[0].mxu0
      %v6584 = vpop.f32.mrb[0].mxu0
      %v6585 = vadd.f32 %v6454, %v6584
      %v6586 = vpop.f32.mrb[0].mxu0
      %6587 = vmatprep.mubr.bf16.mxu0 0
      %6588 = vmatmul.mubr.bf16.gmra.mrb[0].mxu0 %v6499
      %v6589 = vpop.f32.mrb[0].mxu0
      %v6590 = vadd.f32 %v6454, %v6589
      %v6591 = vpop.f32.mrb[0].mxu0
      %v6592 = vpop.f32.mrb[0].mxu0
      %v6593 = vadd.f32 %v6454, %v6592
      %v6594 = vpop.f32.mrb[0].mxu0
      %6595 = vmatprep.mubr.bf16.mxu0 0
      %6596 = vmatmul.mubr.bf16.gmra.mrb[0].mxu0 %v6502
      %v6597 = vpop.f32.mrb[0].mxu0
      %v6598 = vadd.f32 %v6454, %v6597
      %v6599 = vpop.f32.mrb[0].mxu0
      %v6600 = vpop.f32.mrb[0].mxu0
      %v6601 = vadd.f32 %v6454, %v6600
      %v6602 = vpop.f32.mrb[0].mxu0
      %6603 = vdwg.mxu0
      %v6604 = vadd.f32 %v6216, %v6542
      %v6605 = vadd.f32 %v6217, %v6545
      %v6606 = vadd.f32 %v6218, %v6550
      %v6607 = vadd.f32 %v6219, %v6553
      %v6608 = vadd.f32 %v6220, %v6558
      %v6609 = vadd.f32 %v6221, %v6561
      %v6610 = vadd.f32 %v6222, %v6566
      %v6611 = vadd.f32 %v6223, %v6569
      %v6612 = vadd.f32 %v6224, %v6574
      %v6613 = vadd.f32 %v6225, %v6577
      %v6614 = vadd.f32 %v6226, %v6582
      %v6615 = vadd.f32 %v6227, %v6585
      %v6616 = vadd.f32 %v6228, %v6590
      %v6617 = vadd.f32 %v6229, %v6593
      %v6618 = vadd.f32 %v6230, %v6598
      %v6619 = vadd.f32 %v6231, %v6601
      %v6620 = vmax.f32 %v6604, 0.0
      %v6621 = vmax.f32 %v6605, 0.0
      %v6622 = vmax.f32 %v6606, 0.0
      %v6623 = vmax.f32 %v6607, 0.0
      %v6624 = vmax.f32 %v6608, 0.0
      %v6625 = vmax.f32 %v6609, 0.0
      %v6626 = vmax.f32 %v6610, 0.0
      %v6627 = vmax.f32 %v6611, 0.0
      %v6628 = vmax.f32 %v6612, 0.0
      %v6629 = vmax.f32 %v6613, 0.0
      %v6630 = vmax.f32 %v6614, 0.0
      %v6631 = vmax.f32 %v6615, 0.0
      %v6632 = vmax.f32 %v6616, 0.0
      %v6633 = vmax.f32 %v6617, 0.0
      %v6634 = vmax.f32 %v6618, 0.0
      %v6635 = vmax.f32 %v6619, 0.0
      %6636 = vst.msk [vmem:[%s302] sm:$0xff] %vm4003, %v6620
      %6637 = vst.msk [vmem:[%s302 + $0x8] sm:$0xff] %vm4003, %v6621
      %6638 = vst.msk [vmem:[%s302 + $0x10] sm:$0xff] %vm4003, %v6622
      %6639 = vst.msk [vmem:[%s302 + $0x18] sm:$0xff] %vm4003, %v6623
      %6640 = vst.msk [vmem:[%s302 + $0x20] sm:$0xff] %vm4003, %v6624
      %6641 = vst.msk [vmem:[%s302 + $0x28] sm:$0xff] %vm4003, %v6625
      %6642 = vst.msk [vmem:[%s302 + $0x30] sm:$0xff] %vm4003, %v6626
      %6643 = vst.msk [vmem:[%s302 + $0x38] sm:$0xff] %vm4003, %v6627
      %6644 = vst.msk [vmem:[%s302 + $0x40] sm:$0xff] %vm4003, %v6628
      %6645 = vst.msk [vmem:[%s302 + $0x48] sm:$0xff] %vm4003, %v6629
      %6646 = vst.msk [vmem:[%s302 + $0x50] sm:$0xff] %vm4003, %v6630
      %6647 = vst.msk [vmem:[%s302 + $0x58] sm:$0xff] %vm4003, %v6631
      %6648 = vst.msk [vmem:[%s302 + $0x60] sm:$0xff] %vm4003, %v6632
      %6649 = vst.msk [vmem:[%s302 + $0x68] sm:$0xff] %vm4003, %v6633
      %6650 = vst.msk [vmem:[%s302 + $0x70] sm:$0xff] %vm4003, %v6634
      %6651 = vst.msk [vmem:[%s302 + $0x78] sm:$0xff] %vm4003, %v6635
      %s6652 = smul.u32 8, %s23
      %p6653 = scmp.lt.s32.totalorder %s22, 1
      %s6654 = scalar_select %p6653, %s22, 1
      %p6655 = scmp.lt.s32.totalorder %s6652, 15
      %s6656 = scalar_select %p6655, %s6652, 15
      %s6657 = smul.addr %s6656, 2
      %s6658 = smul.addr %s6654, 32
      %s6659 = sadd.s32 %s6657, %s6658
      %s6660 = smul.addr %s6659, 8
      %s6661 = scalar_lea.vmem %s7, %s6660
      // Predicated region
      $region57: #{tpu_custom_call.1} parent=47 // pred_check
        %p6662 = pneg %p202
      $region58: #{tpu_custom_call.1} parent=47 // pred_check_branch
        %6664 = sbr.rel (%p6662) target = $region60
      $region59: #{tpu_custom_call.1} parent=47 // pred_region
        %s6665 = smul.u32 8, %s23
      $region60: #{tpu_custom_call.1} parent=47 // pred_fallthru
        _
    $region48: #{tpu_custom_call.1} parent=5 // pred_fallthru
      _
    %p6666 = scmp.le.s32.totalorder 2, %s13
    // Predicated region
    $region61: #{tpu_custom_call.1} parent=5 // pred_check
      %p6667 = pneg %p6666
    $region62: #{tpu_custom_call.1} parent=5 // pred_check_branch
      %6669 = sbr.rel (%p6667) target = $region64
    $region63: #{tpu_custom_call.1} parent=5 // pred_region
      %s6670 = ssub.s32 %s13, 2
      // Predicated region
      $region65: #{tpu_custom_call.1} parent=63 // pred_check
        %p6671 = pneg %p208
      $region66: #{tpu_custom_call.1} parent=63 // pred_check_branch
        %6673 = sbr.rel (%p6671) target = $region68
      $region67: #{tpu_custom_call.1} parent=63 // pred_region
        %s6674 = smul.u32 8, %s25
        %p6675 = scmp.lt.s32.totalorder %s24, 1
        %s6676 = scalar_select %p6675, %s24, 1
        %p6677 = scmp.lt.s32.totalorder %s6674, 15
        %s6678 = scalar_select %p6677, %s6674, 15
        %s6679 = smul.addr %s6678, 2
        %s6680 = smul.addr %s6676, 32
        %s6681 = sadd.s32 %s6679, %s6680
        %s6682 = smul.addr %s6681, 8
        %s6683 = scalar_lea.vmem %s7, %s6682
      $region68: #{tpu_custom_call.1} parent=63 // pred_fallthru
        _
    $region64: #{tpu_custom_call.1} parent=5 // pred_fallthru
      _
  $region6: #{tpu_custom_call.1} parent=0 // loop_footer
    %s17 = sadd.s32 1, %s13
  $region7: #{tpu_custom_call.1} parent=0 // loop_footer_branch
    %12 = sbr.rel target = $region3
  $region8: #{tpu_custom_call.1} parent=0 // loop_exit
    _

</llo_original>
